<compile_context>
chip_gen: v7x
topology: tpu7x:2x2x1
jax: 0.10.0
libtpu: 0.0.40
codegen_flags: <defaults>
</compile_context>

<pallas_src>
import functools

import jax
import jax.numpy as jnp
from jax import lax
from jax.experimental import pallas as pl
from jax.experimental.pallas import tpu as pltpu


def _round_up(x, m):
    return ((x + m - 1) // m) * m


def _pad_gate_cols(w_t, rows_to, hidden, hidden_p):
    """(rows, 4*hidden) -> (rows_to, 4*hidden_p), zero-padding each gate block."""
    rows = w_t.shape[0]
    w = w_t.reshape(rows, 4, hidden)
    w = jnp.pad(w, ((0, rows_to - rows), (0, 0), (0, hidden_p - hidden)))
    return w.reshape(rows_to, 4 * hidden_p)


def _pad_bias(b, hidden, hidden_p):
    return jnp.pad(b.reshape(4, hidden),
                   ((0, 0), (0, hidden_p - hidden))).reshape(4 * hidden_p)


def _pick_chunk(seq, bblk, hidden_p, target_rows=256, gx_budget_bytes=8 << 20):
    """Time-chunk size: aim for >=256 GEMM rows (v6e MXU height) but cap the
    f32 gx scratch (chunk*bblk*4H_pad*4 bytes) to a VMEM budget (v7x 64 MiB)."""
    chunk = max(1, target_rows // bblk)
    chunk = min(chunk, seq)
    vmem_cap = max(1, gx_budget_bytes // (bblk * 4 * hidden_p * 4))
    return max(1, min(chunk, vmem_cap))


def _fused_lstm_kernel(x_ref, wih_ref, whh_ref, b_ref, out_ref,
                       h_sc, c_sc, act_sc, gx_sc, *,
                       chunk, n_layers, hidden_p, bblk, seq_len, unroll):
    """All LSTM layers for one (batch-block, time-chunk) grid point.

      x_ref   : (chunk, bblk, F_pad)        bf16  input chunk (layer 0)
      wih_ref : (L, F_pad, 4H_pad)          bf16  input->hidden weights (T)
      whh_ref : (L, H_pad, 4H_pad)          bf16  hidden->hidden weights (T)
      b_ref   : (L, 1, 4H_pad)              f32   b_ih + b_hh (gate-padded)
      out_ref : (bblk, H_pad)               f32   h_n of the last layer
      h_sc/c_sc : (L, bblk, H_pad)          f32   carried per-layer state
      act_sc  : (chunk*bblk, H_pad)         bf16  inter-layer chunk activations
      gx_sc   : (chunk*bblk, 4H_pad)        f32   hoisted input-projection gates
    """
    ci = pl.program_id(1)

    @pl.when(ci == 0)
    def _():
        h_sc[...] = jnp.zeros_like(h_sc)
        c_sc[...] = jnp.zeros_like(c_sc)

    f_pad = x_ref.shape[2]
    needs_guard = (seq_len % chunk) != 0
    base_t = ci * chunk

    h_fin = None
    for layer in range(n_layers):                       # static (trace-time) loop
        wih_full = wih_ref[layer]                       # (F_pad, 4H_pad) bf16
        if layer == 0:
            # Layout no-op: bblk is a multiple of 16 (bf16 sublane tile).
            x_chunk = x_ref[...].reshape(chunk * bblk, f_pad)
            wih = wih_full
        else:
            x_chunk = act_sc[...]                       # (chunk*bblk, H_pad) bf16
            wih = wih_full[:hidden_p, :]                # lane/sublane-aligned slice

        # Hoisted input projection: ONE GEMM with M = chunk*bblk rows.
        gx_sc[...] = (
            jnp.dot(x_chunk, wih, preferred_element_type=jnp.float32)
            + b_ref[layer]
        )

        whh = whh_ref[layer]                            # (H_pad, 4H_pad) bf16
        write_act = layer < n_layers - 1

        def step(t, carry, whh=whh, write_act=write_act):
            h, c = carry
            row = pl.multiple_of(t * bblk, bblk)        # aligned sublane offset
            gates = gx_sc[pl.ds(row, bblk), :] + jnp.dot(
                h.astype(jnp.bfloat16), whh, preferred_element_type=jnp.float32)
            # PyTorch gate order: input, forget, cell(g), output.
            # Slices are 128-lane aligned because hidden_p % 128 == 0.
            i_g = jax.nn.sigmoid(gates[:, 0 * hidden_p:1 * hidden_p])
            f_g = jax.nn.sigmoid(gates[:, 1 * hidden_p:2 * hidden_p])
            g_g = jnp.tanh(gates[:, 2 * hidden_p:3 * hidden_p])
            o_g = jax.nn.sigmoid(gates[:, 3 * hidden_p:4 * hidden_p])
            c_new = f_g * c + i_g * g_g
            h_new = o_g * jnp.tanh(c_new)
            if needs_guard:                             # padded time steps: keep state
                active = (base_t + t) < seq_len
                h_new = jnp.where(active, h_new, h)
                c_new = jnp.where(active, c_new, c)
            if write_act:
                act_sc[pl.ds(row, bblk), :] = h_new.astype(act_sc.dtype)
            return h_new, c_new

        h_fin, c_fin = lax.fori_loop(0, chunk, step,
                                     (h_sc[layer], c_sc[layer]),
                                     unroll=unroll)
        h_sc[layer] = h_fin
        c_sc[layer] = c_fin

    # Constant output block index across the chunk axis: resident in VMEM,
    # flushed to HBM once at the end of the grid.
    out_ref[...] = h_fin.astype(out_ref.dtype)


def _build_lstm_call(seq_pad, bp, bblk, f_pad, hidden_p, n_layers, chunk,
                     seq_len, unroll):
    four_h = 4 * hidden_p
    n_bblk = bp // bblk
    n_chunks = seq_pad // chunk

    kernel = functools.partial(
        _fused_lstm_kernel, chunk=chunk, n_layers=n_layers, hidden_p=hidden_p,
        bblk=bblk, seq_len=seq_len, unroll=unroll)

    in_specs = [
        pl.BlockSpec((chunk, bblk, f_pad), lambda b, c: (c, b, 0)),
        # Constant-index operands: single-buffer to halve resident VMEM.
        pl.BlockSpec((n_layers, f_pad, four_h), lambda b, c: (0, 0, 0),
                     pipeline_mode=pl.Buffered(1)),
        pl.BlockSpec((n_layers, hidden_p, four_h), lambda b, c: (0, 0, 0),
                     pipeline_mode=pl.Buffered(1)),
        pl.BlockSpec((n_layers, 1, four_h), lambda b, c: (0, 0, 0),
                     pipeline_mode=pl.Buffered(1)),
    ]
    out_spec = pl.BlockSpec((bblk, hidden_p), lambda b, c: (b, 0))

    scratch_shapes = [
        pltpu.VMEM((n_layers, bblk, hidden_p), jnp.float32),     # h state
        pltpu.VMEM((n_layers, bblk, hidden_p), jnp.float32),     # c state
        pltpu.VMEM((chunk * bblk, hidden_p), jnp.bfloat16),      # inter-layer act
        pltpu.VMEM((chunk * bblk, four_h), jnp.float32),         # hoisted x-proj
    ]

    # VMEM budget: 2x input bufs + single-buffered weights + 2x output bufs
    # + scratches; clamp into [32 MiB, 56 MiB] (v7x has 64 MiB physical).
    vmem_est = (2 * chunk * bblk * f_pad * 2
                + n_layers * (f_pad + hidden_p) * four_h * 2
                + n_layers * four_h * 4
                + 2 * bblk * hidden_p * 4
                + 2 * n_layers * bblk * hidden_p * 4
                + chunk * bblk * hidden_p * 2
                + chunk * bblk * four_h * 4)
    vmem_limit = min(max(int(vmem_est * 1.5) + (4 << 20), 32 << 20), 56 << 20)

    return pl.pallas_call(
        kernel,
        out_shape=jax.ShapeDtypeStruct((bp, hidden_p), jnp.float32),
        grid_spec=pltpu.PrefetchScalarGridSpec(
            num_scalar_prefetch=0,
            grid=(n_bblk, n_chunks),
            in_specs=in_specs,
            out_specs=out_spec,
            scratch_shapes=scratch_shapes,
        ),
        compiler_params=pltpu.CompilerParams(
            # Batch-block axis is "parallel" (v7x megacore; no-op on v5e/v6e),
            # time-chunk axis is the sequential recurrence.
            dimension_semantics=("parallel", "arbitrary"),
            vmem_limit_bytes=vmem_limit,
        ),
    )


class LSTMBlockPallas:
    """JAX/Pallas re-implementation of LSTMBlock.forward (eval mode):
    returns h_n[-1] of shape (batch, hidden_size)."""

    def __init__(self, input_size, hidden_size, n_layers, dropout, key):
        self.input_size = input_size
        self.hidden_size = hidden_size
        self.n_layers = n_layers
        # TODO(synk): nn.LSTM inter-layer dropout applies only in training
        # mode; this kernel reproduces eval-mode forward (no dropout).
        self.dropout = dropout

        self.hidden_p = _round_up(hidden_size, 128)
        self.f_pad = max(_round_up(input_size, 128), self.hidden_p)

        bound = float(hidden_size) ** -0.5
        self.params = []                  # raw f32 params (for the reference)
        wih_list, whh_list, b_list = [], [], []
        for layer in range(n_layers):
            f_in = input_size if layer == 0 else hidden_size
            key, k1, k2, k3, k4 = jax.random.split(key, 5)
            w_ih = jax.random.uniform(k1, (4 * hidden_size, f_in),
                                      jnp.float32, -bound, bound)
            w_hh = jax.random.uniform(k2, (4 * hidden_size, hidden_size),
                                      jnp.float32, -bound, bound)
            b_ih = jax.random.uniform(k3, (4 * hidden_size,),
                                      jnp.float32, -bound, bound)
            b_hh = jax.random.uniform(k4, (4 * hidden_size,),
                                      jnp.float32, -bound, bound)
            self.params.append((w_ih, w_hh, b_ih, b_hh))
            # Pre-transpose to (F, 4H); zero-pad each gate block to H_pad lanes
            # (keeps padded state columns exactly zero); stack across layers.
            wih_list.append(_pad_gate_cols(jnp.transpose(w_ih), self.f_pad,
                                           hidden_size, self.hidden_p))
            whh_list.append(_pad_gate_cols(jnp.transpose(w_hh), self.hidden_p,
                                           hidden_size, self.hidden_p))
            b_list.append(_pad_bias(b_ih + b_hh, hidden_size, self.hidden_p))

        self.wih_stack = jnp.stack(wih_list).astype(jnp.bfloat16)   # (L,F_pad,4H_pad)
        self.whh_stack = jnp.stack(whh_list).astype(jnp.bfloat16)   # (L,H_pad,4H_pad)
        self.bias_stack = jnp.stack(b_list)[:, None, :]              # (L,1,4H_pad) f32

    @functools.partial(jax.jit, static_argnums=0)
    def __call__(self, x):
        # x: (batch, seq, input_size)
        batch, seq, f_in = x.shape
        hp, fp, n_layers = self.hidden_p, self.f_pad, self.n_layers

        # Pad batch to a multiple of 16 sublanes (bf16 packs 16 rows / vreg).
        bp = max(16, _round_up(batch, 16))
        # Split batch across two blocks only when each half keeps >=16 rows
        # (v7x: one block per TensorCore; v5e/v6e: sequential, negligible cost).
        bblk = bp // 2 if (bp >= 32 and bp % 32 == 0) else bp

        chunk = _pick_chunk(seq, bblk, hp)
        n_chunks = -(-seq // chunk)
        seq_pad = n_chunks * chunk
        # Full unroll only while the chunk is small; otherwise a divisor of chunk.
        if chunk <= 8:
            unroll = True
        else:
            unroll = max(d for d in (8, 4, 2, 1) if chunk % d == 0)

        x_p = jnp.pad(x, ((0, bp - batch), (0, seq_pad - seq), (0, fp - f_in)))
        x_tm = jnp.transpose(x_p, (1, 0, 2)).astype(jnp.bfloat16)   # (seq_pad,Bp,F_pad)

        call = _build_lstm_call(seq_pad, bp, bblk, fp, hp, n_layers, chunk,
                                seq, unroll)
        out = call(x_tm, self.wih_stack, self.whh_stack, self.bias_stack)
        return out[:batch, :self.hidden_size]


def _reference_lstm(x, params, hidden):
    """Pure-JAX reference mirroring the kernel's numerics (bf16 MXU operands,
    f32 accumulation/elementwise, bf16 inter-layer activations)."""
    f32 = jnp.float32

    def rt(a):  # round-trip through bf16 (matches kernel operand precision)
        return a.astype(jnp.bfloat16).astype(f32)

    layer_in = rt(jnp.transpose(x, (1, 0, 2)))          # (seq, B, F)
    h = None
    for (w_ih, w_hh, b_ih, b_hh) in params:
        wih = rt(jnp.transpose(w_ih))                   # (F, 4H)
        whh = rt(jnp.transpose(w_hh))                   # (H, 4H)
        bias = (b_ih + b_hh)[None, :]
        seq, b, _ = layer_in.shape
        h = jnp.zeros((b, hidden), f32)
        c = jnp.zeros((b, hidden), f32)
        outs = []
        for t in range(seq):
            g = layer_in[t] @ wih + bias + rt(h) @ whh
            i = jax.nn.sigmoid(g[:, 0 * hidden:1 * hidden])
            f = jax.nn.sigmoid(g[:, 1 * hidden:2 * hidden])
            gg = jnp.tanh(g[:, 2 * hidden:3 * hidden])
            o = jax.nn.sigmoid(g[:, 3 * hidden:4 * hidden])
            c = f * c + i * gg
            h = o * jnp.tanh(c)
            outs.append(rt(h))
        layer_in = jnp.stack(outs, axis=0)
    return h


if __name__ == "__main__":
    batch, seq, input_size = 2, 8, 16
    hidden_size, n_layers, dropout = 32, 2, 0.0

    key = jax.random.PRNGKey(0)
    key, k_x, k_p = jax.random.split(key, 3)
    x = jax.random.normal(k_x, (batch, seq, input_size), jnp.float32)

    model = LSTMBlockPallas(input_size, hidden_size, n_layers, dropout, k_p)

    out = jax.block_until_ready(model(x))
    assert out.shape == (batch, hidden_size), out.shape

    ref = _reference_lstm(x, model.params, hidden_size)
    max_err = float(jnp.max(jnp.abs(out - ref)))
    assert jnp.allclose(out, ref, atol=2e-3, rtol=2e-3), max_err

    print("KERNEL_OK")
</pallas_src>

<mosaic_0001>
module attributes {stable_mosaic.version = 11 : i64} {
  func.func @_fused_lstm_kernel(%arg0: i32, %arg1: i32, %arg2: memref<8x16x128xbf16, #tpu.memory_space<vmem>>, %arg3: memref<2x128x512xbf16, #tpu.memory_space<vmem>>, %arg4: memref<2x128x512xbf16, #tpu.memory_space<vmem>>, %arg5: memref<2x1x512xf32, #tpu.memory_space<vmem>>, %arg6: memref<16x128xf32, #tpu.memory_space<vmem>>, %arg7: memref<2x16x128xf32, #tpu.memory_space<vmem>>, %arg8: memref<2x16x128xf32, #tpu.memory_space<vmem>>, %arg9: memref<128x128xbf16, #tpu.memory_space<vmem>>, %arg10: memref<128x512xf32, #tpu.memory_space<vmem>>) attributes {dimension_semantics = [#tpu.dimension_semantics<parallel>, #tpu.dimension_semantics<arbitrary>], iteration_bounds = array<i64: 1, 1>, scalar_prefetch = 0 : i64, scratch_operands = 4 : i64, tpu.core_type = #tpu.core_type<tc>, window_params = [{transform_indices = @transform_0, window_bounds = array<i64: 8, 16, 128>}, {pipeline_mode = #tpu.pipeline_mode<synchronous>, transform_indices = @transform_1, window_bounds = array<i64: 2, 128, 512>}, {pipeline_mode = #tpu.pipeline_mode<synchronous>, transform_indices = @transform_2, window_bounds = array<i64: 2, 128, 512>}, {pipeline_mode = #tpu.pipeline_mode<synchronous>, transform_indices = @transform_3, window_bounds = array<i64: 2, 1, 512>}, {transform_indices = @transform_4, window_bounds = array<i64: 16, 128>}]} {
    %c0_i32 = arith.constant 0 : i32
    %0 = arith.cmpi eq, %arg1, %c0_i32 : i32
    %1 = arith.extui %0 : i1 to i32
    %c0_i32_0 = arith.constant 0 : i32
    %2 = arith.cmpi ne, %1, %c0_i32_0 : i32
    scf.if %2 {
      %cst_166 = arith.constant 0.000000e+00 : f32
      %583 = vector.broadcast %cst_166 : f32 to vector<2x16x128xf32>
      %c0_167 = arith.constant 0 : index
      %c0_168 = arith.constant 0 : index
      %c0_169 = arith.constant 0 : index
      %584 = vector.load %arg7[%c0_167, %c0_168, %c0_169] : memref<2x16x128xf32, #tpu.memory_space<vmem>>, vector<2x16x128xf32>
      tpu.vector_store %arg7[%c0_167, %c0_168, %c0_169], %583 {strides = array<i32>} : memref<2x16x128xf32, #tpu.memory_space<vmem>>, vector<2x16x128xf32>,
      %cst_170 = arith.constant 0.000000e+00 : f32
      %585 = vector.broadcast %cst_170 : f32 to vector<2x16x128xf32>
      %c0_171 = arith.constant 0 : index
      %c0_172 = arith.constant 0 : index
      %c0_173 = arith.constant 0 : index
      %586 = vector.load %arg8[%c0_171, %c0_172, %c0_173] : memref<2x16x128xf32, #tpu.memory_space<vmem>>, vector<2x16x128xf32>
      tpu.vector_store %arg8[%c0_171, %c0_172, %c0_173], %585 {strides = array<i32>} : memref<2x16x128xf32, #tpu.memory_space<vmem>>, vector<2x16x128xf32>,
    } else {
    }
    %c0 = arith.constant 0 : index
    %c0_1 = arith.constant 0 : index
    %c0_2 = arith.constant 0 : index
    %3 = vector.load %arg3[%c0, %c0_1, %c0_2] : memref<2x128x512xbf16, #tpu.memory_space<vmem>>, vector<1x128x512xbf16>
    %4 = vector.shape_cast %3 : vector<1x128x512xbf16> to vector<128x512xbf16>
    %c0_3 = arith.constant 0 : index
    %c0_4 = arith.constant 0 : index
    %c0_5 = arith.constant 0 : index
    %5 = vector.load %arg2[%c0_3, %c0_4, %c0_5] : memref<8x16x128xbf16, #tpu.memory_space<vmem>>, vector<8x16x128xbf16>
    %6 = vector.shape_cast %5 : vector<8x16x128xbf16> to vector<128x128xbf16>
    %cst = arith.constant dense<0.000000e+00> : vector<128x512xf32>
    %7 = tpu.matmul %6, %4, %cst {dimension_numbers = #tpu.dot_dimension_numbers<[1], [0], [0], [1], [0, 0, 1, 1], [], []>} : vector<128x128xbf16>, vector<128x512xbf16>, vector<128x512xf32> -> vector<128x512xf32>
    %c0_6 = arith.constant 0 : index
    %c0_7 = arith.constant 0 : index
    %c0_8 = arith.constant 0 : index
    %8 = vector.load %arg5[%c0_6, %c0_7, %c0_8] : memref<2x1x512xf32, #tpu.memory_space<vmem>>, vector<1x1x512xf32>
    %9 = vector.shape_cast %8 : vector<1x1x512xf32> to vector<1x512xf32>
    %10 = vector.broadcast %9 : vector<1x512xf32> to vector<128x512xf32>
    %11 = arith.addf %7, %10 : vector<128x512xf32>
    %c0_9 = arith.constant 0 : index
    %c0_10 = arith.constant 0 : index
    %12 = vector.load %arg10[%c0_9, %c0_10] : memref<128x512xf32, #tpu.memory_space<vmem>>, vector<128x512xf32>
    tpu.vector_store %arg10[%c0_9, %c0_10], %11 {strides = array<i32>} : memref<128x512xf32, #tpu.memory_space<vmem>>, vector<128x512xf32>,
    %c0_11 = arith.constant 0 : index
    %c0_12 = arith.constant 0 : index
    %c0_13 = arith.constant 0 : index
    %13 = vector.load %arg4[%c0_11, %c0_12, %c0_13] : memref<2x128x512xbf16, #tpu.memory_space<vmem>>, vector<1x128x512xbf16>
    %14 = vector.shape_cast %13 : vector<1x128x512xbf16> to vector<128x512xbf16>
    %c0_14 = arith.constant 0 : index
    %c0_15 = arith.constant 0 : index
    %c0_16 = arith.constant 0 : index
    %15 = vector.load %arg7[%c0_14, %c0_15, %c0_16] : memref<2x16x128xf32, #tpu.memory_space<vmem>>, vector<1x16x128xf32>
    %16 = vector.shape_cast %15 : vector<1x16x128xf32> to vector<16x128xf32>
    %c0_17 = arith.constant 0 : index
    %c0_18 = arith.constant 0 : index
    %c0_19 = arith.constant 0 : index
    %17 = vector.load %arg8[%c0_17, %c0_18, %c0_19] : memref<2x16x128xf32, #tpu.memory_space<vmem>>, vector<1x16x128xf32>
    %18 = vector.shape_cast %17 : vector<1x16x128xf32> to vector<16x128xf32>
    %c0_i32_20 = arith.constant 0 : i32
    %c16_i32 = arith.constant 16 : i32
    %19 = arith.muli %c0_i32_20, %c16_i32 : i32
    %20 = tpu.assume_multiple %19, 16 : i32
    %21 = arith.index_cast %20 : i32 to index
    %c0_21 = arith.constant 0 : index
    %22 = vector.load %arg10[%21, %c0_21] : memref<128x512xf32, #tpu.memory_space<vmem>>, vector<16x512xf32>
    %23 = arith.truncf %16 : vector<16x128xf32> to vector<16x128xbf16>
    %cst_22 = arith.constant dense<0.000000e+00> : vector<16x512xf32>
    %24 = tpu.matmul %23, %14, %cst_22 {dimension_numbers = #tpu.dot_dimension_numbers<[1], [0], [0], [1], [0, 0, 1, 1], [], []>} : vector<16x128xbf16>, vector<128x512xbf16>, vector<16x512xf32> -> vector<16x512xf32>
    %25 = arith.addf %22, %24 : vector<16x512xf32>
    %26 = vector.extract_strided_slice %25 {offsets = [0, 0], sizes = [16, 128], strides = [1, 1]} : vector<16x512xf32> to vector<16x128xf32>
    %27 = arith.negf %26 : vector<16x128xf32>
    %28 = math.exp %27 : vector<16x128xf32>
    %cst_23 = arith.constant 1.000000e+00 : f32
    %29 = vector.broadcast %cst_23 : f32 to vector<16x128xf32>
    %30 = arith.addf %29, %28 : vector<16x128xf32>
    %31 = arith.divf %29, %30 : vector<16x128xf32>
    %32 = vector.extract_strided_slice %25 {offsets = [0, 128], sizes = [16, 128], strides = [1, 1]} : vector<16x512xf32> to vector<16x128xf32>
    %33 = arith.negf %32 : vector<16x128xf32>
    %34 = math.exp %33 : vector<16x128xf32>
    %cst_24 = arith.constant 1.000000e+00 : f32
    %35 = vector.broadcast %cst_24 : f32 to vector<16x128xf32>
    %36 = arith.addf %35, %34 : vector<16x128xf32>
    %37 = arith.divf %35, %36 : vector<16x128xf32>
    %38 = vector.extract_strided_slice %25 {offsets = [0, 256], sizes = [16, 128], strides = [1, 1]} : vector<16x512xf32> to vector<16x128xf32>
    %39 = math.tanh %38 : vector<16x128xf32>
    %40 = vector.extract_strided_slice %25 {offsets = [0, 384], sizes = [16, 128], strides = [1, 1]} : vector<16x512xf32> to vector<16x128xf32>
    %41 = arith.negf %40 : vector<16x128xf32>
    %42 = math.exp %41 : vector<16x128xf32>
    %cst_25 = arith.constant 1.000000e+00 : f32
    %43 = vector.broadcast %cst_25 : f32 to vector<16x128xf32>
    %44 = arith.addf %43, %42 : vector<16x128xf32>
    %45 = arith.divf %43, %44 : vector<16x128xf32>
    %46 = arith.mulf %37, %18 : vector<16x128xf32>
    %47 = arith.mulf %31, %39 : vector<16x128xf32>
    %48 = arith.addf %46, %47 : vector<16x128xf32>
    %49 = math.tanh %48 : vector<16x128xf32>
    %50 = arith.mulf %45, %49 : vector<16x128xf32>
    %51 = arith.truncf %50 : vector<16x128xf32> to vector<16x128xbf16>
    %52 = arith.index_cast %20 : i32 to index
    %c0_26 = arith.constant 0 : index
    %53 = vector.load %arg9[%52, %c0_26] : memref<128x128xbf16, #tpu.memory_space<vmem>>, vector<16x128xbf16>
    tpu.vector_store %arg9[%52, %c0_26], %51 {strides = array<i32>} : memref<128x128xbf16, #tpu.memory_space<vmem>>, vector<16x128xbf16>,
    %c1_i32 = arith.constant 1 : i32
    %c16_i32_27 = arith.constant 16 : i32
    %54 = arith.muli %c1_i32, %c16_i32_27 : i32
    %55 = tpu.assume_multiple %54, 16 : i32
    %56 = arith.index_cast %55 : i32 to index
    %c0_28 = arith.constant 0 : index
    %57 = vector.load %arg10[%56, %c0_28] : memref<128x512xf32, #tpu.memory_space<vmem>>, vector<16x512xf32>
    %58 = arith.truncf %50 : vector<16x128xf32> to vector<16x128xbf16>
    %cst_29 = arith.constant dense<0.000000e+00> : vector<16x512xf32>
    %59 = tpu.matmul %58, %14, %cst_29 {dimension_numbers = #tpu.dot_dimension_numbers<[1], [0], [0], [1], [0, 0, 1, 1], [], []>} : vector<16x128xbf16>, vector<128x512xbf16>, vector<16x512xf32> -> vector<16x512xf32>
    %60 = arith.addf %57, %59 : vector<16x512xf32>
    %61 = vector.extract_strided_slice %60 {offsets = [0, 0], sizes = [16, 128], strides = [1, 1]} : vector<16x512xf32> to vector<16x128xf32>
    %62 = arith.negf %61 : vector<16x128xf32>
    %63 = math.exp %62 : vector<16x128xf32>
    %cst_30 = arith.constant 1.000000e+00 : f32
    %64 = vector.broadcast %cst_30 : f32 to vector<16x128xf32>
    %65 = arith.addf %64, %63 : vector<16x128xf32>
    %66 = arith.divf %64, %65 : vector<16x128xf32>
    %67 = vector.extract_strided_slice %60 {offsets = [0, 128], sizes = [16, 128], strides = [1, 1]} : vector<16x512xf32> to vector<16x128xf32>
    %68 = arith.negf %67 : vector<16x128xf32>
    %69 = math.exp %68 : vector<16x128xf32>
    %cst_31 = arith.constant 1.000000e+00 : f32
    %70 = vector.broadcast %cst_31 : f32 to vector<16x128xf32>
    %71 = arith.addf %70, %69 : vector<16x128xf32>
    %72 = arith.divf %70, %71 : vector<16x128xf32>
    %73 = vector.extract_strided_slice %60 {offsets = [0, 256], sizes = [16, 128], strides = [1, 1]} : vector<16x512xf32> to vector<16x128xf32>
    %74 = math.tanh %73 : vector<16x128xf32>
    %75 = vector.extract_strided_slice %60 {offsets = [0, 384], sizes = [16, 128], strides = [1, 1]} : vector<16x512xf32> to vector<16x128xf32>
    %76 = arith.negf %75 : vector<16x128xf32>
    %77 = math.exp %76 : vector<16x128xf32>
    %cst_32 = arith.constant 1.000000e+00 : f32
    %78 = vector.broadcast %cst_32 : f32 to vector<16x128xf32>
    %79 = arith.addf %78, %77 : vector<16x128xf32>
    %80 = arith.divf %78, %79 : vector<16x128xf32>
    %81 = arith.mulf %72, %48 : vector<16x128xf32>
    %82 = arith.mulf %66, %74 : vector<16x128xf32>
    %83 = arith.addf %81, %82 : vector<16x128xf32>
    %84 = math.tanh %83 : vector<16x128xf32>
    %85 = arith.mulf %80, %84 : vector<16x128xf32>
    %86 = arith.truncf %85 : vector<16x128xf32> to vector<16x128xbf16>
    %87 = arith.index_cast %55 : i32 to index
    %c0_33 = arith.constant 0 : index
    %88 = vector.load %arg9[%87, %c0_33] : memref<128x128xbf16, #tpu.memory_space<vmem>>, vector<16x128xbf16>
    tpu.vector_store %arg9[%87, %c0_33], %86 {strides = array<i32>} : memref<128x128xbf16, #tpu.memory_space<vmem>>, vector<16x128xbf16>,
    %c2_i32 = arith.constant 2 : i32
    %c16_i32_34 = arith.constant 16 : i32
    %89 = arith.muli %c2_i32, %c16_i32_34 : i32
    %90 = tpu.assume_multiple %89, 16 : i32
    %91 = arith.index_cast %90 : i32 to index
    %c0_35 = arith.constant 0 : index
    %92 = vector.load %arg10[%91, %c0_35] : memref<128x512xf32, #tpu.memory_space<vmem>>, vector<16x512xf32>
    %93 = arith.truncf %85 : vector<16x128xf32> to vector<16x128xbf16>
    %cst_36 = arith.constant dense<0.000000e+00> : vector<16x512xf32>
    %94 = tpu.matmul %93, %14, %cst_36 {dimension_numbers = #tpu.dot_dimension_numbers<[1], [0], [0], [1], [0, 0, 1, 1], [], []>} : vector<16x128xbf16>, vector<128x512xbf16>, vector<16x512xf32> -> vector<16x512xf32>
    %95 = arith.addf %92, %94 : vector<16x512xf32>
    %96 = vector.extract_strided_slice %95 {offsets = [0, 0], sizes = [16, 128], strides = [1, 1]} : vector<16x512xf32> to vector<16x128xf32>
    %97 = arith.negf %96 : vector<16x128xf32>
    %98 = math.exp %97 : vector<16x128xf32>
    %cst_37 = arith.constant 1.000000e+00 : f32
    %99 = vector.broadcast %cst_37 : f32 to vector<16x128xf32>
    %100 = arith.addf %99, %98 : vector<16x128xf32>
    %101 = arith.divf %99, %100 : vector<16x128xf32>
    %102 = vector.extract_strided_slice %95 {offsets = [0, 128], sizes = [16, 128], strides = [1, 1]} : vector<16x512xf32> to vector<16x128xf32>
    %103 = arith.negf %102 : vector<16x128xf32>
    %104 = math.exp %103 : vector<16x128xf32>
    %cst_38 = arith.constant 1.000000e+00 : f32
    %105 = vector.broadcast %cst_38 : f32 to vector<16x128xf32>
    %106 = arith.addf %105, %104 : vector<16x128xf32>
    %107 = arith.divf %105, %106 : vector<16x128xf32>
    %108 = vector.extract_strided_slice %95 {offsets = [0, 256], sizes = [16, 128], strides = [1, 1]} : vector<16x512xf32> to vector<16x128xf32>
    %109 = math.tanh %108 : vector<16x128xf32>
    %110 = vector.extract_strided_slice %95 {offsets = [0, 384], sizes = [16, 128], strides = [1, 1]} : vector<16x512xf32> to vector<16x128xf32>
    %111 = arith.negf %110 : vector<16x128xf32>
    %112 = math.exp %111 : vector<16x128xf32>
    %cst_39 = arith.constant 1.000000e+00 : f32
    %113 = vector.broadcast %cst_39 : f32 to vector<16x128xf32>
    %114 = arith.addf %113, %112 : vector<16x128xf32>
    %115 = arith.divf %113, %114 : vector<16x128xf32>
    %116 = arith.mulf %107, %83 : vector<16x128xf32>
    %117 = arith.mulf %101, %109 : vector<16x128xf32>
    %118 = arith.addf %116, %117 : vector<16x128xf32>
    %119 = math.tanh %118 : vector<16x128xf32>
    %120 = arith.mulf %115, %119 : vector<16x128xf32>
    %121 = arith.truncf %120 : vector<16x128xf32> to vector<16x128xbf16>
    %122 = arith.index_cast %90 : i32 to index
    %c0_40 = arith.constant 0 : index
    %123 = vector.load %arg9[%122, %c0_40] : memref<128x128xbf16, #tpu.memory_space<vmem>>, vector<16x128xbf16>
    tpu.vector_store %arg9[%122, %c0_40], %121 {strides = array<i32>} : memref<128x128xbf16, #tpu.memory_space<vmem>>, vector<16x128xbf16>,
    %c3_i32 = arith.constant 3 : i32
    %c16_i32_41 = arith.constant 16 : i32
    %124 = arith.muli %c3_i32, %c16_i32_41 : i32
    %125 = tpu.assume_multiple %124, 16 : i32
    %126 = arith.index_cast %125 : i32 to index
    %c0_42 = arith.constant 0 : index
    %127 = vector.load %arg10[%126, %c0_42] : memref<128x512xf32, #tpu.memory_space<vmem>>, vector<16x512xf32>
    %128 = arith.truncf %120 : vector<16x128xf32> to vector<16x128xbf16>
    %cst_43 = arith.constant dense<0.000000e+00> : vector<16x512xf32>
    %129 = tpu.matmul %128, %14, %cst_43 {dimension_numbers = #tpu.dot_dimension_numbers<[1], [0], [0], [1], [0, 0, 1, 1], [], []>} : vector<16x128xbf16>, vector<128x512xbf16>, vector<16x512xf32> -> vector<16x512xf32>
    %130 = arith.addf %127, %129 : vector<16x512xf32>
    %131 = vector.extract_strided_slice %130 {offsets = [0, 0], sizes = [16, 128], strides = [1, 1]} : vector<16x512xf32> to vector<16x128xf32>
    %132 = arith.negf %131 : vector<16x128xf32>
    %133 = math.exp %132 : vector<16x128xf32>
    %cst_44 = arith.constant 1.000000e+00 : f32
    %134 = vector.broadcast %cst_44 : f32 to vector<16x128xf32>
    %135 = arith.addf %134, %133 : vector<16x128xf32>
    %136 = arith.divf %134, %135 : vector<16x128xf32>
    %137 = vector.extract_strided_slice %130 {offsets = [0, 128], sizes = [16, 128], strides = [1, 1]} : vector<16x512xf32> to vector<16x128xf32>
    %138 = arith.negf %137 : vector<16x128xf32>
    %139 = math.exp %138 : vector<16x128xf32>
    %cst_45 = arith.constant 1.000000e+00 : f32
    %140 = vector.broadcast %cst_45 : f32 to vector<16x128xf32>
    %141 = arith.addf %140, %139 : vector<16x128xf32>
    %142 = arith.divf %140, %141 : vector<16x128xf32>
    %143 = vector.extract_strided_slice %130 {offsets = [0, 256], sizes = [16, 128], strides = [1, 1]} : vector<16x512xf32> to vector<16x128xf32>
    %144 = math.tanh %143 : vector<16x128xf32>
    %145 = vector.extract_strided_slice %130 {offsets = [0, 384], sizes = [16, 128], strides = [1, 1]} : vector<16x512xf32> to vector<16x128xf32>
    %146 = arith.negf %145 : vector<16x128xf32>
    %147 = math.exp %146 : vector<16x128xf32>
    %cst_46 = arith.constant 1.000000e+00 : f32
    %148 = vector.broadcast %cst_46 : f32 to vector<16x128xf32>
    %149 = arith.addf %148, %147 : vector<16x128xf32>
    %150 = arith.divf %148, %149 : vector<16x128xf32>
    %151 = arith.mulf %142, %118 : vector<16x128xf32>
    %152 = arith.mulf %136, %144 : vector<16x128xf32>
    %153 = arith.addf %151, %152 : vector<16x128xf32>
    %154 = math.tanh %153 : vector<16x128xf32>
    %155 = arith.mulf %150, %154 : vector<16x128xf32>
    %156 = arith.truncf %155 : vector<16x128xf32> to vector<16x128xbf16>
    %157 = arith.index_cast %125 : i32 to index
    %c0_47 = arith.constant 0 : index
    %158 = vector.load %arg9[%157, %c0_47] : memref<128x128xbf16, #tpu.memory_space<vmem>>, vector<16x128xbf16>
    tpu.vector_store %arg9[%157, %c0_47], %156 {strides = array<i32>} : memref<128x128xbf16, #tpu.memory_space<vmem>>, vector<16x128xbf16>,
    %c4_i32 = arith.constant 4 : i32
    %c16_i32_48 = arith.constant 16 : i32
    %159 = arith.muli %c4_i32, %c16_i32_48 : i32
    %160 = tpu.assume_multiple %159, 16 : i32
    %161 = arith.index_cast %160 : i32 to index
    %c0_49 = arith.constant 0 : index
    %162 = vector.load %arg10[%161, %c0_49] : memref<128x512xf32, #tpu.memory_space<vmem>>, vector<16x512xf32>
    %163 = arith.truncf %155 : vector<16x128xf32> to vector<16x128xbf16>
    %cst_50 = arith.constant dense<0.000000e+00> : vector<16x512xf32>
    %164 = tpu.matmul %163, %14, %cst_50 {dimension_numbers = #tpu.dot_dimension_numbers<[1], [0], [0], [1], [0, 0, 1, 1], [], []>} : vector<16x128xbf16>, vector<128x512xbf16>, vector<16x512xf32> -> vector<16x512xf32>
    %165 = arith.addf %162, %164 : vector<16x512xf32>
    %166 = vector.extract_strided_slice %165 {offsets = [0, 0], sizes = [16, 128], strides = [1, 1]} : vector<16x512xf32> to vector<16x128xf32>
    %167 = arith.negf %166 : vector<16x128xf32>
    %168 = math.exp %167 : vector<16x128xf32>
    %cst_51 = arith.constant 1.000000e+00 : f32
    %169 = vector.broadcast %cst_51 : f32 to vector<16x128xf32>
    %170 = arith.addf %169, %168 : vector<16x128xf32>
    %171 = arith.divf %169, %170 : vector<16x128xf32>
    %172 = vector.extract_strided_slice %165 {offsets = [0, 128], sizes = [16, 128], strides = [1, 1]} : vector<16x512xf32> to vector<16x128xf32>
    %173 = arith.negf %172 : vector<16x128xf32>
    %174 = math.exp %173 : vector<16x128xf32>
    %cst_52 = arith.constant 1.000000e+00 : f32
    %175 = vector.broadcast %cst_52 : f32 to vector<16x128xf32>
    %176 = arith.addf %175, %174 : vector<16x128xf32>
    %177 = arith.divf %175, %176 : vector<16x128xf32>
    %178 = vector.extract_strided_slice %165 {offsets = [0, 256], sizes = [16, 128], strides = [1, 1]} : vector<16x512xf32> to vector<16x128xf32>
    %179 = math.tanh %178 : vector<16x128xf32>
    %180 = vector.extract_strided_slice %165 {offsets = [0, 384], sizes = [16, 128], strides = [1, 1]} : vector<16x512xf32> to vector<16x128xf32>
    %181 = arith.negf %180 : vector<16x128xf32>
    %182 = math.exp %181 : vector<16x128xf32>
    %cst_53 = arith.constant 1.000000e+00 : f32
    %183 = vector.broadcast %cst_53 : f32 to vector<16x128xf32>
    %184 = arith.addf %183, %182 : vector<16x128xf32>
    %185 = arith.divf %183, %184 : vector<16x128xf32>
    %186 = arith.mulf %177, %153 : vector<16x128xf32>
    %187 = arith.mulf %171, %179 : vector<16x128xf32>
    %188 = arith.addf %186, %187 : vector<16x128xf32>
    %189 = math.tanh %188 : vector<16x128xf32>
    %190 = arith.mulf %185, %189 : vector<16x128xf32>
    %191 = arith.truncf %190 : vector<16x128xf32> to vector<16x128xbf16>
    %192 = arith.index_cast %160 : i32 to index
    %c0_54 = arith.constant 0 : index
    %193 = vector.load %arg9[%192, %c0_54] : memref<128x128xbf16, #tpu.memory_space<vmem>>, vector<16x128xbf16>
    tpu.vector_store %arg9[%192, %c0_54], %191 {strides = array<i32>} : memref<128x128xbf16, #tpu.memory_space<vmem>>, vector<16x128xbf16>,
    %c5_i32 = arith.constant 5 : i32
    %c16_i32_55 = arith.constant 16 : i32
    %194 = arith.muli %c5_i32, %c16_i32_55 : i32
    %195 = tpu.assume_multiple %194, 16 : i32
    %196 = arith.index_cast %195 : i32 to index
    %c0_56 = arith.constant 0 : index
    %197 = vector.load %arg10[%196, %c0_56] : memref<128x512xf32, #tpu.memory_space<vmem>>, vector<16x512xf32>
    %198 = arith.truncf %190 : vector<16x128xf32> to vector<16x128xbf16>
    %cst_57 = arith.constant dense<0.000000e+00> : vector<16x512xf32>
    %199 = tpu.matmul %198, %14, %cst_57 {dimension_numbers = #tpu.dot_dimension_numbers<[1], [0], [0], [1], [0, 0, 1, 1], [], []>} : vector<16x128xbf16>, vector<128x512xbf16>, vector<16x512xf32> -> vector<16x512xf32>
    %200 = arith.addf %197, %199 : vector<16x512xf32>
    %201 = vector.extract_strided_slice %200 {offsets = [0, 0], sizes = [16, 128], strides = [1, 1]} : vector<16x512xf32> to vector<16x128xf32>
    %202 = arith.negf %201 : vector<16x128xf32>
    %203 = math.exp %202 : vector<16x128xf32>
    %cst_58 = arith.constant 1.000000e+00 : f32
    %204 = vector.broadcast %cst_58 : f32 to vector<16x128xf32>
    %205 = arith.addf %204, %203 : vector<16x128xf32>
    %206 = arith.divf %204, %205 : vector<16x128xf32>
    %207 = vector.extract_strided_slice %200 {offsets = [0, 128], sizes = [16, 128], strides = [1, 1]} : vector<16x512xf32> to vector<16x128xf32>
    %208 = arith.negf %207 : vector<16x128xf32>
    %209 = math.exp %208 : vector<16x128xf32>
    %cst_59 = arith.constant 1.000000e+00 : f32
    %210 = vector.broadcast %cst_59 : f32 to vector<16x128xf32>
    %211 = arith.addf %210, %209 : vector<16x128xf32>
    %212 = arith.divf %210, %211 : vector<16x128xf32>
    %213 = vector.extract_strided_slice %200 {offsets = [0, 256], sizes = [16, 128], strides = [1, 1]} : vector<16x512xf32> to vector<16x128xf32>
    %214 = math.tanh %213 : vector<16x128xf32>
    %215 = vector.extract_strided_slice %200 {offsets = [0, 384], sizes = [16, 128], strides = [1, 1]} : vector<16x512xf32> to vector<16x128xf32>
    %216 = arith.negf %215 : vector<16x128xf32>
    %217 = math.exp %216 : vector<16x128xf32>
    %cst_60 = arith.constant 1.000000e+00 : f32
    %218 = vector.broadcast %cst_60 : f32 to vector<16x128xf32>
    %219 = arith.addf %218, %217 : vector<16x128xf32>
    %220 = arith.divf %218, %219 : vector<16x128xf32>
    %221 = arith.mulf %212, %188 : vector<16x128xf32>
    %222 = arith.mulf %206, %214 : vector<16x128xf32>
    %223 = arith.addf %221, %222 : vector<16x128xf32>
    %224 = math.tanh %223 : vector<16x128xf32>
    %225 = arith.mulf %220, %224 : vector<16x128xf32>
    %226 = arith.truncf %225 : vector<16x128xf32> to vector<16x128xbf16>
    %227 = arith.index_cast %195 : i32 to index
    %c0_61 = arith.constant 0 : index
    %228 = vector.load %arg9[%227, %c0_61] : memref<128x128xbf16, #tpu.memory_space<vmem>>, vector<16x128xbf16>
    tpu.vector_store %arg9[%227, %c0_61], %226 {strides = array<i32>} : memref<128x128xbf16, #tpu.memory_space<vmem>>, vector<16x128xbf16>,
    %c6_i32 = arith.constant 6 : i32
    %c16_i32_62 = arith.constant 16 : i32
    %229 = arith.muli %c6_i32, %c16_i32_62 : i32
    %230 = tpu.assume_multiple %229, 16 : i32
    %231 = arith.index_cast %230 : i32 to index
    %c0_63 = arith.constant 0 : index
    %232 = vector.load %arg10[%231, %c0_63] : memref<128x512xf32, #tpu.memory_space<vmem>>, vector<16x512xf32>
    %233 = arith.truncf %225 : vector<16x128xf32> to vector<16x128xbf16>
    %cst_64 = arith.constant dense<0.000000e+00> : vector<16x512xf32>
    %234 = tpu.matmul %233, %14, %cst_64 {dimension_numbers = #tpu.dot_dimension_numbers<[1], [0], [0], [1], [0, 0, 1, 1], [], []>} : vector<16x128xbf16>, vector<128x512xbf16>, vector<16x512xf32> -> vector<16x512xf32>
    %235 = arith.addf %232, %234 : vector<16x512xf32>
    %236 = vector.extract_strided_slice %235 {offsets = [0, 0], sizes = [16, 128], strides = [1, 1]} : vector<16x512xf32> to vector<16x128xf32>
    %237 = arith.negf %236 : vector<16x128xf32>
    %238 = math.exp %237 : vector<16x128xf32>
    %cst_65 = arith.constant 1.000000e+00 : f32
    %239 = vector.broadcast %cst_65 : f32 to vector<16x128xf32>
    %240 = arith.addf %239, %238 : vector<16x128xf32>
    %241 = arith.divf %239, %240 : vector<16x128xf32>
    %242 = vector.extract_strided_slice %235 {offsets = [0, 128], sizes = [16, 128], strides = [1, 1]} : vector<16x512xf32> to vector<16x128xf32>
    %243 = arith.negf %242 : vector<16x128xf32>
    %244 = math.exp %243 : vector<16x128xf32>
    %cst_66 = arith.constant 1.000000e+00 : f32
    %245 = vector.broadcast %cst_66 : f32 to vector<16x128xf32>
    %246 = arith.addf %245, %244 : vector<16x128xf32>
    %247 = arith.divf %245, %246 : vector<16x128xf32>
    %248 = vector.extract_strided_slice %235 {offsets = [0, 256], sizes = [16, 128], strides = [1, 1]} : vector<16x512xf32> to vector<16x128xf32>
    %249 = math.tanh %248 : vector<16x128xf32>
    %250 = vector.extract_strided_slice %235 {offsets = [0, 384], sizes = [16, 128], strides = [1, 1]} : vector<16x512xf32> to vector<16x128xf32>
    %251 = arith.negf %250 : vector<16x128xf32>
    %252 = math.exp %251 : vector<16x128xf32>
    %cst_67 = arith.constant 1.000000e+00 : f32
    %253 = vector.broadcast %cst_67 : f32 to vector<16x128xf32>
    %254 = arith.addf %253, %252 : vector<16x128xf32>
    %255 = arith.divf %253, %254 : vector<16x128xf32>
    %256 = arith.mulf %247, %223 : vector<16x128xf32>
    %257 = arith.mulf %241, %249 : vector<16x128xf32>
    %258 = arith.addf %256, %257 : vector<16x128xf32>
    %259 = math.tanh %258 : vector<16x128xf32>
    %260 = arith.mulf %255, %259 : vector<16x128xf32>
    %261 = arith.truncf %260 : vector<16x128xf32> to vector<16x128xbf16>
    %262 = arith.index_cast %230 : i32 to index
    %c0_68 = arith.constant 0 : index
    %263 = vector.load %arg9[%262, %c0_68] : memref<128x128xbf16, #tpu.memory_space<vmem>>, vector<16x128xbf16>
    tpu.vector_store %arg9[%262, %c0_68], %261 {strides = array<i32>} : memref<128x128xbf16, #tpu.memory_space<vmem>>, vector<16x128xbf16>,
    %c7_i32 = arith.constant 7 : i32
    %c16_i32_69 = arith.constant 16 : i32
    %264 = arith.muli %c7_i32, %c16_i32_69 : i32
    %265 = tpu.assume_multiple %264, 16 : i32
    %266 = arith.index_cast %265 : i32 to index
    %c0_70 = arith.constant 0 : index
    %267 = vector.load %arg10[%266, %c0_70] : memref<128x512xf32, #tpu.memory_space<vmem>>, vector<16x512xf32>
    %268 = arith.truncf %260 : vector<16x128xf32> to vector<16x128xbf16>
    %cst_71 = arith.constant dense<0.000000e+00> : vector<16x512xf32>
    %269 = tpu.matmul %268, %14, %cst_71 {dimension_numbers = #tpu.dot_dimension_numbers<[1], [0], [0], [1], [0, 0, 1, 1], [], []>} : vector<16x128xbf16>, vector<128x512xbf16>, vector<16x512xf32> -> vector<16x512xf32>
    %270 = arith.addf %267, %269 : vector<16x512xf32>
    %271 = vector.extract_strided_slice %270 {offsets = [0, 0], sizes = [16, 128], strides = [1, 1]} : vector<16x512xf32> to vector<16x128xf32>
    %272 = arith.negf %271 : vector<16x128xf32>
    %273 = math.exp %272 : vector<16x128xf32>
    %cst_72 = arith.constant 1.000000e+00 : f32
    %274 = vector.broadcast %cst_72 : f32 to vector<16x128xf32>
    %275 = arith.addf %274, %273 : vector<16x128xf32>
    %276 = arith.divf %274, %275 : vector<16x128xf32>
    %277 = vector.extract_strided_slice %270 {offsets = [0, 128], sizes = [16, 128], strides = [1, 1]} : vector<16x512xf32> to vector<16x128xf32>
    %278 = arith.negf %277 : vector<16x128xf32>
    %279 = math.exp %278 : vector<16x128xf32>
    %cst_73 = arith.constant 1.000000e+00 : f32
    %280 = vector.broadcast %cst_73 : f32 to vector<16x128xf32>
    %281 = arith.addf %280, %279 : vector<16x128xf32>
    %282 = arith.divf %280, %281 : vector<16x128xf32>
    %283 = vector.extract_strided_slice %270 {offsets = [0, 256], sizes = [16, 128], strides = [1, 1]} : vector<16x512xf32> to vector<16x128xf32>
    %284 = math.tanh %283 : vector<16x128xf32>
    %285 = vector.extract_strided_slice %270 {offsets = [0, 384], sizes = [16, 128], strides = [1, 1]} : vector<16x512xf32> to vector<16x128xf32>
    %286 = arith.negf %285 : vector<16x128xf32>
    %287 = math.exp %286 : vector<16x128xf32>
    %cst_74 = arith.constant 1.000000e+00 : f32
    %288 = vector.broadcast %cst_74 : f32 to vector<16x128xf32>
    %289 = arith.addf %288, %287 : vector<16x128xf32>
    %290 = arith.divf %288, %289 : vector<16x128xf32>
    %291 = arith.mulf %282, %258 : vector<16x128xf32>
    %292 = arith.mulf %276, %284 : vector<16x128xf32>
    %293 = arith.addf %291, %292 : vector<16x128xf32>
    %294 = math.tanh %293 : vector<16x128xf32>
    %295 = arith.mulf %290, %294 : vector<16x128xf32>
    %296 = arith.truncf %295 : vector<16x128xf32> to vector<16x128xbf16>
    %297 = arith.index_cast %265 : i32 to index
    %c0_75 = arith.constant 0 : index
    %298 = vector.load %arg9[%297, %c0_75] : memref<128x128xbf16, #tpu.memory_space<vmem>>, vector<16x128xbf16>
    tpu.vector_store %arg9[%297, %c0_75], %296 {strides = array<i32>} : memref<128x128xbf16, #tpu.memory_space<vmem>>, vector<16x128xbf16>,
    %c8_i32 = arith.constant 8 : i32
    %c0_76 = arith.constant 0 : index
    %c0_77 = arith.constant 0 : index
    %c0_78 = arith.constant 0 : index
    %299 = vector.load %arg7[%c0_76, %c0_77, %c0_78] : memref<2x16x128xf32, #tpu.memory_space<vmem>>, vector<1x16x128xf32>
    %300 = vector.shape_cast %299 : vector<1x16x128xf32> to vector<16x128xf32>
    %301 = vector.shape_cast %295 : vector<16x128xf32> to vector<1x16x128xf32>
    tpu.vector_store %arg7[%c0_76, %c0_77, %c0_78], %301 {strides = array<i32>} : memref<2x16x128xf32, #tpu.memory_space<vmem>>, vector<1x16x128xf32>,
    %c0_79 = arith.constant 0 : index
    %c0_80 = arith.constant 0 : index
    %c0_81 = arith.constant 0 : index
    %302 = vector.load %arg8[%c0_79, %c0_80, %c0_81] : memref<2x16x128xf32, #tpu.memory_space<vmem>>, vector<1x16x128xf32>
    %303 = vector.shape_cast %302 : vector<1x16x128xf32> to vector<16x128xf32>
    %304 = vector.shape_cast %293 : vector<16x128xf32> to vector<1x16x128xf32>
    tpu.vector_store %arg8[%c0_79, %c0_80, %c0_81], %304 {strides = array<i32>} : memref<2x16x128xf32, #tpu.memory_space<vmem>>, vector<1x16x128xf32>,
    %c1 = arith.constant 1 : index
    %c0_82 = arith.constant 0 : index
    %c0_83 = arith.constant 0 : index
    %305 = vector.load %arg3[%c1, %c0_82, %c0_83] : memref<2x128x512xbf16, #tpu.memory_space<vmem>>, vector<1x128x512xbf16>
    %306 = vector.shape_cast %305 : vector<1x128x512xbf16> to vector<128x512xbf16>
    %c0_84 = arith.constant 0 : index
    %c0_85 = arith.constant 0 : index
    %307 = vector.load %arg9[%c0_84, %c0_85] : memref<128x128xbf16, #tpu.memory_space<vmem>>, vector<128x128xbf16>
    %cst_86 = arith.constant dense<0.000000e+00> : vector<128x512xf32>
    %308 = tpu.matmul %307, %306, %cst_86 {dimension_numbers = #tpu.dot_dimension_numbers<[1], [0], [0], [1], [0, 0, 1, 1], [], []>} : vector<128x128xbf16>, vector<128x512xbf16>, vector<128x512xf32> -> vector<128x512xf32>
    %c1_87 = arith.constant 1 : index
    %c0_88 = arith.constant 0 : index
    %c0_89 = arith.constant 0 : index
    %309 = vector.load %arg5[%c1_87, %c0_88, %c0_89] : memref<2x1x512xf32, #tpu.memory_space<vmem>>, vector<1x1x512xf32>
    %310 = vector.shape_cast %309 : vector<1x1x512xf32> to vector<1x512xf32>
    %311 = vector.broadcast %310 : vector<1x512xf32> to vector<128x512xf32>
    %312 = arith.addf %308, %311 : vector<128x512xf32>
    %c0_90 = arith.constant 0 : index
    %c0_91 = arith.constant 0 : index
    %313 = vector.load %arg10[%c0_90, %c0_91] : memref<128x512xf32, #tpu.memory_space<vmem>>, vector<128x512xf32>
    tpu.vector_store %arg10[%c0_90, %c0_91], %312 {strides = array<i32>} : memref<128x512xf32, #tpu.memory_space<vmem>>, vector<128x512xf32>,
    %c1_92 = arith.constant 1 : index
    %c0_93 = arith.constant 0 : index
    %c0_94 = arith.constant 0 : index
    %314 = vector.load %arg4[%c1_92, %c0_93, %c0_94] : memref<2x128x512xbf16, #tpu.memory_space<vmem>>, vector<1x128x512xbf16>
    %315 = vector.shape_cast %314 : vector<1x128x512xbf16> to vector<128x512xbf16>
    %c1_95 = arith.constant 1 : index
    %c0_96 = arith.constant 0 : index
    %c0_97 = arith.constant 0 : index
    %316 = vector.load %arg7[%c1_95, %c0_96, %c0_97] : memref<2x16x128xf32, #tpu.memory_space<vmem>>, vector<1x16x128xf32>
    %317 = vector.shape_cast %316 : vector<1x16x128xf32> to vector<16x128xf32>
    %c1_98 = arith.constant 1 : index
    %c0_99 = arith.constant 0 : index
    %c0_100 = arith.constant 0 : index
    %318 = vector.load %arg8[%c1_98, %c0_99, %c0_100] : memref<2x16x128xf32, #tpu.memory_space<vmem>>, vector<1x16x128xf32>
    %319 = vector.shape_cast %318 : vector<1x16x128xf32> to vector<16x128xf32>
    %c0_i32_101 = arith.constant 0 : i32
    %c16_i32_102 = arith.constant 16 : i32
    %320 = arith.muli %c0_i32_101, %c16_i32_102 : i32
    %321 = tpu.assume_multiple %320, 16 : i32
    %322 = arith.index_cast %321 : i32 to index
    %c0_103 = arith.constant 0 : index
    %323 = vector.load %arg10[%322, %c0_103] : memref<128x512xf32, #tpu.memory_space<vmem>>, vector<16x512xf32>
    %324 = arith.truncf %317 : vector<16x128xf32> to vector<16x128xbf16>
    %cst_104 = arith.constant dense<0.000000e+00> : vector<16x512xf32>
    %325 = tpu.matmul %324, %315, %cst_104 {dimension_numbers = #tpu.dot_dimension_numbers<[1], [0], [0], [1], [0, 0, 1, 1], [], []>} : vector<16x128xbf16>, vector<128x512xbf16>, vector<16x512xf32> -> vector<16x512xf32>
    %326 = arith.addf %323, %325 : vector<16x512xf32>
    %327 = vector.extract_strided_slice %326 {offsets = [0, 0], sizes = [16, 128], strides = [1, 1]} : vector<16x512xf32> to vector<16x128xf32>
    %328 = arith.negf %327 : vector<16x128xf32>
    %329 = math.exp %328 : vector<16x128xf32>
    %cst_105 = arith.constant 1.000000e+00 : f32
    %330 = vector.broadcast %cst_105 : f32 to vector<16x128xf32>
    %331 = arith.addf %330, %329 : vector<16x128xf32>
    %332 = arith.divf %330, %331 : vector<16x128xf32>
    %333 = vector.extract_strided_slice %326 {offsets = [0, 128], sizes = [16, 128], strides = [1, 1]} : vector<16x512xf32> to vector<16x128xf32>
    %334 = arith.negf %333 : vector<16x128xf32>
    %335 = math.exp %334 : vector<16x128xf32>
    %cst_106 = arith.constant 1.000000e+00 : f32
    %336 = vector.broadcast %cst_106 : f32 to vector<16x128xf32>
    %337 = arith.addf %336, %335 : vector<16x128xf32>
    %338 = arith.divf %336, %337 : vector<16x128xf32>
    %339 = vector.extract_strided_slice %326 {offsets = [0, 256], sizes = [16, 128], strides = [1, 1]} : vector<16x512xf32> to vector<16x128xf32>
    %340 = math.tanh %339 : vector<16x128xf32>
    %341 = vector.extract_strided_slice %326 {offsets = [0, 384], sizes = [16, 128], strides = [1, 1]} : vector<16x512xf32> to vector<16x128xf32>
    %342 = arith.negf %341 : vector<16x128xf32>
    %343 = math.exp %342 : vector<16x128xf32>
    %cst_107 = arith.constant 1.000000e+00 : f32
    %344 = vector.broadcast %cst_107 : f32 to vector<16x128xf32>
    %345 = arith.addf %344, %343 : vector<16x128xf32>
    %346 = arith.divf %344, %345 : vector<16x128xf32>
    %347 = arith.mulf %338, %319 : vector<16x128xf32>
    %348 = arith.mulf %332, %340 : vector<16x128xf32>
    %349 = arith.addf %347, %348 : vector<16x128xf32>
    %350 = math.tanh %349 : vector<16x128xf32>
    %351 = arith.mulf %346, %350 : vector<16x128xf32>
    %c1_i32_108 = arith.constant 1 : i32
    %c16_i32_109 = arith.constant 16 : i32
    %352 = arith.muli %c1_i32_108, %c16_i32_109 : i32
    %353 = tpu.assume_multiple %352, 16 : i32
    %354 = arith.index_cast %353 : i32 to index
    %c0_110 = arith.constant 0 : index
    %355 = vector.load %arg10[%354, %c0_110] : memref<128x512xf32, #tpu.memory_space<vmem>>, vector<16x512xf32>
    %356 = arith.truncf %351 : vector<16x128xf32> to vector<16x128xbf16>
    %cst_111 = arith.constant dense<0.000000e+00> : vector<16x512xf32>
    %357 = tpu.matmul %356, %315, %cst_111 {dimension_numbers = #tpu.dot_dimension_numbers<[1], [0], [0], [1], [0, 0, 1, 1], [], []>} : vector<16x128xbf16>, vector<128x512xbf16>, vector<16x512xf32> -> vector<16x512xf32>
    %358 = arith.addf %355, %357 : vector<16x512xf32>
    %359 = vector.extract_strided_slice %358 {offsets = [0, 0], sizes = [16, 128], strides = [1, 1]} : vector<16x512xf32> to vector<16x128xf32>
    %360 = arith.negf %359 : vector<16x128xf32>
    %361 = math.exp %360 : vector<16x128xf32>
    %cst_112 = arith.constant 1.000000e+00 : f32
    %362 = vector.broadcast %cst_112 : f32 to vector<16x128xf32>
    %363 = arith.addf %362, %361 : vector<16x128xf32>
    %364 = arith.divf %362, %363 : vector<16x128xf32>
    %365 = vector.extract_strided_slice %358 {offsets = [0, 128], sizes = [16, 128], strides = [1, 1]} : vector<16x512xf32> to vector<16x128xf32>
    %366 = arith.negf %365 : vector<16x128xf32>
    %367 = math.exp %366 : vector<16x128xf32>
    %cst_113 = arith.constant 1.000000e+00 : f32
    %368 = vector.broadcast %cst_113 : f32 to vector<16x128xf32>
    %369 = arith.addf %368, %367 : vector<16x128xf32>
    %370 = arith.divf %368, %369 : vector<16x128xf32>
    %371 = vector.extract_strided_slice %358 {offsets = [0, 256], sizes = [16, 128], strides = [1, 1]} : vector<16x512xf32> to vector<16x128xf32>
    %372 = math.tanh %371 : vector<16x128xf32>
    %373 = vector.extract_strided_slice %358 {offsets = [0, 384], sizes = [16, 128], strides = [1, 1]} : vector<16x512xf32> to vector<16x128xf32>
    %374 = arith.negf %373 : vector<16x128xf32>
    %375 = math.exp %374 : vector<16x128xf32>
    %cst_114 = arith.constant 1.000000e+00 : f32
    %376 = vector.broadcast %cst_114 : f32 to vector<16x128xf32>
    %377 = arith.addf %376, %375 : vector<16x128xf32>
    %378 = arith.divf %376, %377 : vector<16x128xf32>
    %379 = arith.mulf %370, %349 : vector<16x128xf32>
    %380 = arith.mulf %364, %372 : vector<16x128xf32>
    %381 = arith.addf %379, %380 : vector<16x128xf32>
    %382 = math.tanh %381 : vector<16x128xf32>
    %383 = arith.mulf %378, %382 : vector<16x128xf32>
    %c2_i32_115 = arith.constant 2 : i32
    %c16_i32_116 = arith.constant 16 : i32
    %384 = arith.muli %c2_i32_115, %c16_i32_116 : i32
    %385 = tpu.assume_multiple %384, 16 : i32
    %386 = arith.index_cast %385 : i32 to index
    %c0_117 = arith.constant 0 : index
    %387 = vector.load %arg10[%386, %c0_117] : memref<128x512xf32, #tpu.memory_space<vmem>>, vector<16x512xf32>
    %388 = arith.truncf %383 : vector<16x128xf32> to vector<16x128xbf16>
    %cst_118 = arith.constant dense<0.000000e+00> : vector<16x512xf32>
    %389 = tpu.matmul %388, %315, %cst_118 {dimension_numbers = #tpu.dot_dimension_numbers<[1], [0], [0], [1], [0, 0, 1, 1], [], []>} : vector<16x128xbf16>, vector<128x512xbf16>, vector<16x512xf32> -> vector<16x512xf32>
    %390 = arith.addf %387, %389 : vector<16x512xf32>
    %391 = vector.extract_strided_slice %390 {offsets = [0, 0], sizes = [16, 128], strides = [1, 1]} : vector<16x512xf32> to vector<16x128xf32>
    %392 = arith.negf %391 : vector<16x128xf32>
    %393 = math.exp %392 : vector<16x128xf32>
    %cst_119 = arith.constant 1.000000e+00 : f32
    %394 = vector.broadcast %cst_119 : f32 to vector<16x128xf32>
    %395 = arith.addf %394, %393 : vector<16x128xf32>
    %396 = arith.divf %394, %395 : vector<16x128xf32>
    %397 = vector.extract_strided_slice %390 {offsets = [0, 128], sizes = [16, 128], strides = [1, 1]} : vector<16x512xf32> to vector<16x128xf32>
    %398 = arith.negf %397 : vector<16x128xf32>
    %399 = math.exp %398 : vector<16x128xf32>
    %cst_120 = arith.constant 1.000000e+00 : f32
    %400 = vector.broadcast %cst_120 : f32 to vector<16x128xf32>
    %401 = arith.addf %400, %399 : vector<16x128xf32>
    %402 = arith.divf %400, %401 : vector<16x128xf32>
    %403 = vector.extract_strided_slice %390 {offsets = [0, 256], sizes = [16, 128], strides = [1, 1]} : vector<16x512xf32> to vector<16x128xf32>
    %404 = math.tanh %403 : vector<16x128xf32>
    %405 = vector.extract_strided_slice %390 {offsets = [0, 384], sizes = [16, 128], strides = [1, 1]} : vector<16x512xf32> to vector<16x128xf32>
    %406 = arith.negf %405 : vector<16x128xf32>
    %407 = math.exp %406 : vector<16x128xf32>
    %cst_121 = arith.constant 1.000000e+00 : f32
    %408 = vector.broadcast %cst_121 : f32 to vector<16x128xf32>
    %409 = arith.addf %408, %407 : vector<16x128xf32>
    %410 = arith.divf %408, %409 : vector<16x128xf32>
    %411 = arith.mulf %402, %381 : vector<16x128xf32>
    %412 = arith.mulf %396, %404 : vector<16x128xf32>
    %413 = arith.addf %411, %412 : vector<16x128xf32>
    %414 = math.tanh %413 : vector<16x128xf32>
    %415 = arith.mulf %410, %414 : vector<16x128xf32>
    %c3_i32_122 = arith.constant 3 : i32
    %c16_i32_123 = arith.constant 16 : i32
    %416 = arith.muli %c3_i32_122, %c16_i32_123 : i32
    %417 = tpu.assume_multiple %416, 16 : i32
    %418 = arith.index_cast %417 : i32 to index
    %c0_124 = arith.constant 0 : index
    %419 = vector.load %arg10[%418, %c0_124] : memref<128x512xf32, #tpu.memory_space<vmem>>, vector<16x512xf32>
    %420 = arith.truncf %415 : vector<16x128xf32> to vector<16x128xbf16>
    %cst_125 = arith.constant dense<0.000000e+00> : vector<16x512xf32>
    %421 = tpu.matmul %420, %315, %cst_125 {dimension_numbers = #tpu.dot_dimension_numbers<[1], [0], [0], [1], [0, 0, 1, 1], [], []>} : vector<16x128xbf16>, vector<128x512xbf16>, vector<16x512xf32> -> vector<16x512xf32>
    %422 = arith.addf %419, %421 : vector<16x512xf32>
    %423 = vector.extract_strided_slice %422 {offsets = [0, 0], sizes = [16, 128], strides = [1, 1]} : vector<16x512xf32> to vector<16x128xf32>
    %424 = arith.negf %423 : vector<16x128xf32>
    %425 = math.exp %424 : vector<16x128xf32>
    %cst_126 = arith.constant 1.000000e+00 : f32
    %426 = vector.broadcast %cst_126 : f32 to vector<16x128xf32>
    %427 = arith.addf %426, %425 : vector<16x128xf32>
    %428 = arith.divf %426, %427 : vector<16x128xf32>
    %429 = vector.extract_strided_slice %422 {offsets = [0, 128], sizes = [16, 128], strides = [1, 1]} : vector<16x512xf32> to vector<16x128xf32>
    %430 = arith.negf %429 : vector<16x128xf32>
    %431 = math.exp %430 : vector<16x128xf32>
    %cst_127 = arith.constant 1.000000e+00 : f32
    %432 = vector.broadcast %cst_127 : f32 to vector<16x128xf32>
    %433 = arith.addf %432, %431 : vector<16x128xf32>
    %434 = arith.divf %432, %433 : vector<16x128xf32>
    %435 = vector.extract_strided_slice %422 {offsets = [0, 256], sizes = [16, 128], strides = [1, 1]} : vector<16x512xf32> to vector<16x128xf32>
    %436 = math.tanh %435 : vector<16x128xf32>
    %437 = vector.extract_strided_slice %422 {offsets = [0, 384], sizes = [16, 128], strides = [1, 1]} : vector<16x512xf32> to vector<16x128xf32>
    %438 = arith.negf %437 : vector<16x128xf32>
    %439 = math.exp %438 : vector<16x128xf32>
    %cst_128 = arith.constant 1.000000e+00 : f32
    %440 = vector.broadcast %cst_128 : f32 to vector<16x128xf32>
    %441 = arith.addf %440, %439 : vector<16x128xf32>
    %442 = arith.divf %440, %441 : vector<16x128xf32>
    %443 = arith.mulf %434, %413 : vector<16x128xf32>
    %444 = arith.mulf %428, %436 : vector<16x128xf32>
    %445 = arith.addf %443, %444 : vector<16x128xf32>
    %446 = math.tanh %445 : vector<16x128xf32>
    %447 = arith.mulf %442, %446 : vector<16x128xf32>
    %c4_i32_129 = arith.constant 4 : i32
    %c16_i32_130 = arith.constant 16 : i32
    %448 = arith.muli %c4_i32_129, %c16_i32_130 : i32
    %449 = tpu.assume_multiple %448, 16 : i32
    %450 = arith.index_cast %449 : i32 to index
    %c0_131 = arith.constant 0 : index
    %451 = vector.load %arg10[%450, %c0_131] : memref<128x512xf32, #tpu.memory_space<vmem>>, vector<16x512xf32>
    %452 = arith.truncf %447 : vector<16x128xf32> to vector<16x128xbf16>
    %cst_132 = arith.constant dense<0.000000e+00> : vector<16x512xf32>
    %453 = tpu.matmul %452, %315, %cst_132 {dimension_numbers = #tpu.dot_dimension_numbers<[1], [0], [0], [1], [0, 0, 1, 1], [], []>} : vector<16x128xbf16>, vector<128x512xbf16>, vector<16x512xf32> -> vector<16x512xf32>
    %454 = arith.addf %451, %453 : vector<16x512xf32>
    %455 = vector.extract_strided_slice %454 {offsets = [0, 0], sizes = [16, 128], strides = [1, 1]} : vector<16x512xf32> to vector<16x128xf32>
    %456 = arith.negf %455 : vector<16x128xf32>
    %457 = math.exp %456 : vector<16x128xf32>
    %cst_133 = arith.constant 1.000000e+00 : f32
    %458 = vector.broadcast %cst_133 : f32 to vector<16x128xf32>
    %459 = arith.addf %458, %457 : vector<16x128xf32>
    %460 = arith.divf %458, %459 : vector<16x128xf32>
    %461 = vector.extract_strided_slice %454 {offsets = [0, 128], sizes = [16, 128], strides = [1, 1]} : vector<16x512xf32> to vector<16x128xf32>
    %462 = arith.negf %461 : vector<16x128xf32>
    %463 = math.exp %462 : vector<16x128xf32>
    %cst_134 = arith.constant 1.000000e+00 : f32
    %464 = vector.broadcast %cst_134 : f32 to vector<16x128xf32>
    %465 = arith.addf %464, %463 : vector<16x128xf32>
    %466 = arith.divf %464, %465 : vector<16x128xf32>
    %467 = vector.extract_strided_slice %454 {offsets = [0, 256], sizes = [16, 128], strides = [1, 1]} : vector<16x512xf32> to vector<16x128xf32>
    %468 = math.tanh %467 : vector<16x128xf32>
    %469 = vector.extract_strided_slice %454 {offsets = [0, 384], sizes = [16, 128], strides = [1, 1]} : vector<16x512xf32> to vector<16x128xf32>
    %470 = arith.negf %469 : vector<16x128xf32>
    %471 = math.exp %470 : vector<16x128xf32>
    %cst_135 = arith.constant 1.000000e+00 : f32
    %472 = vector.broadcast %cst_135 : f32 to vector<16x128xf32>
    %473 = arith.addf %472, %471 : vector<16x128xf32>
    %474 = arith.divf %472, %473 : vector<16x128xf32>
    %475 = arith.mulf %466, %445 : vector<16x128xf32>
    %476 = arith.mulf %460, %468 : vector<16x128xf32>
    %477 = arith.addf %475, %476 : vector<16x128xf32>
    %478 = math.tanh %477 : vector<16x128xf32>
    %479 = arith.mulf %474, %478 : vector<16x128xf32>
    %c5_i32_136 = arith.constant 5 : i32
    %c16_i32_137 = arith.constant 16 : i32
    %480 = arith.muli %c5_i32_136, %c16_i32_137 : i32
    %481 = tpu.assume_multiple %480, 16 : i32
    %482 = arith.index_cast %481 : i32 to index
    %c0_138 = arith.constant 0 : index
    %483 = vector.load %arg10[%482, %c0_138] : memref<128x512xf32, #tpu.memory_space<vmem>>, vector<16x512xf32>
    %484 = arith.truncf %479 : vector<16x128xf32> to vector<16x128xbf16>
    %cst_139 = arith.constant dense<0.000000e+00> : vector<16x512xf32>
    %485 = tpu.matmul %484, %315, %cst_139 {dimension_numbers = #tpu.dot_dimension_numbers<[1], [0], [0], [1], [0, 0, 1, 1], [], []>} : vector<16x128xbf16>, vector<128x512xbf16>, vector<16x512xf32> -> vector<16x512xf32>
    %486 = arith.addf %483, %485 : vector<16x512xf32>
    %487 = vector.extract_strided_slice %486 {offsets = [0, 0], sizes = [16, 128], strides = [1, 1]} : vector<16x512xf32> to vector<16x128xf32>
    %488 = arith.negf %487 : vector<16x128xf32>
    %489 = math.exp %488 : vector<16x128xf32>
    %cst_140 = arith.constant 1.000000e+00 : f32
    %490 = vector.broadcast %cst_140 : f32 to vector<16x128xf32>
    %491 = arith.addf %490, %489 : vector<16x128xf32>
    %492 = arith.divf %490, %491 : vector<16x128xf32>
    %493 = vector.extract_strided_slice %486 {offsets = [0, 128], sizes = [16, 128], strides = [1, 1]} : vector<16x512xf32> to vector<16x128xf32>
    %494 = arith.negf %493 : vector<16x128xf32>
    %495 = math.exp %494 : vector<16x128xf32>
    %cst_141 = arith.constant 1.000000e+00 : f32
    %496 = vector.broadcast %cst_141 : f32 to vector<16x128xf32>
    %497 = arith.addf %496, %495 : vector<16x128xf32>
    %498 = arith.divf %496, %497 : vector<16x128xf32>
    %499 = vector.extract_strided_slice %486 {offsets = [0, 256], sizes = [16, 128], strides = [1, 1]} : vector<16x512xf32> to vector<16x128xf32>
    %500 = math.tanh %499 : vector<16x128xf32>
    %501 = vector.extract_strided_slice %486 {offsets = [0, 384], sizes = [16, 128], strides = [1, 1]} : vector<16x512xf32> to vector<16x128xf32>
    %502 = arith.negf %501 : vector<16x128xf32>
    %503 = math.exp %502 : vector<16x128xf32>
    %cst_142 = arith.constant 1.000000e+00 : f32
    %504 = vector.broadcast %cst_142 : f32 to vector<16x128xf32>
    %505 = arith.addf %504, %503 : vector<16x128xf32>
    %506 = arith.divf %504, %505 : vector<16x128xf32>
    %507 = arith.mulf %498, %477 : vector<16x128xf32>
    %508 = arith.mulf %492, %500 : vector<16x128xf32>
    %509 = arith.addf %507, %508 : vector<16x128xf32>
    %510 = math.tanh %509 : vector<16x128xf32>
    %511 = arith.mulf %506, %510 : vector<16x128xf32>
    %c6_i32_143 = arith.constant 6 : i32
    %c16_i32_144 = arith.constant 16 : i32
    %512 = arith.muli %c6_i32_143, %c16_i32_144 : i32
    %513 = tpu.assume_multiple %512, 16 : i32
    %514 = arith.index_cast %513 : i32 to index
    %c0_145 = arith.constant 0 : index
    %515 = vector.load %arg10[%514, %c0_145] : memref<128x512xf32, #tpu.memory_space<vmem>>, vector<16x512xf32>
    %516 = arith.truncf %511 : vector<16x128xf32> to vector<16x128xbf16>
    %cst_146 = arith.constant dense<0.000000e+00> : vector<16x512xf32>
    %517 = tpu.matmul %516, %315, %cst_146 {dimension_numbers = #tpu.dot_dimension_numbers<[1], [0], [0], [1], [0, 0, 1, 1], [], []>} : vector<16x128xbf16>, vector<128x512xbf16>, vector<16x512xf32> -> vector<16x512xf32>
    %518 = arith.addf %515, %517 : vector<16x512xf32>
    %519 = vector.extract_strided_slice %518 {offsets = [0, 0], sizes = [16, 128], strides = [1, 1]} : vector<16x512xf32> to vector<16x128xf32>
    %520 = arith.negf %519 : vector<16x128xf32>
    %521 = math.exp %520 : vector<16x128xf32>
    %cst_147 = arith.constant 1.000000e+00 : f32
    %522 = vector.broadcast %cst_147 : f32 to vector<16x128xf32>
    %523 = arith.addf %522, %521 : vector<16x128xf32>
    %524 = arith.divf %522, %523 : vector<16x128xf32>
    %525 = vector.extract_strided_slice %518 {offsets = [0, 128], sizes = [16, 128], strides = [1, 1]} : vector<16x512xf32> to vector<16x128xf32>
    %526 = arith.negf %525 : vector<16x128xf32>
    %527 = math.exp %526 : vector<16x128xf32>
    %cst_148 = arith.constant 1.000000e+00 : f32
    %528 = vector.broadcast %cst_148 : f32 to vector<16x128xf32>
    %529 = arith.addf %528, %527 : vector<16x128xf32>
    %530 = arith.divf %528, %529 : vector<16x128xf32>
    %531 = vector.extract_strided_slice %518 {offsets = [0, 256], sizes = [16, 128], strides = [1, 1]} : vector<16x512xf32> to vector<16x128xf32>
    %532 = math.tanh %531 : vector<16x128xf32>
    %533 = vector.extract_strided_slice %518 {offsets = [0, 384], sizes = [16, 128], strides = [1, 1]} : vector<16x512xf32> to vector<16x128xf32>
    %534 = arith.negf %533 : vector<16x128xf32>
    %535 = math.exp %534 : vector<16x128xf32>
    %cst_149 = arith.constant 1.000000e+00 : f32
    %536 = vector.broadcast %cst_149 : f32 to vector<16x128xf32>
    %537 = arith.addf %536, %535 : vector<16x128xf32>
    %538 = arith.divf %536, %537 : vector<16x128xf32>
    %539 = arith.mulf %530, %509 : vector<16x128xf32>
    %540 = arith.mulf %524, %532 : vector<16x128xf32>
    %541 = arith.addf %539, %540 : vector<16x128xf32>
    %542 = math.tanh %541 : vector<16x128xf32>
    %543 = arith.mulf %538, %542 : vector<16x128xf32>
    %c7_i32_150 = arith.constant 7 : i32
    %c16_i32_151 = arith.constant 16 : i32
    %544 = arith.muli %c7_i32_150, %c16_i32_151 : i32
    %545 = tpu.assume_multiple %544, 16 : i32
    %546 = arith.index_cast %545 : i32 to index
    %c0_152 = arith.constant 0 : index
    %547 = vector.load %arg10[%546, %c0_152] : memref<128x512xf32, #tpu.memory_space<vmem>>, vector<16x512xf32>
    %548 = arith.truncf %543 : vector<16x128xf32> to vector<16x128xbf16>
    %cst_153 = arith.constant dense<0.000000e+00> : vector<16x512xf32>
    %549 = tpu.matmul %548, %315, %cst_153 {dimension_numbers = #tpu.dot_dimension_numbers<[1], [0], [0], [1], [0, 0, 1, 1], [], []>} : vector<16x128xbf16>, vector<128x512xbf16>, vector<16x512xf32> -> vector<16x512xf32>
    %550 = arith.addf %547, %549 : vector<16x512xf32>
    %551 = vector.extract_strided_slice %550 {offsets = [0, 0], sizes = [16, 128], strides = [1, 1]} : vector<16x512xf32> to vector<16x128xf32>
    %552 = arith.negf %551 : vector<16x128xf32>
    %553 = math.exp %552 : vector<16x128xf32>
    %cst_154 = arith.constant 1.000000e+00 : f32
    %554 = vector.broadcast %cst_154 : f32 to vector<16x128xf32>
    %555 = arith.addf %554, %553 : vector<16x128xf32>
    %556 = arith.divf %554, %555 : vector<16x128xf32>
    %557 = vector.extract_strided_slice %550 {offsets = [0, 128], sizes = [16, 128], strides = [1, 1]} : vector<16x512xf32> to vector<16x128xf32>
    %558 = arith.negf %557 : vector<16x128xf32>
    %559 = math.exp %558 : vector<16x128xf32>
    %cst_155 = arith.constant 1.000000e+00 : f32
    %560 = vector.broadcast %cst_155 : f32 to vector<16x128xf32>
    %561 = arith.addf %560, %559 : vector<16x128xf32>
    %562 = arith.divf %560, %561 : vector<16x128xf32>
    %563 = vector.extract_strided_slice %550 {offsets = [0, 256], sizes = [16, 128], strides = [1, 1]} : vector<16x512xf32> to vector<16x128xf32>
    %564 = math.tanh %563 : vector<16x128xf32>
    %565 = vector.extract_strided_slice %550 {offsets = [0, 384], sizes = [16, 128], strides = [1, 1]} : vector<16x512xf32> to vector<16x128xf32>
    %566 = arith.negf %565 : vector<16x128xf32>
    %567 = math.exp %566 : vector<16x128xf32>
    %cst_156 = arith.constant 1.000000e+00 : f32
    %568 = vector.broadcast %cst_156 : f32 to vector<16x128xf32>
    %569 = arith.addf %568, %567 : vector<16x128xf32>
    %570 = arith.divf %568, %569 : vector<16x128xf32>
    %571 = arith.mulf %562, %541 : vector<16x128xf32>
    %572 = arith.mulf %556, %564 : vector<16x128xf32>
    %573 = arith.addf %571, %572 : vector<16x128xf32>
    %574 = math.tanh %573 : vector<16x128xf32>
    %575 = arith.mulf %570, %574 : vector<16x128xf32>
    %c8_i32_157 = arith.constant 8 : i32
    %c1_158 = arith.constant 1 : index
    %c0_159 = arith.constant 0 : index
    %c0_160 = arith.constant 0 : index
    %576 = vector.load %arg7[%c1_158, %c0_159, %c0_160] : memref<2x16x128xf32, #tpu.memory_space<vmem>>, vector<1x16x128xf32>
    %577 = vector.shape_cast %576 : vector<1x16x128xf32> to vector<16x128xf32>
    %578 = vector.shape_cast %575 : vector<16x128xf32> to vector<1x16x128xf32>
    tpu.vector_store %arg7[%c1_158, %c0_159, %c0_160], %578 {strides = array<i32>} : memref<2x16x128xf32, #tpu.memory_space<vmem>>, vector<1x16x128xf32>,
    %c1_161 = arith.constant 1 : index
    %c0_162 = arith.constant 0 : index
    %c0_163 = arith.constant 0 : index
    %579 = vector.load %arg8[%c1_161, %c0_162, %c0_163] : memref<2x16x128xf32, #tpu.memory_space<vmem>>, vector<1x16x128xf32>
    %580 = vector.shape_cast %579 : vector<1x16x128xf32> to vector<16x128xf32>
    %581 = vector.shape_cast %573 : vector<16x128xf32> to vector<1x16x128xf32>
    tpu.vector_store %arg8[%c1_161, %c0_162, %c0_163], %581 {strides = array<i32>} : memref<2x16x128xf32, #tpu.memory_space<vmem>>, vector<1x16x128xf32>,
    %c0_164 = arith.constant 0 : index
    %c0_165 = arith.constant 0 : index
    %582 = vector.load %arg6[%c0_164, %c0_165] : memref<16x128xf32, #tpu.memory_space<vmem>>, vector<16x128xf32>
    tpu.vector_store %arg6[%c0_164, %c0_165], %575 {strides = array<i32>} : memref<16x128xf32, #tpu.memory_space<vmem>>, vector<16x128xf32>,
    return
  }
  func.func @transform_0(%arg0: i32, %arg1: i32) -> (i32, i32, i32) {
    %c0_i32 = arith.constant 0 : i32
    %c0_i32_0 = arith.constant 0 : i32
    return %arg1, %arg0, %c0_i32 : i32, i32, i32
  }
  func.func @transform_1(%arg0: i32, %arg1: i32) -> (i32, i32, i32) {
    %c0_i32 = arith.constant 0 : i32
    %c0_i32_0 = arith.constant 0 : i32
    %c0_i32_1 = arith.constant 0 : i32
    %c0_i32_2 = arith.constant 0 : i32
    return %c0_i32, %c0_i32_0, %c0_i32_1 : i32, i32, i32
  }
  func.func @transform_2(%arg0: i32, %arg1: i32) -> (i32, i32, i32) {
    %c0_i32 = arith.constant 0 : i32
    %c0_i32_0 = arith.constant 0 : i32
    %c0_i32_1 = arith.constant 0 : i32
    %c0_i32_2 = arith.constant 0 : i32
    return %c0_i32, %c0_i32_0, %c0_i32_1 : i32, i32, i32
  }
  func.func @transform_3(%arg0: i32, %arg1: i32) -> (i32, i32, i32) {
    %c0_i32 = arith.constant 0 : i32
    %c0_i32_0 = arith.constant 0 : i32
    %c0_i32_1 = arith.constant 0 : i32
    %c0_i32_2 = arith.constant 0 : i32
    return %c0_i32, %c0_i32_0, %c0_i32_1 : i32, i32, i32
  }
  func.func @transform_4(%arg0: i32, %arg1: i32) -> (i32, i32) {
    %c0_i32 = arith.constant 0 : i32
    %c0_i32_0 = arith.constant 0 : i32
    return %arg0, %c0_i32 : i32, i32
  }
}

</mosaic_0001>

<llo_original>
// kernel: a_call__.1
$region0: #{a_call__.1}
  #allocation0 [shape = 'u32[]', space=smem, size = 0x4, offset = 0x4, fixed_abs, tag = 'smem constant byte address 0x4 - core index']
  #allocation1 [shape = 'u32[144,128]{1,0:T(1,128)}', space=vmem, size = 0x12000, scoped, tag = 'internal scratch']
  #allocation2 [shape = 'f32[2,16,128]{2,1,0:T(8,128)}', space=vmem, size = 0x4000, scoped, tag = 'scratch operand']
  #allocation3 [shape = 'f32[2,16,128]{2,1,0:T(8,128)}', space=vmem, size = 0x4000, scoped, tag = 'scratch operand']
  #allocation4 [shape = 'bf16[128,128]{1,0:T(16,128)(2,1)}', space=vmem, size = 0x8000, scoped, tag = 'scratch operand']
  #allocation5 [shape = 'f32[128,512]{1,0:T(8,128)}', space=vmem, size = 0x40000, scoped, tag = 'scratch operand']
  %s0 = inlined_call_operand.vmem [shape: bf16[8,16,128], index: 0, kind: input, shape index: {}]
  %s1 = inlined_call_operand.vmem [shape: bf16[2,128,512], index: 1, kind: input, shape index: {}]
  %s2 = inlined_call_operand.vmem [shape: bf16[2,128,512], index: 2, kind: input, shape index: {}]
  %s3 = inlined_call_operand.vmem [shape: f32[2,1,512], index: 3, kind: input, shape index: {}]
  %s4 = inlined_call_operand.vmem [shape: f32[16,128], index: 4, kind: output, shape index: {}]
  %s5 = sld [smem:[#allocation0]]
  $region30: #{a_call__.1} parent=0
    _
  %s7 = ssub.s32 1, %s5
  %s8 = scalar_select 0, %s7, %s5
  // Predicated region
  $region2: #{a_call__.1} parent=0 // pred_check
    _
  $region3: #{a_call__.1} parent=0 // pred_check_branch
    %10 = sbr.rel (0) target = $region5
  $region4: #{a_call__.1} parent=0 // pred_region
    _
  $region5: #{a_call__.1} parent=0 // pred_fallthru
    _
  // Predicated region
  $region6: #{a_call__.1} parent=0 // pred_check
    _
  $region7: #{a_call__.1} parent=0 // pred_check_branch
    %12 = sbr.rel (0) target = $region9
  $region8: #{a_call__.1} parent=0 // pred_region
    _
  $region9: #{a_call__.1} parent=0 // pred_fallthru
    _
  // Predicated region
  $region10: #{a_call__.1} parent=0 // pred_check
    _
  $region11: #{a_call__.1} parent=0 // pred_check_branch
    %14 = sbr.rel (0) target = $region13
  $region12: #{a_call__.1} parent=0 // pred_region
    _
  $region13: #{a_call__.1} parent=0 // pred_fallthru
    _
  // Predicated region
  $region14: #{a_call__.1} parent=0 // pred_check
    _
  $region15: #{a_call__.1} parent=0 // pred_check_branch
    %16 = sbr.rel (0) target = $region17
  $region16: #{a_call__.1} parent=0 // pred_region
    _
  $region17: #{a_call__.1} parent=0 // pred_fallthru
    _
  %p18 = scmp.eq.s32.totalorder 0, 0
  // Predicated region
  $region18: #{a_call__.1} parent=0 // pred_check
    %p19 = pneg %p18
  $region19: #{a_call__.1} parent=0 // pred_check_branch
    %21 = sbr.rel (%p19) target = $region21
  $region20: #{a_call__.1} parent=0 // pred_region
    %22 = vst [vmem:[#allocation2] sm:$0xff] 0.0
    %23 = vst [vmem:[#allocation2 + $0x8] sm:$0xff] 0.0
    %24 = vst [vmem:[#allocation2 + $0x10] sm:$0xff] 0.0
    %25 = vst [vmem:[#allocation2 + $0x18] sm:$0xff] 0.0
    %26 = vst [vmem:[#allocation3] sm:$0xff] 0.0
    %27 = vst [vmem:[#allocation3 + $0x8] sm:$0xff] 0.0
    %28 = vst [vmem:[#allocation3 + $0x10] sm:$0xff] 0.0
    %29 = vst [vmem:[#allocation3 + $0x18] sm:$0xff] 0.0
  $region21: #{a_call__.1} parent=0 // pred_fallthru
    _
  %v30 = vld [vmem:[%s1] sm:$0xff]
  %v31 = vld [vmem:[%s1 + $0x8] sm:$0xff]
  %v32 = vld [vmem:[%s1 + $0x10] sm:$0xff]
  %v33 = vld [vmem:[%s1 + $0x18] sm:$0xff]
  %v34 = vld [vmem:[%s1 + $0x20] sm:$0xff]
  %v35 = vld [vmem:[%s1 + $0x28] sm:$0xff]
  %v36 = vld [vmem:[%s1 + $0x30] sm:$0xff]
  %v37 = vld [vmem:[%s1 + $0x38] sm:$0xff]
  %v38 = vld [vmem:[%s1 + $0x40] sm:$0xff]
  %v39 = vld [vmem:[%s1 + $0x48] sm:$0xff]
  %v40 = vld [vmem:[%s1 + $0x50] sm:$0xff]
  %v41 = vld [vmem:[%s1 + $0x58] sm:$0xff]
  %v42 = vld [vmem:[%s1 + $0x60] sm:$0xff]
  %v43 = vld [vmem:[%s1 + $0x68] sm:$0xff]
  %v44 = vld [vmem:[%s1 + $0x70] sm:$0xff]
  %v45 = vld [vmem:[%s1 + $0x78] sm:$0xff]
  %v46 = vld [vmem:[%s1 + $0x80] sm:$0xff]
  %v47 = vld [vmem:[%s1 + $0x88] sm:$0xff]
  %v48 = vld [vmem:[%s1 + $0x90] sm:$0xff]
  %v49 = vld [vmem:[%s1 + $0x98] sm:$0xff]
  %v50 = vld [vmem:[%s1 + $0xa0] sm:$0xff]
  %v51 = vld [vmem:[%s1 + $0xa8] sm:$0xff]
  %v52 = vld [vmem:[%s1 + $0xb0] sm:$0xff]
  %v53 = vld [vmem:[%s1 + $0xb8] sm:$0xff]
  %v54 = vld [vmem:[%s1 + $0xc0] sm:$0xff]
  %v55 = vld [vmem:[%s1 + $0xc8] sm:$0xff]
  %v56 = vld [vmem:[%s1 + $0xd0] sm:$0xff]
  %v57 = vld [vmem:[%s1 + $0xd8] sm:$0xff]
  %v58 = vld [vmem:[%s1 + $0xe0] sm:$0xff]
  %v59 = vld [vmem:[%s1 + $0xe8] sm:$0xff]
  %v60 = vld [vmem:[%s1 + $0xf0] sm:$0xff]
  %v61 = vld [vmem:[%s1 + $0xf8] sm:$0xff]
  %v62 = vld [vmem:[%s0] sm:$0xf]
  %v63 = vld [vmem:[%s0 + $0x4] sm:$0xf]
  %v64 = vld [vmem:[%s0 + $0x8] sm:$0xf]
  %v65 = vld [vmem:[%s0 + $0xc] sm:$0xf]
  %v66 = vld [vmem:[%s0 + $0x10] sm:$0xf]
  %v67 = vld [vmem:[%s0 + $0x14] sm:$0xf]
  %v68 = vld [vmem:[%s0 + $0x18] sm:$0xf]
  %v69 = vld [vmem:[%s0 + $0x1c] sm:$0xf]
  %v70 = vld [vmem:[%s0 + $0x20] sm:$0xf]
  %v71 = vld [vmem:[%s0 + $0x24] sm:$0xf]
  %v72 = vld [vmem:[%s0 + $0x28] sm:$0xf]
  %v73 = vld [vmem:[%s0 + $0x2c] sm:$0xf]
  %v74 = vld [vmem:[%s0 + $0x30] sm:$0xf]
  %v75 = vld [vmem:[%s0 + $0x34] sm:$0xf]
  %v76 = vld [vmem:[%s0 + $0x38] sm:$0xf]
  %v77 = vld [vmem:[%s0 + $0x3c] sm:$0xf]
  %v78 = vld [vmem:[%s3] sm:$0xf]
  %v80 = vlaneseq
  %v81 = vshrl.u32 %v80, 7
  %v82 = vsub.s32 0, %v81
  %v83 = vrot.slane %v78, %v82
  %v84 = vlaneseq
  %v85 = vshrl.u32 %v84, 7
  %v86 = vsub.s32 1, %v85
  %v87 = vrot.slane %v78, %v86
  %v88 = vlaneseq
  %v89 = vshrl.u32 %v88, 7
  %v90 = vsub.s32 2, %v89
  %v91 = vrot.slane %v78, %v90
  %v92 = vlaneseq
  %v93 = vshrl.u32 %v92, 7
  %v94 = vsub.s32 3, %v93
  %v95 = vrot.slane %v78, %v94
  %v116 = vunpack.c.l.b16 %v62
  %v117 = vunpack.c.l.b16 %v63
  %v118 = vunpack.c.l.b16 %v64
  %v119 = vunpack.c.l.b16 %v65
  %v120 = vunpack.c.l.b16 %v66
  %v121 = vunpack.c.l.b16 %v67
  %v122 = vunpack.c.l.b16 %v68
  %v123 = vunpack.c.l.b16 %v69
  %v124 = vunpack.c.l.b16 %v70
  %v125 = vunpack.c.l.b16 %v71
  %v126 = vunpack.c.l.b16 %v72
  %v127 = vunpack.c.l.b16 %v73
  %v128 = vunpack.c.l.b16 %v74
  %v129 = vunpack.c.l.b16 %v75
  %v130 = vunpack.c.l.b16 %v76
  %v131 = vunpack.c.l.b16 %v77
  %v132 = vpack.c.b16 %v117, %v116
  %v133 = vpack.c.b16 %v119, %v118
  %v134 = vpack.c.b16 %v121, %v120
  %v135 = vpack.c.b16 %v123, %v122
  %v136 = vpack.c.b16 %v125, %v124
  %v137 = vpack.c.b16 %v127, %v126
  %v138 = vpack.c.b16 %v129, %v128
  %v139 = vpack.c.b16 %v131, %v130
  %v180 = vunpack.c.l.b16 %v30
  %v181 = vunpack.c.h.b16 %v30
  %v182 = vunpack.c.l.b16 %v31
  %v183 = vunpack.c.h.b16 %v31
  %v184 = vunpack.c.l.b16 %v32
  %v185 = vunpack.c.h.b16 %v32
  %v186 = vunpack.c.l.b16 %v33
  %v187 = vunpack.c.h.b16 %v33
  %v188 = vunpack.c.l.b16 %v34
  %v189 = vunpack.c.h.b16 %v34
  %v190 = vunpack.c.l.b16 %v35
  %v191 = vunpack.c.h.b16 %v35
  %v192 = vunpack.c.l.b16 %v36
  %v193 = vunpack.c.h.b16 %v36
  %v194 = vunpack.c.l.b16 %v37
  %v195 = vunpack.c.h.b16 %v37
  %v196 = vunpack.c.l.b16 %v38
  %v197 = vunpack.c.h.b16 %v38
  %v198 = vunpack.c.l.b16 %v39
  %v199 = vunpack.c.h.b16 %v39
  %v200 = vunpack.c.l.b16 %v40
  %v201 = vunpack.c.h.b16 %v40
  %v202 = vunpack.c.l.b16 %v41
  %v203 = vunpack.c.h.b16 %v41
  %v204 = vunpack.c.l.b16 %v42
  %v205 = vunpack.c.h.b16 %v42
  %v206 = vunpack.c.l.b16 %v43
  %v207 = vunpack.c.h.b16 %v43
  %v208 = vunpack.c.l.b16 %v44
  %v209 = vunpack.c.h.b16 %v44
  %v210 = vunpack.c.l.b16 %v45
  %v211 = vunpack.c.h.b16 %v45
  %v212 = vunpack.c.l.b16 %v46
  %v213 = vunpack.c.h.b16 %v46
  %v214 = vunpack.c.l.b16 %v47
  %v215 = vunpack.c.h.b16 %v47
  %v216 = vunpack.c.l.b16 %v48
  %v217 = vunpack.c.h.b16 %v48
  %v218 = vunpack.c.l.b16 %v49
  %v219 = vunpack.c.h.b16 %v49
  %v220 = vunpack.c.l.b16 %v50
  %v221 = vunpack.c.h.b16 %v50
  %v222 = vunpack.c.l.b16 %v51
  %v223 = vunpack.c.h.b16 %v51
  %v224 = vunpack.c.l.b16 %v52
  %v225 = vunpack.c.h.b16 %v52
  %v226 = vunpack.c.l.b16 %v53
  %v227 = vunpack.c.h.b16 %v53
  %v228 = vunpack.c.l.b16 %v54
  %v229 = vunpack.c.h.b16 %v54
  %v230 = vunpack.c.l.b16 %v55
  %v231 = vunpack.c.h.b16 %v55
  %v232 = vunpack.c.l.b16 %v56
  %v233 = vunpack.c.h.b16 %v56
  %v234 = vunpack.c.l.b16 %v57
  %v235 = vunpack.c.h.b16 %v57
  %v236 = vunpack.c.l.b16 %v58
  %v237 = vunpack.c.h.b16 %v58
  %v238 = vunpack.c.l.b16 %v59
  %v239 = vunpack.c.h.b16 %v59
  %v240 = vunpack.c.l.b16 %v60
  %v241 = vunpack.c.h.b16 %v60
  %v242 = vunpack.c.l.b16 %v61
  %v243 = vunpack.c.h.b16 %v61
  %v244 = vpack.c.b16 %v184, %v180
  %v245 = vpack.c.b16 %v185, %v181
  %v246 = vpack.c.b16 %v186, %v182
  %v247 = vpack.c.b16 %v187, %v183
  %v248 = vpack.c.b16 %v192, %v188
  %v249 = vpack.c.b16 %v193, %v189
  %v250 = vpack.c.b16 %v194, %v190
  %v251 = vpack.c.b16 %v195, %v191
  %v252 = vpack.c.b16 %v200, %v196
  %v253 = vpack.c.b16 %v201, %v197
  %v254 = vpack.c.b16 %v202, %v198
  %v255 = vpack.c.b16 %v203, %v199
  %v256 = vpack.c.b16 %v208, %v204
  %v257 = vpack.c.b16 %v209, %v205
  %v258 = vpack.c.b16 %v210, %v206
  %v259 = vpack.c.b16 %v211, %v207
  %v260 = vpack.c.b16 %v216, %v212
  %v261 = vpack.c.b16 %v217, %v213
  %v262 = vpack.c.b16 %v218, %v214
  %v263 = vpack.c.b16 %v219, %v215
  %v264 = vpack.c.b16 %v224, %v220
  %v265 = vpack.c.b16 %v225, %v221
  %v266 = vpack.c.b16 %v226, %v222
  %v267 = vpack.c.b16 %v227, %v223
  %v268 = vpack.c.b16 %v232, %v228
  %v269 = vpack.c.b16 %v233, %v229
  %v270 = vpack.c.b16 %v234, %v230
  %v271 = vpack.c.b16 %v235, %v231
  %v272 = vpack.c.b16 %v240, %v236
  %v273 = vpack.c.b16 %v241, %v237
  %v274 = vpack.c.b16 %v242, %v238
  %v275 = vpack.c.b16 %v243, %v239
  %308 = vmatprep.subr.bf16.mxu0 %v245
  %309 = vmatpush1.bf16.msra.mxu0 %v244
  %310 = vmatprep.subr.bf16.mxu0 %v249
  %311 = vmatpush1.bf16.msra.mxu0 %v248
  %312 = vmatprep.subr.bf16.mxu0 %v253
  %313 = vmatpush1.bf16.msra.mxu0 %v252
  %314 = vmatprep.subr.bf16.mxu0 %v257
  %315 = vmatpush1.bf16.msra.mxu0 %v256
  %316 = vmatprep.subr.bf16.mxu0 %v261
  %317 = vmatpush1.bf16.msra.mxu0 %v260
  %318 = vmatprep.subr.bf16.mxu0 %v265
  %319 = vmatpush1.bf16.msra.mxu0 %v264
  %320 = vmatprep.subr.bf16.mxu0 %v269
  %321 = vmatpush1.bf16.msra.mxu0 %v268
  %322 = vmatprep.subr.bf16.mxu0 %v273
  %323 = vmatpush1.bf16.msra.mxu0 %v272
  %324 = vmatprep.subr.bf16.mxu0 0
  %325 = vmatpush1.bf16.msra.mxu0 0
  %326 = vmatprep.subr.bf16.mxu0 0
  %327 = vmatpush1.bf16.msra.mxu0 0
  %328 = vmatprep.subr.bf16.mxu0 0
  %329 = vmatpush1.bf16.msra.mxu0 0
  %330 = vmatprep.subr.bf16.mxu0 0
  %331 = vmatpush1.bf16.msra.mxu0 0
  %332 = vmatprep.subr.bf16.mxu0 0
  %333 = vmatpush1.bf16.msra.mxu0 0
  %334 = vmatprep.subr.bf16.mxu0 0
  %335 = vmatpush1.bf16.msra.mxu0 0
  %336 = vmatprep.subr.bf16.mxu0 0
  %337 = vmatpush1.bf16.msra.mxu0 0
  %338 = vmatprep.subr.bf16.mxu0 0
  %339 = vmatpush1.bf16.msra.mxu0 0
  %340 = vmatprep.mubr.bf16.mxu0 0
  %341 = vmatmul.mubr.bf16.gmra.mrb[0].mxu0 %v132
  %v342 = vpop.f32.mrb[0].mxu0
  %v343 = vadd.f32 %v83, %v342
  %v344 = vpop.f32.mrb[0].mxu0
  %v345 = vadd.f32 %v87, %v344
  %v346 = vpop.f32.mrb[0].mxu0
  %v347 = vadd.f32 %v83, %v346
  %v348 = vpop.f32.mrb[0].mxu0
  %v349 = vadd.f32 %v87, %v348
  %350 = vmatprep.mubr.bf16.mxu0 0
  %351 = vmatmul.mubr.bf16.gmra.mrb[0].mxu0 %v133
  %v352 = vpop.f32.mrb[0].mxu0
  %v353 = vadd.f32 %v83, %v352
  %v354 = vpop.f32.mrb[0].mxu0
  %v355 = vadd.f32 %v87, %v354
  %v356 = vpop.f32.mrb[0].mxu0
  %v357 = vadd.f32 %v83, %v356
  %v358 = vpop.f32.mrb[0].mxu0
  %v359 = vadd.f32 %v87, %v358
  %360 = vmatprep.mubr.bf16.mxu0 0
  %361 = vmatmul.mubr.bf16.gmra.mrb[0].mxu0 %v134
  %v362 = vpop.f32.mrb[0].mxu0
  %v363 = vadd.f32 %v83, %v362
  %v364 = vpop.f32.mrb[0].mxu0
  %v365 = vadd.f32 %v87, %v364
  %v366 = vpop.f32.mrb[0].mxu0
  %v367 = vadd.f32 %v83, %v366
  %v368 = vpop.f32.mrb[0].mxu0
  %v369 = vadd.f32 %v87, %v368
  %370 = vmatprep.mubr.bf16.mxu0 0
  %371 = vmatmul.mubr.bf16.gmra.mrb[0].mxu0 %v135
  %v372 = vpop.f32.mrb[0].mxu0
  %v373 = vadd.f32 %v83, %v372
  %v374 = vpop.f32.mrb[0].mxu0
  %v375 = vadd.f32 %v87, %v374
  %v376 = vpop.f32.mrb[0].mxu0
  %v377 = vadd.f32 %v83, %v376
  %v378 = vpop.f32.mrb[0].mxu0
  %v379 = vadd.f32 %v87, %v378
  %380 = vmatprep.mubr.bf16.mxu0 0
  %381 = vmatmul.mubr.bf16.gmra.mrb[0].mxu0 %v136
  %v382 = vpop.f32.mrb[0].mxu0
  %v383 = vadd.f32 %v83, %v382
  %v384 = vpop.f32.mrb[0].mxu0
  %v385 = vadd.f32 %v87, %v384
  %v386 = vpop.f32.mrb[0].mxu0
  %v387 = vadd.f32 %v83, %v386
  %v388 = vpop.f32.mrb[0].mxu0
  %v389 = vadd.f32 %v87, %v388
  %390 = vmatprep.mubr.bf16.mxu0 0
  %391 = vmatmul.mubr.bf16.gmra.mrb[0].mxu0 %v137
  %v392 = vpop.f32.mrb[0].mxu0
  %v393 = vadd.f32 %v83, %v392
  %v394 = vpop.f32.mrb[0].mxu0
  %v395 = vadd.f32 %v87, %v394
  %v396 = vpop.f32.mrb[0].mxu0
  %v397 = vadd.f32 %v83, %v396
  %v398 = vpop.f32.mrb[0].mxu0
  %v399 = vadd.f32 %v87, %v398
  %400 = vmatprep.mubr.bf16.mxu0 0
  %401 = vmatmul.mubr.bf16.gmra.mrb[0].mxu0 %v138
  %v402 = vpop.f32.mrb[0].mxu0
  %v403 = vadd.f32 %v83, %v402
  %v404 = vpop.f32.mrb[0].mxu0
  %v405 = vadd.f32 %v87, %v404
  %v406 = vpop.f32.mrb[0].mxu0
  %v407 = vadd.f32 %v83, %v406
  %v408 = vpop.f32.mrb[0].mxu0
  %v409 = vadd.f32 %v87, %v408
  %410 = vmatprep.mubr.bf16.mxu0 0
  %411 = vmatmul.mubr.bf16.gmra.mrb[0].mxu0 %v139
  %v412 = vpop.f32.mrb[0].mxu0
  %v413 = vadd.f32 %v83, %v412
  %v414 = vpop.f32.mrb[0].mxu0
  %v415 = vadd.f32 %v87, %v414
  %v416 = vpop.f32.mrb[0].mxu0
  %v417 = vadd.f32 %v83, %v416
  %v418 = vpop.f32.mrb[0].mxu0
  %v419 = vadd.f32 %v87, %v418
  %420 = vdwg.mxu0
  %421 = vmatprep.subr.bf16.mxu0 %v247
  %422 = vmatpush1.bf16.msra.mxu0 %v246
  %423 = vmatprep.subr.bf16.mxu0 %v251
  %424 = vmatpush1.bf16.msra.mxu0 %v250
  %425 = vmatprep.subr.bf16.mxu0 %v255
  %426 = vmatpush1.bf16.msra.mxu0 %v254
  %427 = vmatprep.subr.bf16.mxu0 %v259
  %428 = vmatpush1.bf16.msra.mxu0 %v258
  %429 = vmatprep.subr.bf16.mxu0 %v263
  %430 = vmatpush1.bf16.msra.mxu0 %v262
  %431 = vmatprep.subr.bf16.mxu0 %v267
  %432 = vmatpush1.bf16.msra.mxu0 %v266
  %433 = vmatprep.subr.bf16.mxu0 %v271
  %434 = vmatpush1.bf16.msra.mxu0 %v270
  %435 = vmatprep.subr.bf16.mxu0 %v275
  %436 = vmatpush1.bf16.msra.mxu0 %v274
  %437 = vmatprep.subr.bf16.mxu0 0
  %438 = vmatpush1.bf16.msra.mxu0 0
  %439 = vmatprep.subr.bf16.mxu0 0
  %440 = vmatpush1.bf16.msra.mxu0 0
  %441 = vmatprep.subr.bf16.mxu0 0
  %442 = vmatpush1.bf16.msra.mxu0 0
  %443 = vmatprep.subr.bf16.mxu0 0
  %444 = vmatpush1.bf16.msra.mxu0 0
  %445 = vmatprep.subr.bf16.mxu0 0
  %446 = vmatpush1.bf16.msra.mxu0 0
  %447 = vmatprep.subr.bf16.mxu0 0
  %448 = vmatpush1.bf16.msra.mxu0 0
  %449 = vmatprep.subr.bf16.mxu0 0
  %450 = vmatpush1.bf16.msra.mxu0 0
  %451 = vmatprep.subr.bf16.mxu0 0
  %452 = vmatpush1.bf16.msra.mxu0 0
  %453 = vmatprep.mubr.bf16.mxu0 0
  %454 = vmatmul.mubr.bf16.gmra.mrb[0].mxu0 %v132
  %v455 = vpop.f32.mrb[0].mxu0
  %v456 = vadd.f32 %v91, %v455
  %v457 = vpop.f32.mrb[0].mxu0
  %v458 = vadd.f32 %v95, %v457
  %v459 = vpop.f32.mrb[0].mxu0
  %v460 = vadd.f32 %v91, %v459
  %v461 = vpop.f32.mrb[0].mxu0
  %v462 = vadd.f32 %v95, %v461
  %463 = vmatprep.mubr.bf16.mxu0 0
  %464 = vmatmul.mubr.bf16.gmra.mrb[0].mxu0 %v133
  %v465 = vpop.f32.mrb[0].mxu0
  %v466 = vadd.f32 %v91, %v465
  %v467 = vpop.f32.mrb[0].mxu0
  %v468 = vadd.f32 %v95, %v467
  %v469 = vpop.f32.mrb[0].mxu0
  %v470 = vadd.f32 %v91, %v469
  %v471 = vpop.f32.mrb[0].mxu0
  %v472 = vadd.f32 %v95, %v471
  %473 = vmatprep.mubr.bf16.mxu0 0
  %474 = vmatmul.mubr.bf16.gmra.mrb[0].mxu0 %v134
  %v475 = vpop.f32.mrb[0].mxu0
  %v476 = vadd.f32 %v91, %v475
  %v477 = vpop.f32.mrb[0].mxu0
  %v478 = vadd.f32 %v95, %v477
  %v479 = vpop.f32.mrb[0].mxu0
  %v480 = vadd.f32 %v91, %v479
  %v481 = vpop.f32.mrb[0].mxu0
  %v482 = vadd.f32 %v95, %v481
  %483 = vmatprep.mubr.bf16.mxu0 0
  %484 = vmatmul.mubr.bf16.gmra.mrb[0].mxu0 %v135
  %v485 = vpop.f32.mrb[0].mxu0
  %v486 = vadd.f32 %v91, %v485
  %v487 = vpop.f32.mrb[0].mxu0
  %v488 = vadd.f32 %v95, %v487
  %v489 = vpop.f32.mrb[0].mxu0
  %v490 = vadd.f32 %v91, %v489
  %v491 = vpop.f32.mrb[0].mxu0
  %v492 = vadd.f32 %v95, %v491
  %493 = vmatprep.mubr.bf16.mxu0 0
  %494 = vmatmul.mubr.bf16.gmra.mrb[0].mxu0 %v136
  %v495 = vpop.f32.mrb[0].mxu0
  %v496 = vadd.f32 %v91, %v495
  %v497 = vpop.f32.mrb[0].mxu0
  %v498 = vadd.f32 %v95, %v497
  %v499 = vpop.f32.mrb[0].mxu0
  %v500 = vadd.f32 %v91, %v499
  %v501 = vpop.f32.mrb[0].mxu0
  %v502 = vadd.f32 %v95, %v501
  %503 = vmatprep.mubr.bf16.mxu0 0
  %504 = vmatmul.mubr.bf16.gmra.mrb[0].mxu0 %v137
  %v505 = vpop.f32.mrb[0].mxu0
  %v506 = vadd.f32 %v91, %v505
  %v507 = vpop.f32.mrb[0].mxu0
  %v508 = vadd.f32 %v95, %v507
  %v509 = vpop.f32.mrb[0].mxu0
  %v510 = vadd.f32 %v91, %v509
  %v511 = vpop.f32.mrb[0].mxu0
  %v512 = vadd.f32 %v95, %v511
  %513 = vmatprep.mubr.bf16.mxu0 0
  %514 = vmatmul.mubr.bf16.gmra.mrb[0].mxu0 %v138
  %v515 = vpop.f32.mrb[0].mxu0
  %v516 = vadd.f32 %v91, %v515
  %v517 = vpop.f32.mrb[0].mxu0
  %v518 = vadd.f32 %v95, %v517
  %v519 = vpop.f32.mrb[0].mxu0
  %v520 = vadd.f32 %v91, %v519
  %v521 = vpop.f32.mrb[0].mxu0
  %v522 = vadd.f32 %v95, %v521
  %523 = vmatprep.mubr.bf16.mxu0 0
  %524 = vmatmul.mubr.bf16.gmra.mrb[0].mxu0 %v139
  %v525 = vpop.f32.mrb[0].mxu0
  %v526 = vadd.f32 %v91, %v525
  %v527 = vpop.f32.mrb[0].mxu0
  %v528 = vadd.f32 %v95, %v527
  %v529 = vpop.f32.mrb[0].mxu0
  %v530 = vadd.f32 %v91, %v529
  %v531 = vpop.f32.mrb[0].mxu0
  %v532 = vadd.f32 %v95, %v531
  %533 = vdwg.mxu0
  %534 = vst [vmem:[#allocation5] sm:$0xff] %v343
  %535 = vst [vmem:[#allocation5 + $0x8] sm:$0xff] %v345
  %536 = vst [vmem:[#allocation5 + $0x10] sm:$0xff] %v456
  %537 = vst [vmem:[#allocation5 + $0x18] sm:$0xff] %v458
  %538 = vst [vmem:[#allocation5 + $0x20] sm:$0xff] %v347
  %539 = vst [vmem:[#allocation5 + $0x28] sm:$0xff] %v349
  %540 = vst [vmem:[#allocation5 + $0x30] sm:$0xff] %v460
  %541 = vst [vmem:[#allocation5 + $0x38] sm:$0xff] %v462
  %542 = vst [vmem:[#allocation5 + $0x40] sm:$0xff] %v353
  %543 = vst [vmem:[#allocation5 + $0x48] sm:$0xff] %v355
  %544 = vst [vmem:[#allocation5 + $0x50] sm:$0xff] %v466
  %545 = vst [vmem:[#allocation5 + $0x58] sm:$0xff] %v468
  %546 = vst [vmem:[#allocation5 + $0x60] sm:$0xff] %v357
  %547 = vst [vmem:[#allocation5 + $0x68] sm:$0xff] %v359
  %548 = vst [vmem:[#allocation5 + $0x70] sm:$0xff] %v470
  %549 = vst [vmem:[#allocation5 + $0x78] sm:$0xff] %v472
  %550 = vst [vmem:[#allocation5 + $0x80] sm:$0xff] %v363
  %551 = vst [vmem:[#allocation5 + $0x88] sm:$0xff] %v365
  %552 = vst [vmem:[#allocation5 + $0x90] sm:$0xff] %v476
  %553 = vst [vmem:[#allocation5 + $0x98] sm:$0xff] %v478
  %554 = vst [vmem:[#allocation5 + $0xa0] sm:$0xff] %v367
  %555 = vst [vmem:[#allocation5 + $0xa8] sm:$0xff] %v369
  %556 = vst [vmem:[#allocation5 + $0xb0] sm:$0xff] %v480
  %557 = vst [vmem:[#allocation5 + $0xb8] sm:$0xff] %v482
  %558 = vst [vmem:[#allocation5 + $0xc0] sm:$0xff] %v373
  %559 = vst [vmem:[#allocation5 + $0xc8] sm:$0xff] %v375
  %560 = vst [vmem:[#allocation5 + $0xd0] sm:$0xff] %v486
  %561 = vst [vmem:[#allocation5 + $0xd8] sm:$0xff] %v488
  %562 = vst [vmem:[#allocation5 + $0xe0] sm:$0xff] %v377
  %563 = vst [vmem:[#allocation5 + $0xe8] sm:$0xff] %v379
  %564 = vst [vmem:[#allocation5 + $0xf0] sm:$0xff] %v490
  %565 = vst [vmem:[#allocation5 + $0xf8] sm:$0xff] %v492
  %566 = vst [vmem:[#allocation5 + $0x100] sm:$0xff] %v383
  %567 = vst [vmem:[#allocation5 + $0x108] sm:$0xff] %v385
  %568 = vst [vmem:[#allocation5 + $0x110] sm:$0xff] %v496
  %569 = vst [vmem:[#allocation5 + $0x118] sm:$0xff] %v498
  %570 = vst [vmem:[#allocation5 + $0x120] sm:$0xff] %v387
  %571 = vst [vmem:[#allocation5 + $0x128] sm:$0xff] %v389
  %572 = vst [vmem:[#allocation5 + $0x130] sm:$0xff] %v500
  %573 = vst [vmem:[#allocation5 + $0x138] sm:$0xff] %v502
  %574 = vst [vmem:[#allocation5 + $0x140] sm:$0xff] %v393
  %575 = vst [vmem:[#allocation5 + $0x148] sm:$0xff] %v395
  %576 = vst [vmem:[#allocation5 + $0x150] sm:$0xff] %v506
  %577 = vst [vmem:[#allocation5 + $0x158] sm:$0xff] %v508
  %578 = vst [vmem:[#allocation5 + $0x160] sm:$0xff] %v397
  %579 = vst [vmem:[#allocation5 + $0x168] sm:$0xff] %v399
  %580 = vst [vmem:[#allocation5 + $0x170] sm:$0xff] %v510
  %581 = vst [vmem:[#allocation5 + $0x178] sm:$0xff] %v512
  %582 = vst [vmem:[#allocation5 + $0x180] sm:$0xff] %v403
  %583 = vst [vmem:[#allocation5 + $0x188] sm:$0xff] %v405
  %584 = vst [vmem:[#allocation5 + $0x190] sm:$0xff] %v516
  %585 = vst [vmem:[#allocation5 + $0x198] sm:$0xff] %v518
  %586 = vst [vmem:[#allocation5 + $0x1a0] sm:$0xff] %v407
  %587 = vst [vmem:[#allocation5 + $0x1a8] sm:$0xff] %v409
  %588 = vst [vmem:[#allocation5 + $0x1b0] sm:$0xff] %v520
  %589 = vst [vmem:[#allocation5 + $0x1b8] sm:$0xff] %v522
  %590 = vst [vmem:[#allocation5 + $0x1c0] sm:$0xff] %v413
  %591 = vst [vmem:[#allocation5 + $0x1c8] sm:$0xff] %v415
  %592 = vst [vmem:[#allocation5 + $0x1d0] sm:$0xff] %v526
  %593 = vst [vmem:[#allocation5 + $0x1d8] sm:$0xff] %v528
  %594 = vst [vmem:[#allocation5 + $0x1e0] sm:$0xff] %v417
  %595 = vst [vmem:[#allocation5 + $0x1e8] sm:$0xff] %v419
  %596 = vst [vmem:[#allocation5 + $0x1f0] sm:$0xff] %v530
  %597 = vst [vmem:[#allocation5 + $0x1f8] sm:$0xff] %v532
  %v598 = vld [vmem:[%s2] sm:$0xff]
  %v599 = vld [vmem:[%s2 + $0x8] sm:$0xff]
  %v600 = vld [vmem:[%s2 + $0x10] sm:$0xff]
  %v601 = vld [vmem:[%s2 + $0x18] sm:$0xff]
  %v602 = vld [vmem:[%s2 + $0x20] sm:$0xff]
  %v603 = vld [vmem:[%s2 + $0x28] sm:$0xff]
  %v604 = vld [vmem:[%s2 + $0x30] sm:$0xff]
  %v605 = vld [vmem:[%s2 + $0x38] sm:$0xff]
  %v606 = vld [vmem:[%s2 + $0x40] sm:$0xff]
  %v607 = vld [vmem:[%s2 + $0x48] sm:$0xff]
  %v608 = vld [vmem:[%s2 + $0x50] sm:$0xff]
  %v609 = vld [vmem:[%s2 + $0x58] sm:$0xff]
  %v610 = vld [vmem:[%s2 + $0x60] sm:$0xff]
  %v611 = vld [vmem:[%s2 + $0x68] sm:$0xff]
  %v612 = vld [vmem:[%s2 + $0x70] sm:$0xff]
  %v613 = vld [vmem:[%s2 + $0x78] sm:$0xff]
  %v614 = vld [vmem:[%s2 + $0x80] sm:$0xff]
  %v615 = vld [vmem:[%s2 + $0x88] sm:$0xff]
  %v616 = vld [vmem:[%s2 + $0x90] sm:$0xff]
  %v617 = vld [vmem:[%s2 + $0x98] sm:$0xff]
  %v618 = vld [vmem:[%s2 + $0xa0] sm:$0xff]
  %v619 = vld [vmem:[%s2 + $0xa8] sm:$0xff]
  %v620 = vld [vmem:[%s2 + $0xb0] sm:$0xff]
  %v621 = vld [vmem:[%s2 + $0xb8] sm:$0xff]
  %v622 = vld [vmem:[%s2 + $0xc0] sm:$0xff]
  %v623 = vld [vmem:[%s2 + $0xc8] sm:$0xff]
  %v624 = vld [vmem:[%s2 + $0xd0] sm:$0xff]
  %v625 = vld [vmem:[%s2 + $0xd8] sm:$0xff]
  %v626 = vld [vmem:[%s2 + $0xe0] sm:$0xff]
  %v627 = vld [vmem:[%s2 + $0xe8] sm:$0xff]
  %v628 = vld [vmem:[%s2 + $0xf0] sm:$0xff]
  %v629 = vld [vmem:[%s2 + $0xf8] sm:$0xff]
  %v630 = vld [vmem:[#allocation2] sm:$0xff]
  %v631 = vld [vmem:[#allocation2 + $0x8] sm:$0xff]
  %v632 = vld [vmem:[#allocation3] sm:$0xff]
  %v633 = vld [vmem:[#allocation3 + $0x8] sm:$0xff]
  %s634 = smul.u32 0, 4
  %s635 = smul.addr %s634, 8
  %s636 = scalar_lea.vmem [#allocation5], %s635
  %v637 = vld [vmem:[%s636] sm:$0xff]
  %v638 = vld [vmem:[%s636 + $0x8] sm:$0xff]
  %v639 = vld [vmem:[%s636 + $0x10] sm:$0xff]
  %v640 = vld [vmem:[%s636 + $0x18] sm:$0xff]
  %v641 = vld [vmem:[%s636 + $0x20] sm:$0xff]
  %v642 = vld [vmem:[%s636 + $0x28] sm:$0xff]
  %v643 = vld [vmem:[%s636 + $0x30] sm:$0xff]
  %v644 = vld [vmem:[%s636 + $0x38] sm:$0xff]
  %v645 = vpack.c.bf16 %v631, %v630
  %v678 = vunpack.c.l.b16 %v598
  %v679 = vunpack.c.h.b16 %v598
  %v680 = vunpack.c.l.b16 %v599
  %v681 = vunpack.c.h.b16 %v599
  %v682 = vunpack.c.l.b16 %v600
  %v683 = vunpack.c.h.b16 %v600
  %v684 = vunpack.c.l.b16 %v601
  %v685 = vunpack.c.h.b16 %v601
  %v686 = vunpack.c.l.b16 %v602
  %v687 = vunpack.c.h.b16 %v602
  %v688 = vunpack.c.l.b16 %v603
  %v689 = vunpack.c.h.b16 %v603
  %v690 = vunpack.c.l.b16 %v604
  %v691 = vunpack.c.h.b16 %v604
  %v692 = vunpack.c.l.b16 %v605
  %v693 = vunpack.c.h.b16 %v605
  %v694 = vunpack.c.l.b16 %v606
  %v695 = vunpack.c.h.b16 %v606
  %v696 = vunpack.c.l.b16 %v607
  %v697 = vunpack.c.h.b16 %v607
  %v698 = vunpack.c.l.b16 %v608
  %v699 = vunpack.c.h.b16 %v608
  %v700 = vunpack.c.l.b16 %v609
  %v701 = vunpack.c.h.b16 %v609
  %v702 = vunpack.c.l.b16 %v610
  %v703 = vunpack.c.h.b16 %v610
  %v704 = vunpack.c.l.b16 %v611
  %v705 = vunpack.c.h.b16 %v611
  %v706 = vunpack.c.l.b16 %v612
  %v707 = vunpack.c.h.b16 %v612
  %v708 = vunpack.c.l.b16 %v613
  %v709 = vunpack.c.h.b16 %v613
  %v710 = vunpack.c.l.b16 %v614
  %v711 = vunpack.c.h.b16 %v614
  %v712 = vunpack.c.l.b16 %v615
  %v713 = vunpack.c.h.b16 %v615
  %v714 = vunpack.c.l.b16 %v616
  %v715 = vunpack.c.h.b16 %v616
  %v716 = vunpack.c.l.b16 %v617
  %v717 = vunpack.c.h.b16 %v617
  %v718 = vunpack.c.l.b16 %v618
  %v719 = vunpack.c.h.b16 %v618
  %v720 = vunpack.c.l.b16 %v619
  %v721 = vunpack.c.h.b16 %v619
  %v722 = vunpack.c.l.b16 %v620
  %v723 = vunpack.c.h.b16 %v620
  %v724 = vunpack.c.l.b16 %v621
  %v725 = vunpack.c.h.b16 %v621
  %v726 = vunpack.c.l.b16 %v622
  %v727 = vunpack.c.h.b16 %v622
  %v728 = vunpack.c.l.b16 %v623
  %v729 = vunpack.c.h.b16 %v623
  %v730 = vunpack.c.l.b16 %v624
  %v731 = vunpack.c.h.b16 %v624
  %v732 = vunpack.c.l.b16 %v625
  %v733 = vunpack.c.h.b16 %v625
  %v734 = vunpack.c.l.b16 %v626
  %v735 = vunpack.c.h.b16 %v626
  %v736 = vunpack.c.l.b16 %v627
  %v737 = vunpack.c.h.b16 %v627
  %v738 = vunpack.c.l.b16 %v628
  %v739 = vunpack.c.h.b16 %v628
  %v740 = vunpack.c.l.b16 %v629
  %v741 = vunpack.c.h.b16 %v629
  %v742 = vpack.c.b16 %v682, %v678
  %v743 = vpack.c.b16 %v683, %v679
  %v744 = vpack.c.b16 %v684, %v680
  %v745 = vpack.c.b16 %v685, %v681
  %v746 = vpack.c.b16 %v690, %v686
  %v747 = vpack.c.b16 %v691, %v687
  %v748 = vpack.c.b16 %v692, %v688
  %v749 = vpack.c.b16 %v693, %v689
  %v750 = vpack.c.b16 %v698, %v694
  %v751 = vpack.c.b16 %v699, %v695
  %v752 = vpack.c.b16 %v700, %v696
  %v753 = vpack.c.b16 %v701, %v697
  %v754 = vpack.c.b16 %v706, %v702
  %v755 = vpack.c.b16 %v707, %v703
  %v756 = vpack.c.b16 %v708, %v704
  %v757 = vpack.c.b16 %v709, %v705
  %v758 = vpack.c.b16 %v714, %v710
  %v759 = vpack.c.b16 %v715, %v711
  %v760 = vpack.c.b16 %v716, %v712
  %v761 = vpack.c.b16 %v717, %v713
  %v762 = vpack.c.b16 %v722, %v718
  %v763 = vpack.c.b16 %v723, %v719
  %v764 = vpack.c.b16 %v724, %v720
  %v765 = vpack.c.b16 %v725, %v721
  %v766 = vpack.c.b16 %v730, %v726
  %v767 = vpack.c.b16 %v731, %v727
  %v768 = vpack.c.b16 %v732, %v728
  %v769 = vpack.c.b16 %v733, %v729
  %v770 = vpack.c.b16 %v738, %v734
  %v771 = vpack.c.b16 %v739, %v735
  %v772 = vpack.c.b16 %v740, %v736
  %v773 = vpack.c.b16 %v741, %v737
  %806 = vmatprep.subr.bf16.mxu0 %v743
  %807 = vmatpush1.bf16.msra.mxu0 %v742
  %808 = vmatprep.subr.bf16.mxu0 %v747
  %809 = vmatpush1.bf16.msra.mxu0 %v746
  %810 = vmatprep.subr.bf16.mxu0 %v751
  %811 = vmatpush1.bf16.msra.mxu0 %v750
  %812 = vmatprep.subr.bf16.mxu0 %v755
  %813 = vmatpush1.bf16.msra.mxu0 %v754
  %814 = vmatprep.subr.bf16.mxu0 %v759
  %815 = vmatpush1.bf16.msra.mxu0 %v758
  %816 = vmatprep.subr.bf16.mxu0 %v763
  %817 = vmatpush1.bf16.msra.mxu0 %v762
  %818 = vmatprep.subr.bf16.mxu0 %v767
  %819 = vmatpush1.bf16.msra.mxu0 %v766
  %820 = vmatprep.subr.bf16.mxu0 %v771
  %821 = vmatpush1.bf16.msra.mxu0 %v770
  %822 = vmatprep.subr.bf16.mxu0 0
  %823 = vmatpush1.bf16.msra.mxu0 0
  %824 = vmatprep.subr.bf16.mxu0 0
  %825 = vmatpush1.bf16.msra.mxu0 0
  %826 = vmatprep.subr.bf16.mxu0 0
  %827 = vmatpush1.bf16.msra.mxu0 0
  %828 = vmatprep.subr.bf16.mxu0 0
  %829 = vmatpush1.bf16.msra.mxu0 0
  %830 = vmatprep.subr.bf16.mxu0 0
  %831 = vmatpush1.bf16.msra.mxu0 0
  %832 = vmatprep.subr.bf16.mxu0 0
  %833 = vmatpush1.bf16.msra.mxu0 0
  %834 = vmatprep.subr.bf16.mxu0 0
  %835 = vmatpush1.bf16.msra.mxu0 0
  %836 = vmatprep.subr.bf16.mxu0 0
  %837 = vmatpush1.bf16.msra.mxu0 0
  %838 = vmatprep.mubr.bf16.mxu0 0
  %839 = vmatmul.mubr.bf16.gmra.mrb[0].mxu0 %v645
  %v840 = vpop.f32.mrb[0].mxu0
  %v841 = vadd.f32 0.0, %v840
  %v842 = vpop.f32.mrb[0].mxu0
  %v843 = vadd.f32 0.0, %v842
  %v844 = vpop.f32.mrb[0].mxu0
  %v845 = vadd.f32 0.0, %v844
  %v846 = vpop.f32.mrb[0].mxu0
  %v847 = vadd.f32 0.0, %v846
  %848 = vdwg.mxu0
  %849 = vmatprep.subr.bf16.mxu0 %v745
  %850 = vmatpush1.bf16.msra.mxu0 %v744
  %851 = vmatprep.subr.bf16.mxu0 %v749
  %852 = vmatpush1.bf16.msra.mxu0 %v748
  %853 = vmatprep.subr.bf16.mxu0 %v753
  %854 = vmatpush1.bf16.msra.mxu0 %v752
  %855 = vmatprep.subr.bf16.mxu0 %v757
  %856 = vmatpush1.bf16.msra.mxu0 %v756
  %857 = vmatprep.subr.bf16.mxu0 %v761
  %858 = vmatpush1.bf16.msra.mxu0 %v760
  %859 = vmatprep.subr.bf16.mxu0 %v765
  %860 = vmatpush1.bf16.msra.mxu0 %v764
  %861 = vmatprep.subr.bf16.mxu0 %v769
  %862 = vmatpush1.bf16.msra.mxu0 %v768
  %863 = vmatprep.subr.bf16.mxu0 %v773
  %864 = vmatpush1.bf16.msra.mxu0 %v772
  %865 = vmatprep.subr.bf16.mxu0 0
  %866 = vmatpush1.bf16.msra.mxu0 0
  %867 = vmatprep.subr.bf16.mxu0 0
  %868 = vmatpush1.bf16.msra.mxu0 0
  %869 = vmatprep.subr.bf16.mxu0 0
  %870 = vmatpush1.bf16.msra.mxu0 0
  %871 = vmatprep.subr.bf16.mxu0 0
  %872 = vmatpush1.bf16.msra.mxu0 0
  %873 = vmatprep.subr.bf16.mxu0 0
  %874 = vmatpush1.bf16.msra.mxu0 0
  %875 = vmatprep.subr.bf16.mxu0 0
  %876 = vmatpush1.bf16.msra.mxu0 0
  %877 = vmatprep.subr.bf16.mxu0 0
  %878 = vmatpush1.bf16.msra.mxu0 0
  %879 = vmatprep.subr.bf16.mxu0 0
  %880 = vmatpush1.bf16.msra.mxu0 0
  %881 = vmatprep.mubr.bf16.mxu0 0
  %882 = vmatmul.mubr.bf16.gmra.mrb[0].mxu0 %v645
  %v883 = vpop.f32.mrb[0].mxu0
  %v884 = vadd.f32 0.0, %v883
  %v885 = vpop.f32.mrb[0].mxu0
  %v886 = vadd.f32 0.0, %v885
  %v887 = vpop.f32.mrb[0].mxu0
  %v888 = vadd.f32 0.0, %v887
  %v889 = vpop.f32.mrb[0].mxu0
  %v890 = vadd.f32 0.0, %v889
  %891 = vdwg.mxu0
  %v892 = vadd.f32 %v637, %v841
  %v893 = vadd.f32 %v638, %v843
  %v894 = vadd.f32 %v639, %v884
  %v895 = vadd.f32 %v640, %v886
  %v896 = vadd.f32 %v641, %v845
  %v897 = vadd.f32 %v642, %v847
  %v898 = vadd.f32 %v643, %v888
  %v899 = vadd.f32 %v644, %v890
  %v900 = vxor.u32 %v892, 2147483648
  %v901 = vxor.u32 %v896, 2147483648
  %v902 = vmul.f32 %v900, 1.442695
  %v903 = vpow.pop %v902
  %v904 = vmul.f32 %v901, 1.442695
  %v905 = vpow.pop %v904
  %v906 = vadd.f32 %v903, 1.0
  %v907 = vadd.f32 %v905, 1.0
  %v908 = vrcp.pop %v906
  %v909 = vmul.f32 1.0, %v908
  %v910 = vrcp.pop %v907
  %v911 = vmul.f32 1.0, %v910
  %v912 = vxor.u32 %v893, 2147483648
  %v913 = vxor.u32 %v897, 2147483648
  %v914 = vmul.f32 %v912, 1.442695
  %v915 = vpow.pop %v914
  %v916 = vmul.f32 %v913, 1.442695
  %v917 = vpow.pop %v916
  %v918 = vadd.f32 %v915, 1.0
  %v919 = vadd.f32 %v917, 1.0
  %v920 = vrcp.pop %v918
  %v921 = vmul.f32 1.0, %v920
  %v922 = vrcp.pop %v919
  %v923 = vmul.f32 1.0, %v922
  %v924 = vtanh.pop %v894
  %v925 = vtanh.pop %v898
  %v926 = vxor.u32 %v895, 2147483648
  %v927 = vxor.u32 %v899, 2147483648
  %v928 = vmul.f32 %v926, 1.442695
  %v929 = vpow.pop %v928
  %v930 = vmul.f32 %v927, 1.442695
  %v931 = vpow.pop %v930
  %v932 = vadd.f32 %v929, 1.0
  %v933 = vadd.f32 %v931, 1.0
  %v934 = vrcp.pop %v932
  %v935 = vmul.f32 1.0, %v934
  %v936 = vrcp.pop %v933
  %v937 = vmul.f32 1.0, %v936
  %v938 = vmul.f32 %v921, %v632
  %v939 = vmul.f32 %v923, %v633
  %v940 = vmul.f32 %v909, %v924
  %v941 = vmul.f32 %v911, %v925
  %v942 = vadd.f32 %v938, %v940
  %v943 = vadd.f32 %v939, %v941
  %v944 = vtanh.pop %v942
  %v945 = vtanh.pop %v943
  %v946 = vmul.f32 %v935, %v944
  %v947 = vmul.f32 %v937, %v945
  %v948 = vpack.c.bf16 %v947, %v946
  %949 = vst [vmem:[#allocation4] sm:$0xff] %v948
  %s950 = smul.u32 2, 4
  %s951 = smul.addr %s950, 8
  %s952 = scalar_lea.vmem [#allocation5], %s951
  %v953 = vld [vmem:[%s952] sm:$0xff]
  %v954 = vld [vmem:[%s952 + $0x8] sm:$0xff]
  %v955 = vld [vmem:[%s952 + $0x10] sm:$0xff]
  %v956 = vld [vmem:[%s952 + $0x18] sm:$0xff]
  %v957 = vld [vmem:[%s952 + $0x20] sm:$0xff]
  %v958 = vld [vmem:[%s952 + $0x28] sm:$0xff]
  %v959 = vld [vmem:[%s952 + $0x30] sm:$0xff]
  %v960 = vld [vmem:[%s952 + $0x38] sm:$0xff]
  %961 = vmatprep.subr.bf16.mxu0 %v743
  %962 = vmatpush1.bf16.msra.mxu0 %v742
  %963 = vmatprep.subr.bf16.mxu0 %v747
  %964 = vmatpush1.bf16.msra.mxu0 %v746
  %965 = vmatprep.subr.bf16.mxu0 %v751
  %966 = vmatpush1.bf16.msra.mxu0 %v750
  %967 = vmatprep.subr.bf16.mxu0 %v755
  %968 = vmatpush1.bf16.msra.mxu0 %v754
  %969 = vmatprep.subr.bf16.mxu0 %v759
  %970 = vmatpush1.bf16.msra.mxu0 %v758
  %971 = vmatprep.subr.bf16.mxu0 %v763
  %972 = vmatpush1.bf16.msra.mxu0 %v762
  %973 = vmatprep.subr.bf16.mxu0 %v767
  %974 = vmatpush1.bf16.msra.mxu0 %v766
  %975 = vmatprep.subr.bf16.mxu0 %v771
  %976 = vmatpush1.bf16.msra.mxu0 %v770
  %977 = vmatprep.subr.bf16.mxu0 0
  %978 = vmatpush1.bf16.msra.mxu0 0
  %979 = vmatprep.subr.bf16.mxu0 0
  %980 = vmatpush1.bf16.msra.mxu0 0
  %981 = vmatprep.subr.bf16.mxu0 0
  %982 = vmatpush1.bf16.msra.mxu0 0
  %983 = vmatprep.subr.bf16.mxu0 0
  %984 = vmatpush1.bf16.msra.mxu0 0
  %985 = vmatprep.subr.bf16.mxu0 0
  %986 = vmatpush1.bf16.msra.mxu0 0
  %987 = vmatprep.subr.bf16.mxu0 0
  %988 = vmatpush1.bf16.msra.mxu0 0
  %989 = vmatprep.subr.bf16.mxu0 0
  %990 = vmatpush1.bf16.msra.mxu0 0
  %991 = vmatprep.subr.bf16.mxu0 0
  %992 = vmatpush1.bf16.msra.mxu0 0
  %993 = vmatprep.mubr.bf16.mxu0 0
  %994 = vmatmul.mubr.bf16.gmra.mrb[0].mxu0 %v948
  %v995 = vpop.f32.mrb[0].mxu0
  %v996 = vadd.f32 0.0, %v995
  %v997 = vpop.f32.mrb[0].mxu0
  %v998 = vadd.f32 0.0, %v997
  %v999 = vpop.f32.mrb[0].mxu0
  %v1000 = vadd.f32 0.0, %v999
  %v1001 = vpop.f32.mrb[0].mxu0
  %v1002 = vadd.f32 0.0, %v1001
  %1003 = vdwg.mxu0
  %1004 = vmatprep.subr.bf16.mxu0 %v745
  %1005 = vmatpush1.bf16.msra.mxu0 %v744
  %1006 = vmatprep.subr.bf16.mxu0 %v749
  %1007 = vmatpush1.bf16.msra.mxu0 %v748
  %1008 = vmatprep.subr.bf16.mxu0 %v753
  %1009 = vmatpush1.bf16.msra.mxu0 %v752
  %1010 = vmatprep.subr.bf16.mxu0 %v757
  %1011 = vmatpush1.bf16.msra.mxu0 %v756
  %1012 = vmatprep.subr.bf16.mxu0 %v761
  %1013 = vmatpush1.bf16.msra.mxu0 %v760
  %1014 = vmatprep.subr.bf16.mxu0 %v765
  %1015 = vmatpush1.bf16.msra.mxu0 %v764
  %1016 = vmatprep.subr.bf16.mxu0 %v769
  %1017 = vmatpush1.bf16.msra.mxu0 %v768
  %1018 = vmatprep.subr.bf16.mxu0 %v773
  %1019 = vmatpush1.bf16.msra.mxu0 %v772
  %1020 = vmatprep.subr.bf16.mxu0 0
  %1021 = vmatpush1.bf16.msra.mxu0 0
  %1022 = vmatprep.subr.bf16.mxu0 0
  %1023 = vmatpush1.bf16.msra.mxu0 0
  %1024 = vmatprep.subr.bf16.mxu0 0
  %1025 = vmatpush1.bf16.msra.mxu0 0
  %1026 = vmatprep.subr.bf16.mxu0 0
  %1027 = vmatpush1.bf16.msra.mxu0 0
  %1028 = vmatprep.subr.bf16.mxu0 0
  %1029 = vmatpush1.bf16.msra.mxu0 0
  %1030 = vmatprep.subr.bf16.mxu0 0
  %1031 = vmatpush1.bf16.msra.mxu0 0
  %1032 = vmatprep.subr.bf16.mxu0 0
  %1033 = vmatpush1.bf16.msra.mxu0 0
  %1034 = vmatprep.subr.bf16.mxu0 0
  %1035 = vmatpush1.bf16.msra.mxu0 0
  %1036 = vmatprep.mubr.bf16.mxu0 0
  %1037 = vmatmul.mubr.bf16.gmra.mrb[0].mxu0 %v948
  %v1038 = vpop.f32.mrb[0].mxu0
  %v1039 = vadd.f32 0.0, %v1038
  %v1040 = vpop.f32.mrb[0].mxu0
  %v1041 = vadd.f32 0.0, %v1040
  %v1042 = vpop.f32.mrb[0].mxu0
  %v1043 = vadd.f32 0.0, %v1042
  %v1044 = vpop.f32.mrb[0].mxu0
  %v1045 = vadd.f32 0.0, %v1044
  %1046 = vdwg.mxu0
  %v1047 = vadd.f32 %v953, %v996
  %v1048 = vadd.f32 %v954, %v998
  %v1049 = vadd.f32 %v955, %v1039
  %v1050 = vadd.f32 %v956, %v1041
  %v1051 = vadd.f32 %v957, %v1000
  %v1052 = vadd.f32 %v958, %v1002
  %v1053 = vadd.f32 %v959, %v1043
  %v1054 = vadd.f32 %v960, %v1045
  %v1055 = vxor.u32 %v1047, 2147483648
  %v1056 = vxor.u32 %v1051, 2147483648
  %v1057 = vmul.f32 %v1055, 1.442695
  %v1058 = vpow.pop %v1057
  %v1059 = vmul.f32 %v1056, 1.442695
  %v1060 = vpow.pop %v1059
  %v1061 = vadd.f32 %v1058, 1.0
  %v1062 = vadd.f32 %v1060, 1.0
  %v1063 = vrcp.pop %v1061
  %v1064 = vmul.f32 1.0, %v1063
  %v1065 = vrcp.pop %v1062
  %v1066 = vmul.f32 1.0, %v1065
  %v1067 = vxor.u32 %v1048, 2147483648
  %v1068 = vxor.u32 %v1052, 2147483648
  %v1069 = vmul.f32 %v1067, 1.442695
  %v1070 = vpow.pop %v1069
  %v1071 = vmul.f32 %v1068, 1.442695
  %v1072 = vpow.pop %v1071
  %v1073 = vadd.f32 %v1070, 1.0
  %v1074 = vadd.f32 %v1072, 1.0
  %v1075 = vrcp.pop %v1073
  %v1076 = vmul.f32 1.0, %v1075
  %v1077 = vrcp.pop %v1074
  %v1078 = vmul.f32 1.0, %v1077
  %v1079 = vtanh.pop %v1049
  %v1080 = vtanh.pop %v1053
  %v1081 = vxor.u32 %v1050, 2147483648
  %v1082 = vxor.u32 %v1054, 2147483648
  %v1083 = vmul.f32 %v1081, 1.442695
  %v1084 = vpow.pop %v1083
  %v1085 = vmul.f32 %v1082, 1.442695
  %v1086 = vpow.pop %v1085
  %v1087 = vadd.f32 %v1084, 1.0
  %v1088 = vadd.f32 %v1086, 1.0
  %v1089 = vrcp.pop %v1087
  %v1090 = vmul.f32 1.0, %v1089
  %v1091 = vrcp.pop %v1088
  %v1092 = vmul.f32 1.0, %v1091
  %v1093 = vmul.f32 %v1076, %v942
  %v1094 = vmul.f32 %v1078, %v943
  %v1095 = vmul.f32 %v1064, %v1079
  %v1096 = vmul.f32 %v1066, %v1080
  %v1097 = vadd.f32 %v1093, %v1095
  %v1098 = vadd.f32 %v1094, %v1096
  %v1099 = vtanh.pop %v1097
  %v1100 = vtanh.pop %v1098
  %v1101 = vmul.f32 %v1090, %v1099
  %v1102 = vmul.f32 %v1092, %v1100
  %v1103 = vpack.c.bf16 %v1102, %v1101
  %s1104 = scalar_lea.vmem [#allocation4], 8
  %1105 = vst [vmem:[%s1104] sm:$0xff] %v1103
  %s1106 = smul.u32 4, 4
  %s1107 = smul.addr %s1106, 8
  %s1108 = scalar_lea.vmem [#allocation5], %s1107
  %v1109 = vld [vmem:[%s1108] sm:$0xff]
  %v1110 = vld [vmem:[%s1108 + $0x8] sm:$0xff]
  %v1111 = vld [vmem:[%s1108 + $0x10] sm:$0xff]
  %v1112 = vld [vmem:[%s1108 + $0x18] sm:$0xff]
  %v1113 = vld [vmem:[%s1108 + $0x20] sm:$0xff]
  %v1114 = vld [vmem:[%s1108 + $0x28] sm:$0xff]
  %v1115 = vld [vmem:[%s1108 + $0x30] sm:$0xff]
  %v1116 = vld [vmem:[%s1108 + $0x38] sm:$0xff]
  %1117 = vmatprep.subr.bf16.mxu0 %v743
  %1118 = vmatpush1.bf16.msra.mxu0 %v742
  %1119 = vmatprep.subr.bf16.mxu0 %v747
  %1120 = vmatpush1.bf16.msra.mxu0 %v746
  %1121 = vmatprep.subr.bf16.mxu0 %v751
  %1122 = vmatpush1.bf16.msra.mxu0 %v750
  %1123 = vmatprep.subr.bf16.mxu0 %v755
  %1124 = vmatpush1.bf16.msra.mxu0 %v754
  %1125 = vmatprep.subr.bf16.mxu0 %v759
  %1126 = vmatpush1.bf16.msra.mxu0 %v758
  %1127 = vmatprep.subr.bf16.mxu0 %v763
  %1128 = vmatpush1.bf16.msra.mxu0 %v762
  %1129 = vmatprep.subr.bf16.mxu0 %v767
  %1130 = vmatpush1.bf16.msra.mxu0 %v766
  %1131 = vmatprep.subr.bf16.mxu0 %v771
  %1132 = vmatpush1.bf16.msra.mxu0 %v770
  %1133 = vmatprep.subr.bf16.mxu0 0
  %1134 = vmatpush1.bf16.msra.mxu0 0
  %1135 = vmatprep.subr.bf16.mxu0 0
  %1136 = vmatpush1.bf16.msra.mxu0 0
  %1137 = vmatprep.subr.bf16.mxu0 0
  %1138 = vmatpush1.bf16.msra.mxu0 0
  %1139 = vmatprep.subr.bf16.mxu0 0
  %1140 = vmatpush1.bf16.msra.mxu0 0
  %1141 = vmatprep.subr.bf16.mxu0 0
  %1142 = vmatpush1.bf16.msra.mxu0 0
  %1143 = vmatprep.subr.bf16.mxu0 0
  %1144 = vmatpush1.bf16.msra.mxu0 0
  %1145 = vmatprep.subr.bf16.mxu0 0
  %1146 = vmatpush1.bf16.msra.mxu0 0
  %1147 = vmatprep.subr.bf16.mxu0 0
  %1148 = vmatpush1.bf16.msra.mxu0 0
  %1149 = vmatprep.mubr.bf16.mxu0 0
  %1150 = vmatmul.mubr.bf16.gmra.mrb[0].mxu0 %v1103
  %v1151 = vpop.f32.mrb[0].mxu0
  %v1152 = vadd.f32 0.0, %v1151
  %v1153 = vpop.f32.mrb[0].mxu0
  %v1154 = vadd.f32 0.0, %v1153
  %v1155 = vpop.f32.mrb[0].mxu0
  %v1156 = vadd.f32 0.0, %v1155
  %v1157 = vpop.f32.mrb[0].mxu0
  %v1158 = vadd.f32 0.0, %v1157
  %1159 = vdwg.mxu0
  %1160 = vmatprep.subr.bf16.mxu0 %v745
  %1161 = vmatpush1.bf16.msra.mxu0 %v744
  %1162 = vmatprep.subr.bf16.mxu0 %v749
  %1163 = vmatpush1.bf16.msra.mxu0 %v748
  %1164 = vmatprep.subr.bf16.mxu0 %v753
  %1165 = vmatpush1.bf16.msra.mxu0 %v752
  %1166 = vmatprep.subr.bf16.mxu0 %v757
  %1167 = vmatpush1.bf16.msra.mxu0 %v756
  %1168 = vmatprep.subr.bf16.mxu0 %v761
  %1169 = vmatpush1.bf16.msra.mxu0 %v760
  %1170 = vmatprep.subr.bf16.mxu0 %v765
  %1171 = vmatpush1.bf16.msra.mxu0 %v764
  %1172 = vmatprep.subr.bf16.mxu0 %v769
  %1173 = vmatpush1.bf16.msra.mxu0 %v768
  %1174 = vmatprep.subr.bf16.mxu0 %v773
  %1175 = vmatpush1.bf16.msra.mxu0 %v772
  %1176 = vmatprep.subr.bf16.mxu0 0
  %1177 = vmatpush1.bf16.msra.mxu0 0
  %1178 = vmatprep.subr.bf16.mxu0 0
  %1179 = vmatpush1.bf16.msra.mxu0 0
  %1180 = vmatprep.subr.bf16.mxu0 0
  %1181 = vmatpush1.bf16.msra.mxu0 0
  %1182 = vmatprep.subr.bf16.mxu0 0
  %1183 = vmatpush1.bf16.msra.mxu0 0
  %1184 = vmatprep.subr.bf16.mxu0 0
  %1185 = vmatpush1.bf16.msra.mxu0 0
  %1186 = vmatprep.subr.bf16.mxu0 0
  %1187 = vmatpush1.bf16.msra.mxu0 0
  %1188 = vmatprep.subr.bf16.mxu0 0
  %1189 = vmatpush1.bf16.msra.mxu0 0
  %1190 = vmatprep.subr.bf16.mxu0 0
  %1191 = vmatpush1.bf16.msra.mxu0 0
  %1192 = vmatprep.mubr.bf16.mxu0 0
  %1193 = vmatmul.mubr.bf16.gmra.mrb[0].mxu0 %v1103
  %v1194 = vpop.f32.mrb[0].mxu0
  %v1195 = vadd.f32 0.0, %v1194
  %v1196 = vpop.f32.mrb[0].mxu0
  %v1197 = vadd.f32 0.0, %v1196
  %v1198 = vpop.f32.mrb[0].mxu0
  %v1199 = vadd.f32 0.0, %v1198
  %v1200 = vpop.f32.mrb[0].mxu0
  %v1201 = vadd.f32 0.0, %v1200
  %1202 = vdwg.mxu0
  %v1203 = vadd.f32 %v1109, %v1152
  %v1204 = vadd.f32 %v1110, %v1154
  %v1205 = vadd.f32 %v1111, %v1195
  %v1206 = vadd.f32 %v1112, %v1197
  %v1207 = vadd.f32 %v1113, %v1156
  %v1208 = vadd.f32 %v1114, %v1158
  %v1209 = vadd.f32 %v1115, %v1199
  %v1210 = vadd.f32 %v1116, %v1201
  %v1211 = vxor.u32 %v1203, 2147483648
  %v1212 = vxor.u32 %v1207, 2147483648
  %v1213 = vmul.f32 %v1211, 1.442695
  %v1214 = vpow.pop %v1213
  %v1215 = vmul.f32 %v1212, 1.442695
  %v1216 = vpow.pop %v1215
  %v1217 = vadd.f32 %v1214, 1.0
  %v1218 = vadd.f32 %v1216, 1.0
  %v1219 = vrcp.pop %v1217
  %v1220 = vmul.f32 1.0, %v1219
  %v1221 = vrcp.pop %v1218
  %v1222 = vmul.f32 1.0, %v1221
  %v1223 = vxor.u32 %v1204, 2147483648
  %v1224 = vxor.u32 %v1208, 2147483648
  %v1225 = vmul.f32 %v1223, 1.442695
  %v1226 = vpow.pop %v1225
  %v1227 = vmul.f32 %v1224, 1.442695
  %v1228 = vpow.pop %v1227
  %v1229 = vadd.f32 %v1226, 1.0
  %v1230 = vadd.f32 %v1228, 1.0
  %v1231 = vrcp.pop %v1229
  %v1232 = vmul.f32 1.0, %v1231
  %v1233 = vrcp.pop %v1230
  %v1234 = vmul.f32 1.0, %v1233
  %v1235 = vtanh.pop %v1205
  %v1236 = vtanh.pop %v1209
  %v1237 = vxor.u32 %v1206, 2147483648
  %v1238 = vxor.u32 %v1210, 2147483648
  %v1239 = vmul.f32 %v1237, 1.442695
  %v1240 = vpow.pop %v1239
  %v1241 = vmul.f32 %v1238, 1.442695
  %v1242 = vpow.pop %v1241
  %v1243 = vadd.f32 %v1240, 1.0
  %v1244 = vadd.f32 %v1242, 1.0
  %v1245 = vrcp.pop %v1243
  %v1246 = vmul.f32 1.0, %v1245
  %v1247 = vrcp.pop %v1244
  %v1248 = vmul.f32 1.0, %v1247
  %v1249 = vmul.f32 %v1232, %v1097
  %v1250 = vmul.f32 %v1234, %v1098
  %v1251 = vmul.f32 %v1220, %v1235
  %v1252 = vmul.f32 %v1222, %v1236
  %v1253 = vadd.f32 %v1249, %v1251
  %v1254 = vadd.f32 %v1250, %v1252
  %v1255 = vtanh.pop %v1253
  %v1256 = vtanh.pop %v1254
  %v1257 = vmul.f32 %v1246, %v1255
  %v1258 = vmul.f32 %v1248, %v1256
  %v1259 = vpack.c.bf16 %v1258, %v1257
  %s1260 = scalar_lea.vmem [#allocation4], 16
  %1261 = vst [vmem:[%s1260] sm:$0xff] %v1259
  %s1262 = smul.u32 6, 4
  %s1263 = smul.addr %s1262, 8
  %s1264 = scalar_lea.vmem [#allocation5], %s1263
  %v1265 = vld [vmem:[%s1264] sm:$0xff]
  %v1266 = vld [vmem:[%s1264 + $0x8] sm:$0xff]
  %v1267 = vld [vmem:[%s1264 + $0x10] sm:$0xff]
  %v1268 = vld [vmem:[%s1264 + $0x18] sm:$0xff]
  %v1269 = vld [vmem:[%s1264 + $0x20] sm:$0xff]
  %v1270 = vld [vmem:[%s1264 + $0x28] sm:$0xff]
  %v1271 = vld [vmem:[%s1264 + $0x30] sm:$0xff]
  %v1272 = vld [vmem:[%s1264 + $0x38] sm:$0xff]
  %1273 = vmatprep.subr.bf16.mxu0 %v743
  %1274 = vmatpush1.bf16.msra.mxu0 %v742
  %1275 = vmatprep.subr.bf16.mxu0 %v747
  %1276 = vmatpush1.bf16.msra.mxu0 %v746
  %1277 = vmatprep.subr.bf16.mxu0 %v751
  %1278 = vmatpush1.bf16.msra.mxu0 %v750
  %1279 = vmatprep.subr.bf16.mxu0 %v755
  %1280 = vmatpush1.bf16.msra.mxu0 %v754
  %1281 = vmatprep.subr.bf16.mxu0 %v759
  %1282 = vmatpush1.bf16.msra.mxu0 %v758
  %1283 = vmatprep.subr.bf16.mxu0 %v763
  %1284 = vmatpush1.bf16.msra.mxu0 %v762
  %1285 = vmatprep.subr.bf16.mxu0 %v767
  %1286 = vmatpush1.bf16.msra.mxu0 %v766
  %1287 = vmatprep.subr.bf16.mxu0 %v771
  %1288 = vmatpush1.bf16.msra.mxu0 %v770
  %1289 = vmatprep.subr.bf16.mxu0 0
  %1290 = vmatpush1.bf16.msra.mxu0 0
  %1291 = vmatprep.subr.bf16.mxu0 0
  %1292 = vmatpush1.bf16.msra.mxu0 0
  %1293 = vmatprep.subr.bf16.mxu0 0
  %1294 = vmatpush1.bf16.msra.mxu0 0
  %1295 = vmatprep.subr.bf16.mxu0 0
  %1296 = vmatpush1.bf16.msra.mxu0 0
  %1297 = vmatprep.subr.bf16.mxu0 0
  %1298 = vmatpush1.bf16.msra.mxu0 0
  %1299 = vmatprep.subr.bf16.mxu0 0
  %1300 = vmatpush1.bf16.msra.mxu0 0
  %1301 = vmatprep.subr.bf16.mxu0 0
  %1302 = vmatpush1.bf16.msra.mxu0 0
  %1303 = vmatprep.subr.bf16.mxu0 0
  %1304 = vmatpush1.bf16.msra.mxu0 0
  %1305 = vmatprep.mubr.bf16.mxu0 0
  %1306 = vmatmul.mubr.bf16.gmra.mrb[0].mxu0 %v1259
  %v1307 = vpop.f32.mrb[0].mxu0
  %v1308 = vadd.f32 0.0, %v1307
  %v1309 = vpop.f32.mrb[0].mxu0
  %v1310 = vadd.f32 0.0, %v1309
  %v1311 = vpop.f32.mrb[0].mxu0
  %v1312 = vadd.f32 0.0, %v1311
  %v1313 = vpop.f32.mrb[0].mxu0
  %v1314 = vadd.f32 0.0, %v1313
  %1315 = vdwg.mxu0
  %1316 = vmatprep.subr.bf16.mxu0 %v745
  %1317 = vmatpush1.bf16.msra.mxu0 %v744
  %1318 = vmatprep.subr.bf16.mxu0 %v749
  %1319 = vmatpush1.bf16.msra.mxu0 %v748
  %1320 = vmatprep.subr.bf16.mxu0 %v753
  %1321 = vmatpush1.bf16.msra.mxu0 %v752
  %1322 = vmatprep.subr.bf16.mxu0 %v757
  %1323 = vmatpush1.bf16.msra.mxu0 %v756
  %1324 = vmatprep.subr.bf16.mxu0 %v761
  %1325 = vmatpush1.bf16.msra.mxu0 %v760
  %1326 = vmatprep.subr.bf16.mxu0 %v765
  %1327 = vmatpush1.bf16.msra.mxu0 %v764
  %1328 = vmatprep.subr.bf16.mxu0 %v769
  %1329 = vmatpush1.bf16.msra.mxu0 %v768
  %1330 = vmatprep.subr.bf16.mxu0 %v773
  %1331 = vmatpush1.bf16.msra.mxu0 %v772
  %1332 = vmatprep.subr.bf16.mxu0 0
  %1333 = vmatpush1.bf16.msra.mxu0 0
  %1334 = vmatprep.subr.bf16.mxu0 0
  %1335 = vmatpush1.bf16.msra.mxu0 0
  %1336 = vmatprep.subr.bf16.mxu0 0
  %1337 = vmatpush1.bf16.msra.mxu0 0
  %1338 = vmatprep.subr.bf16.mxu0 0
  %1339 = vmatpush1.bf16.msra.mxu0 0
  %1340 = vmatprep.subr.bf16.mxu0 0
  %1341 = vmatpush1.bf16.msra.mxu0 0
  %1342 = vmatprep.subr.bf16.mxu0 0
  %1343 = vmatpush1.bf16.msra.mxu0 0
  %1344 = vmatprep.subr.bf16.mxu0 0
  %1345 = vmatpush1.bf16.msra.mxu0 0
  %1346 = vmatprep.subr.bf16.mxu0 0
  %1347 = vmatpush1.bf16.msra.mxu0 0
  %1348 = vmatprep.mubr.bf16.mxu0 0
  %1349 = vmatmul.mubr.bf16.gmra.mrb[0].mxu0 %v1259
  %v1350 = vpop.f32.mrb[0].mxu0
  %v1351 = vadd.f32 0.0, %v1350
  %v1352 = vpop.f32.mrb[0].mxu0
  %v1353 = vadd.f32 0.0, %v1352
  %v1354 = vpop.f32.mrb[0].mxu0
  %v1355 = vadd.f32 0.0, %v1354
  %v1356 = vpop.f32.mrb[0].mxu0
  %v1357 = vadd.f32 0.0, %v1356
  %1358 = vdwg.mxu0
  %v1359 = vadd.f32 %v1265, %v1308
  %v1360 = vadd.f32 %v1266, %v1310
  %v1361 = vadd.f32 %v1267, %v1351
  %v1362 = vadd.f32 %v1268, %v1353
  %v1363 = vadd.f32 %v1269, %v1312
  %v1364 = vadd.f32 %v1270, %v1314
  %v1365 = vadd.f32 %v1271, %v1355
  %v1366 = vadd.f32 %v1272, %v1357
  %v1367 = vxor.u32 %v1359, 2147483648
  %v1368 = vxor.u32 %v1363, 2147483648
  %v1369 = vmul.f32 %v1367, 1.442695
  %v1370 = vpow.pop %v1369
  %v1371 = vmul.f32 %v1368, 1.442695
  %v1372 = vpow.pop %v1371
  %v1373 = vadd.f32 %v1370, 1.0
  %v1374 = vadd.f32 %v1372, 1.0
  %v1375 = vrcp.pop %v1373
  %v1376 = vmul.f32 1.0, %v1375
  %v1377 = vrcp.pop %v1374
  %v1378 = vmul.f32 1.0, %v1377
  %v1379 = vxor.u32 %v1360, 2147483648
  %v1380 = vxor.u32 %v1364, 2147483648
  %v1381 = vmul.f32 %v1379, 1.442695
  %v1382 = vpow.pop %v1381
  %v1383 = vmul.f32 %v1380, 1.442695
  %v1384 = vpow.pop %v1383
  %v1385 = vadd.f32 %v1382, 1.0
  %v1386 = vadd.f32 %v1384, 1.0
  %v1387 = vrcp.pop %v1385
  %v1388 = vmul.f32 1.0, %v1387
  %v1389 = vrcp.pop %v1386
  %v1390 = vmul.f32 1.0, %v1389
  %v1391 = vtanh.pop %v1361
  %v1392 = vtanh.pop %v1365
  %v1393 = vxor.u32 %v1362, 2147483648
  %v1394 = vxor.u32 %v1366, 2147483648
  %v1395 = vmul.f32 %v1393, 1.442695
  %v1396 = vpow.pop %v1395
  %v1397 = vmul.f32 %v1394, 1.442695
  %v1398 = vpow.pop %v1397
  %v1399 = vadd.f32 %v1396, 1.0
  %v1400 = vadd.f32 %v1398, 1.0
  %v1401 = vrcp.pop %v1399
  %v1402 = vmul.f32 1.0, %v1401
  %v1403 = vrcp.pop %v1400
  %v1404 = vmul.f32 1.0, %v1403
  %v1405 = vmul.f32 %v1388, %v1253
  %v1406 = vmul.f32 %v1390, %v1254
  %v1407 = vmul.f32 %v1376, %v1391
  %v1408 = vmul.f32 %v1378, %v1392
  %v1409 = vadd.f32 %v1405, %v1407
  %v1410 = vadd.f32 %v1406, %v1408
  %v1411 = vtanh.pop %v1409
  %v1412 = vtanh.pop %v1410
  %v1413 = vmul.f32 %v1402, %v1411
  %v1414 = vmul.f32 %v1404, %v1412
  %v1415 = vpack.c.bf16 %v1414, %v1413
  %s1416 = scalar_lea.vmem [#allocation4], 24
  %1417 = vst [vmem:[%s1416] sm:$0xff] %v1415
  %s1418 = smul.u32 8, 4
  %s1419 = smul.addr %s1418, 8
  %s1420 = scalar_lea.vmem [#allocation5], %s1419
  %v1421 = vld [vmem:[%s1420] sm:$0xff]
  %v1422 = vld [vmem:[%s1420 + $0x8] sm:$0xff]
  %v1423 = vld [vmem:[%s1420 + $0x10] sm:$0xff]
  %v1424 = vld [vmem:[%s1420 + $0x18] sm:$0xff]
  %v1425 = vld [vmem:[%s1420 + $0x20] sm:$0xff]
  %v1426 = vld [vmem:[%s1420 + $0x28] sm:$0xff]
  %v1427 = vld [vmem:[%s1420 + $0x30] sm:$0xff]
  %v1428 = vld [vmem:[%s1420 + $0x38] sm:$0xff]
  %1429 = vmatprep.subr.bf16.mxu0 %v743
  %1430 = vmatpush1.bf16.msra.mxu0 %v742
  %1431 = vmatprep.subr.bf16.mxu0 %v747
  %1432 = vmatpush1.bf16.msra.mxu0 %v746
  %1433 = vmatprep.subr.bf16.mxu0 %v751
  %1434 = vmatpush1.bf16.msra.mxu0 %v750
  %1435 = vmatprep.subr.bf16.mxu0 %v755
  %1436 = vmatpush1.bf16.msra.mxu0 %v754
  %1437 = vmatprep.subr.bf16.mxu0 %v759
  %1438 = vmatpush1.bf16.msra.mxu0 %v758
  %1439 = vmatprep.subr.bf16.mxu0 %v763
  %1440 = vmatpush1.bf16.msra.mxu0 %v762
  %1441 = vmatprep.subr.bf16.mxu0 %v767
  %1442 = vmatpush1.bf16.msra.mxu0 %v766
  %1443 = vmatprep.subr.bf16.mxu0 %v771
  %1444 = vmatpush1.bf16.msra.mxu0 %v770
  %1445 = vmatprep.subr.bf16.mxu0 0
  %1446 = vmatpush1.bf16.msra.mxu0 0
  %1447 = vmatprep.subr.bf16.mxu0 0
  %1448 = vmatpush1.bf16.msra.mxu0 0
  %1449 = vmatprep.subr.bf16.mxu0 0
  %1450 = vmatpush1.bf16.msra.mxu0 0
  %1451 = vmatprep.subr.bf16.mxu0 0
  %1452 = vmatpush1.bf16.msra.mxu0 0
  %1453 = vmatprep.subr.bf16.mxu0 0
  %1454 = vmatpush1.bf16.msra.mxu0 0
  %1455 = vmatprep.subr.bf16.mxu0 0
  %1456 = vmatpush1.bf16.msra.mxu0 0
  %1457 = vmatprep.subr.bf16.mxu0 0
  %1458 = vmatpush1.bf16.msra.mxu0 0
  %1459 = vmatprep.subr.bf16.mxu0 0
  %1460 = vmatpush1.bf16.msra.mxu0 0
  %1461 = vmatprep.mubr.bf16.mxu0 0
  %1462 = vmatmul.mubr.bf16.gmra.mrb[0].mxu0 %v1415
  %v1463 = vpop.f32.mrb[0].mxu0
  %v1464 = vadd.f32 0.0, %v1463
  %v1465 = vpop.f32.mrb[0].mxu0
  %v1466 = vadd.f32 0.0, %v1465
  %v1467 = vpop.f32.mrb[0].mxu0
  %v1468 = vadd.f32 0.0, %v1467
  %v1469 = vpop.f32.mrb[0].mxu0
  %v1470 = vadd.f32 0.0, %v1469
  %1471 = vdwg.mxu0
  %1472 = vmatprep.subr.bf16.mxu0 %v745
  %1473 = vmatpush1.bf16.msra.mxu0 %v744
  %1474 = vmatprep.subr.bf16.mxu0 %v749
  %1475 = vmatpush1.bf16.msra.mxu0 %v748
  %1476 = vmatprep.subr.bf16.mxu0 %v753
  %1477 = vmatpush1.bf16.msra.mxu0 %v752
  %1478 = vmatprep.subr.bf16.mxu0 %v757
  %1479 = vmatpush1.bf16.msra.mxu0 %v756
  %1480 = vmatprep.subr.bf16.mxu0 %v761
  %1481 = vmatpush1.bf16.msra.mxu0 %v760
  %1482 = vmatprep.subr.bf16.mxu0 %v765
  %1483 = vmatpush1.bf16.msra.mxu0 %v764
  %1484 = vmatprep.subr.bf16.mxu0 %v769
  %1485 = vmatpush1.bf16.msra.mxu0 %v768
  %1486 = vmatprep.subr.bf16.mxu0 %v773
  %1487 = vmatpush1.bf16.msra.mxu0 %v772
  %1488 = vmatprep.subr.bf16.mxu0 0
  %1489 = vmatpush1.bf16.msra.mxu0 0
  %1490 = vmatprep.subr.bf16.mxu0 0
  %1491 = vmatpush1.bf16.msra.mxu0 0
  %1492 = vmatprep.subr.bf16.mxu0 0
  %1493 = vmatpush1.bf16.msra.mxu0 0
  %1494 = vmatprep.subr.bf16.mxu0 0
  %1495 = vmatpush1.bf16.msra.mxu0 0
  %1496 = vmatprep.subr.bf16.mxu0 0
  %1497 = vmatpush1.bf16.msra.mxu0 0
  %1498 = vmatprep.subr.bf16.mxu0 0
  %1499 = vmatpush1.bf16.msra.mxu0 0
  %1500 = vmatprep.subr.bf16.mxu0 0
  %1501 = vmatpush1.bf16.msra.mxu0 0
  %1502 = vmatprep.subr.bf16.mxu0 0
  %1503 = vmatpush1.bf16.msra.mxu0 0
  %1504 = vmatprep.mubr.bf16.mxu0 0
  %1505 = vmatmul.mubr.bf16.gmra.mrb[0].mxu0 %v1415
  %v1506 = vpop.f32.mrb[0].mxu0
  %v1507 = vadd.f32 0.0, %v1506
  %v1508 = vpop.f32.mrb[0].mxu0
  %v1509 = vadd.f32 0.0, %v1508
  %v1510 = vpop.f32.mrb[0].mxu0
  %v1511 = vadd.f32 0.0, %v1510
  %v1512 = vpop.f32.mrb[0].mxu0
  %v1513 = vadd.f32 0.0, %v1512
  %1514 = vdwg.mxu0
  %v1515 = vadd.f32 %v1421, %v1464
  %v1516 = vadd.f32 %v1422, %v1466
  %v1517 = vadd.f32 %v1423, %v1507
  %v1518 = vadd.f32 %v1424, %v1509
  %v1519 = vadd.f32 %v1425, %v1468
  %v1520 = vadd.f32 %v1426, %v1470
  %v1521 = vadd.f32 %v1427, %v1511
  %v1522 = vadd.f32 %v1428, %v1513
  %v1523 = vxor.u32 %v1515, 2147483648
  %v1524 = vxor.u32 %v1519, 2147483648
  %v1525 = vmul.f32 %v1523, 1.442695
  %v1526 = vpow.pop %v1525
  %v1527 = vmul.f32 %v1524, 1.442695
  %v1528 = vpow.pop %v1527
  %v1529 = vadd.f32 %v1526, 1.0
  %v1530 = vadd.f32 %v1528, 1.0
  %v1531 = vrcp.pop %v1529
  %v1532 = vmul.f32 1.0, %v1531
  %v1533 = vrcp.pop %v1530
  %v1534 = vmul.f32 1.0, %v1533
  %v1535 = vxor.u32 %v1516, 2147483648
  %v1536 = vxor.u32 %v1520, 2147483648
  %v1537 = vmul.f32 %v1535, 1.442695
  %v1538 = vpow.pop %v1537
  %v1539 = vmul.f32 %v1536, 1.442695
  %v1540 = vpow.pop %v1539
  %v1541 = vadd.f32 %v1538, 1.0
  %v1542 = vadd.f32 %v1540, 1.0
  %v1543 = vrcp.pop %v1541
  %v1544 = vmul.f32 1.0, %v1543
  %v1545 = vrcp.pop %v1542
  %v1546 = vmul.f32 1.0, %v1545
  %v1547 = vtanh.pop %v1517
  %v1548 = vtanh.pop %v1521
  %v1549 = vxor.u32 %v1518, 2147483648
  %v1550 = vxor.u32 %v1522, 2147483648
  %v1551 = vmul.f32 %v1549, 1.442695
  %v1552 = vpow.pop %v1551
  %v1553 = vmul.f32 %v1550, 1.442695
  %v1554 = vpow.pop %v1553
  %v1555 = vadd.f32 %v1552, 1.0
  %v1556 = vadd.f32 %v1554, 1.0
  %v1557 = vrcp.pop %v1555
  %v1558 = vmul.f32 1.0, %v1557
  %v1559 = vrcp.pop %v1556
  %v1560 = vmul.f32 1.0, %v1559
  %v1561 = vmul.f32 %v1544, %v1409
  %v1562 = vmul.f32 %v1546, %v1410
  %v1563 = vmul.f32 %v1532, %v1547
  %v1564 = vmul.f32 %v1534, %v1548
  %v1565 = vadd.f32 %v1561, %v1563
  %v1566 = vadd.f32 %v1562, %v1564
  %v1567 = vtanh.pop %v1565
  %v1568 = vtanh.pop %v1566
  %v1569 = vmul.f32 %v1558, %v1567
  %v1570 = vmul.f32 %v1560, %v1568
  %v1571 = vpack.c.bf16 %v1570, %v1569
  %s1572 = scalar_lea.vmem [#allocation4], 32
  %1573 = vst [vmem:[%s1572] sm:$0xff] %v1571
  %s1574 = smul.u32 10, 4
  %s1575 = smul.addr %s1574, 8
  %s1576 = scalar_lea.vmem [#allocation5], %s1575
  %v1577 = vld [vmem:[%s1576] sm:$0xff]
  %v1578 = vld [vmem:[%s1576 + $0x8] sm:$0xff]
  %v1579 = vld [vmem:[%s1576 + $0x10] sm:$0xff]
  %v1580 = vld [vmem:[%s1576 + $0x18] sm:$0xff]
  %v1581 = vld [vmem:[%s1576 + $0x20] sm:$0xff]
  %v1582 = vld [vmem:[%s1576 + $0x28] sm:$0xff]
  %v1583 = vld [vmem:[%s1576 + $0x30] sm:$0xff]
  %v1584 = vld [vmem:[%s1576 + $0x38] sm:$0xff]
  %1585 = vmatprep.subr.bf16.mxu0 %v743
  %1586 = vmatpush1.bf16.msra.mxu0 %v742
  %1587 = vmatprep.subr.bf16.mxu0 %v747
  %1588 = vmatpush1.bf16.msra.mxu0 %v746
  %1589 = vmatprep.subr.bf16.mxu0 %v751
  %1590 = vmatpush1.bf16.msra.mxu0 %v750
  %1591 = vmatprep.subr.bf16.mxu0 %v755
  %1592 = vmatpush1.bf16.msra.mxu0 %v754
  %1593 = vmatprep.subr.bf16.mxu0 %v759
  %1594 = vmatpush1.bf16.msra.mxu0 %v758
  %1595 = vmatprep.subr.bf16.mxu0 %v763
  %1596 = vmatpush1.bf16.msra.mxu0 %v762
  %1597 = vmatprep.subr.bf16.mxu0 %v767
  %1598 = vmatpush1.bf16.msra.mxu0 %v766
  %1599 = vmatprep.subr.bf16.mxu0 %v771
  %1600 = vmatpush1.bf16.msra.mxu0 %v770
  %1601 = vmatprep.subr.bf16.mxu0 0
  %1602 = vmatpush1.bf16.msra.mxu0 0
  %1603 = vmatprep.subr.bf16.mxu0 0
  %1604 = vmatpush1.bf16.msra.mxu0 0
  %1605 = vmatprep.subr.bf16.mxu0 0
  %1606 = vmatpush1.bf16.msra.mxu0 0
  %1607 = vmatprep.subr.bf16.mxu0 0
  %1608 = vmatpush1.bf16.msra.mxu0 0
  %1609 = vmatprep.subr.bf16.mxu0 0
  %1610 = vmatpush1.bf16.msra.mxu0 0
  %1611 = vmatprep.subr.bf16.mxu0 0
  %1612 = vmatpush1.bf16.msra.mxu0 0
  %1613 = vmatprep.subr.bf16.mxu0 0
  %1614 = vmatpush1.bf16.msra.mxu0 0
  %1615 = vmatprep.subr.bf16.mxu0 0
  %1616 = vmatpush1.bf16.msra.mxu0 0
  %1617 = vmatprep.mubr.bf16.mxu0 0
  %1618 = vmatmul.mubr.bf16.gmra.mrb[0].mxu0 %v1571
  %v1619 = vpop.f32.mrb[0].mxu0
  %v1620 = vadd.f32 0.0, %v1619
  %v1621 = vpop.f32.mrb[0].mxu0
  %v1622 = vadd.f32 0.0, %v1621
  %v1623 = vpop.f32.mrb[0].mxu0
  %v1624 = vadd.f32 0.0, %v1623
  %v1625 = vpop.f32.mrb[0].mxu0
  %v1626 = vadd.f32 0.0, %v1625
  %1627 = vdwg.mxu0
  %1628 = vmatprep.subr.bf16.mxu0 %v745
  %1629 = vmatpush1.bf16.msra.mxu0 %v744
  %1630 = vmatprep.subr.bf16.mxu0 %v749
  %1631 = vmatpush1.bf16.msra.mxu0 %v748
  %1632 = vmatprep.subr.bf16.mxu0 %v753
  %1633 = vmatpush1.bf16.msra.mxu0 %v752
  %1634 = vmatprep.subr.bf16.mxu0 %v757
  %1635 = vmatpush1.bf16.msra.mxu0 %v756
  %1636 = vmatprep.subr.bf16.mxu0 %v761
  %1637 = vmatpush1.bf16.msra.mxu0 %v760
  %1638 = vmatprep.subr.bf16.mxu0 %v765
  %1639 = vmatpush1.bf16.msra.mxu0 %v764
  %1640 = vmatprep.subr.bf16.mxu0 %v769
  %1641 = vmatpush1.bf16.msra.mxu0 %v768
  %1642 = vmatprep.subr.bf16.mxu0 %v773
  %1643 = vmatpush1.bf16.msra.mxu0 %v772
  %1644 = vmatprep.subr.bf16.mxu0 0
  %1645 = vmatpush1.bf16.msra.mxu0 0
  %1646 = vmatprep.subr.bf16.mxu0 0
  %1647 = vmatpush1.bf16.msra.mxu0 0
  %1648 = vmatprep.subr.bf16.mxu0 0
  %1649 = vmatpush1.bf16.msra.mxu0 0
  %1650 = vmatprep.subr.bf16.mxu0 0
  %1651 = vmatpush1.bf16.msra.mxu0 0
  %1652 = vmatprep.subr.bf16.mxu0 0
  %1653 = vmatpush1.bf16.msra.mxu0 0
  %1654 = vmatprep.subr.bf16.mxu0 0
  %1655 = vmatpush1.bf16.msra.mxu0 0
  %1656 = vmatprep.subr.bf16.mxu0 0
  %1657 = vmatpush1.bf16.msra.mxu0 0
  %1658 = vmatprep.subr.bf16.mxu0 0
  %1659 = vmatpush1.bf16.msra.mxu0 0
  %1660 = vmatprep.mubr.bf16.mxu0 0
  %1661 = vmatmul.mubr.bf16.gmra.mrb[0].mxu0 %v1571
  %v1662 = vpop.f32.mrb[0].mxu0
  %v1663 = vadd.f32 0.0, %v1662
  %v1664 = vpop.f32.mrb[0].mxu0
  %v1665 = vadd.f32 0.0, %v1664
  %v1666 = vpop.f32.mrb[0].mxu0
  %v1667 = vadd.f32 0.0, %v1666
  %v1668 = vpop.f32.mrb[0].mxu0
  %v1669 = vadd.f32 0.0, %v1668
  %1670 = vdwg.mxu0
  %v1671 = vadd.f32 %v1577, %v1620
  %v1672 = vadd.f32 %v1578, %v1622
  %v1673 = vadd.f32 %v1579, %v1663
  %v1674 = vadd.f32 %v1580, %v1665
  %v1675 = vadd.f32 %v1581, %v1624
  %v1676 = vadd.f32 %v1582, %v1626
  %v1677 = vadd.f32 %v1583, %v1667
  %v1678 = vadd.f32 %v1584, %v1669
  %v1679 = vxor.u32 %v1671, 2147483648
  %v1680 = vxor.u32 %v1675, 2147483648
  %v1681 = vmul.f32 %v1679, 1.442695
  %v1682 = vpow.pop %v1681
  %v1683 = vmul.f32 %v1680, 1.442695
  %v1684 = vpow.pop %v1683
  %v1685 = vadd.f32 %v1682, 1.0
  %v1686 = vadd.f32 %v1684, 1.0
  %v1687 = vrcp.pop %v1685
  %v1688 = vmul.f32 1.0, %v1687
  %v1689 = vrcp.pop %v1686
  %v1690 = vmul.f32 1.0, %v1689
  %v1691 = vxor.u32 %v1672, 2147483648
  %v1692 = vxor.u32 %v1676, 2147483648
  %v1693 = vmul.f32 %v1691, 1.442695
  %v1694 = vpow.pop %v1693
  %v1695 = vmul.f32 %v1692, 1.442695
  %v1696 = vpow.pop %v1695
  %v1697 = vadd.f32 %v1694, 1.0
  %v1698 = vadd.f32 %v1696, 1.0
  %v1699 = vrcp.pop %v1697
  %v1700 = vmul.f32 1.0, %v1699
  %v1701 = vrcp.pop %v1698
  %v1702 = vmul.f32 1.0, %v1701
  %v1703 = vtanh.pop %v1673
  %v1704 = vtanh.pop %v1677
  %v1705 = vxor.u32 %v1674, 2147483648
  %v1706 = vxor.u32 %v1678, 2147483648
  %v1707 = vmul.f32 %v1705, 1.442695
  %v1708 = vpow.pop %v1707
  %v1709 = vmul.f32 %v1706, 1.442695
  %v1710 = vpow.pop %v1709
  %v1711 = vadd.f32 %v1708, 1.0
  %v1712 = vadd.f32 %v1710, 1.0
  %v1713 = vrcp.pop %v1711
  %v1714 = vmul.f32 1.0, %v1713
  %v1715 = vrcp.pop %v1712
  %v1716 = vmul.f32 1.0, %v1715
  %v1717 = vmul.f32 %v1700, %v1565
  %v1718 = vmul.f32 %v1702, %v1566
  %v1719 = vmul.f32 %v1688, %v1703
  %v1720 = vmul.f32 %v1690, %v1704
  %v1721 = vadd.f32 %v1717, %v1719
  %v1722 = vadd.f32 %v1718, %v1720
  %v1723 = vtanh.pop %v1721
  %v1724 = vtanh.pop %v1722
  %v1725 = vmul.f32 %v1714, %v1723
  %v1726 = vmul.f32 %v1716, %v1724
  %v1727 = vpack.c.bf16 %v1726, %v1725
  %s1728 = scalar_lea.vmem [#allocation4], 40
  %1729 = vst [vmem:[%s1728] sm:$0xff] %v1727
  %s1730 = smul.u32 12, 4
  %s1731 = smul.addr %s1730, 8
  %s1732 = scalar_lea.vmem [#allocation5], %s1731
  %v1733 = vld [vmem:[%s1732] sm:$0xff]
  %v1734 = vld [vmem:[%s1732 + $0x8] sm:$0xff]
  %v1735 = vld [vmem:[%s1732 + $0x10] sm:$0xff]
  %v1736 = vld [vmem:[%s1732 + $0x18] sm:$0xff]
  %v1737 = vld [vmem:[%s1732 + $0x20] sm:$0xff]
  %v1738 = vld [vmem:[%s1732 + $0x28] sm:$0xff]
  %v1739 = vld [vmem:[%s1732 + $0x30] sm:$0xff]
  %v1740 = vld [vmem:[%s1732 + $0x38] sm:$0xff]
  %1741 = vmatprep.subr.bf16.mxu0 %v743
  %1742 = vmatpush1.bf16.msra.mxu0 %v742
  %1743 = vmatprep.subr.bf16.mxu0 %v747
  %1744 = vmatpush1.bf16.msra.mxu0 %v746
  %1745 = vmatprep.subr.bf16.mxu0 %v751
  %1746 = vmatpush1.bf16.msra.mxu0 %v750
  %1747 = vmatprep.subr.bf16.mxu0 %v755
  %1748 = vmatpush1.bf16.msra.mxu0 %v754
  %1749 = vmatprep.subr.bf16.mxu0 %v759
  %1750 = vmatpush1.bf16.msra.mxu0 %v758
  %1751 = vmatprep.subr.bf16.mxu0 %v763
  %1752 = vmatpush1.bf16.msra.mxu0 %v762
  %1753 = vmatprep.subr.bf16.mxu0 %v767
  %1754 = vmatpush1.bf16.msra.mxu0 %v766
  %1755 = vmatprep.subr.bf16.mxu0 %v771
  %1756 = vmatpush1.bf16.msra.mxu0 %v770
  %1757 = vmatprep.subr.bf16.mxu0 0
  %1758 = vmatpush1.bf16.msra.mxu0 0
  %1759 = vmatprep.subr.bf16.mxu0 0
  %1760 = vmatpush1.bf16.msra.mxu0 0
  %1761 = vmatprep.subr.bf16.mxu0 0
  %1762 = vmatpush1.bf16.msra.mxu0 0
  %1763 = vmatprep.subr.bf16.mxu0 0
  %1764 = vmatpush1.bf16.msra.mxu0 0
  %1765 = vmatprep.subr.bf16.mxu0 0
  %1766 = vmatpush1.bf16.msra.mxu0 0
  %1767 = vmatprep.subr.bf16.mxu0 0
  %1768 = vmatpush1.bf16.msra.mxu0 0
  %1769 = vmatprep.subr.bf16.mxu0 0
  %1770 = vmatpush1.bf16.msra.mxu0 0
  %1771 = vmatprep.subr.bf16.mxu0 0
  %1772 = vmatpush1.bf16.msra.mxu0 0
  %1773 = vmatprep.mubr.bf16.mxu0 0
  %1774 = vmatmul.mubr.bf16.gmra.mrb[0].mxu0 %v1727
  %v1775 = vpop.f32.mrb[0].mxu0
  %v1776 = vadd.f32 0.0, %v1775
  %v1777 = vpop.f32.mrb[0].mxu0
  %v1778 = vadd.f32 0.0, %v1777
  %v1779 = vpop.f32.mrb[0].mxu0
  %v1780 = vadd.f32 0.0, %v1779
  %v1781 = vpop.f32.mrb[0].mxu0
  %v1782 = vadd.f32 0.0, %v1781
  %1783 = vdwg.mxu0
  %1784 = vmatprep.subr.bf16.mxu0 %v745
  %1785 = vmatpush1.bf16.msra.mxu0 %v744
  %1786 = vmatprep.subr.bf16.mxu0 %v749
  %1787 = vmatpush1.bf16.msra.mxu0 %v748
  %1788 = vmatprep.subr.bf16.mxu0 %v753
  %1789 = vmatpush1.bf16.msra.mxu0 %v752
  %1790 = vmatprep.subr.bf16.mxu0 %v757
  %1791 = vmatpush1.bf16.msra.mxu0 %v756
  %1792 = vmatprep.subr.bf16.mxu0 %v761
  %1793 = vmatpush1.bf16.msra.mxu0 %v760
  %1794 = vmatprep.subr.bf16.mxu0 %v765
  %1795 = vmatpush1.bf16.msra.mxu0 %v764
  %1796 = vmatprep.subr.bf16.mxu0 %v769
  %1797 = vmatpush1.bf16.msra.mxu0 %v768
  %1798 = vmatprep.subr.bf16.mxu0 %v773
  %1799 = vmatpush1.bf16.msra.mxu0 %v772
  %1800 = vmatprep.subr.bf16.mxu0 0
  %1801 = vmatpush1.bf16.msra.mxu0 0
  %1802 = vmatprep.subr.bf16.mxu0 0
  %1803 = vmatpush1.bf16.msra.mxu0 0
  %1804 = vmatprep.subr.bf16.mxu0 0
  %1805 = vmatpush1.bf16.msra.mxu0 0
  %1806 = vmatprep.subr.bf16.mxu0 0
  %1807 = vmatpush1.bf16.msra.mxu0 0
  %1808 = vmatprep.subr.bf16.mxu0 0
  %1809 = vmatpush1.bf16.msra.mxu0 0
  %1810 = vmatprep.subr.bf16.mxu0 0
  %1811 = vmatpush1.bf16.msra.mxu0 0
  %1812 = vmatprep.subr.bf16.mxu0 0
  %1813 = vmatpush1.bf16.msra.mxu0 0
  %1814 = vmatprep.subr.bf16.mxu0 0
  %1815 = vmatpush1.bf16.msra.mxu0 0
  %1816 = vmatprep.mubr.bf16.mxu0 0
  %1817 = vmatmul.mubr.bf16.gmra.mrb[0].mxu0 %v1727
  %v1818 = vpop.f32.mrb[0].mxu0
  %v1819 = vadd.f32 0.0, %v1818
  %v1820 = vpop.f32.mrb[0].mxu0
  %v1821 = vadd.f32 0.0, %v1820
  %v1822 = vpop.f32.mrb[0].mxu0
  %v1823 = vadd.f32 0.0, %v1822
  %v1824 = vpop.f32.mrb[0].mxu0
  %v1825 = vadd.f32 0.0, %v1824
  %1826 = vdwg.mxu0
  %v1827 = vadd.f32 %v1733, %v1776
  %v1828 = vadd.f32 %v1734, %v1778
  %v1829 = vadd.f32 %v1735, %v1819
  %v1830 = vadd.f32 %v1736, %v1821
  %v1831 = vadd.f32 %v1737, %v1780
  %v1832 = vadd.f32 %v1738, %v1782
  %v1833 = vadd.f32 %v1739, %v1823
  %v1834 = vadd.f32 %v1740, %v1825
  %v1835 = vxor.u32 %v1827, 2147483648
  %v1836 = vxor.u32 %v1831, 2147483648
  %v1837 = vmul.f32 %v1835, 1.442695
  %v1838 = vpow.pop %v1837
  %v1839 = vmul.f32 %v1836, 1.442695
  %v1840 = vpow.pop %v1839
  %v1841 = vadd.f32 %v1838, 1.0
  %v1842 = vadd.f32 %v1840, 1.0
  %v1843 = vrcp.pop %v1841
  %v1844 = vmul.f32 1.0, %v1843
  %v1845 = vrcp.pop %v1842
  %v1846 = vmul.f32 1.0, %v1845
  %v1847 = vxor.u32 %v1828, 2147483648
  %v1848 = vxor.u32 %v1832, 2147483648
  %v1849 = vmul.f32 %v1847, 1.442695
  %v1850 = vpow.pop %v1849
  %v1851 = vmul.f32 %v1848, 1.442695
  %v1852 = vpow.pop %v1851
  %v1853 = vadd.f32 %v1850, 1.0
  %v1854 = vadd.f32 %v1852, 1.0
  %v1855 = vrcp.pop %v1853
  %v1856 = vmul.f32 1.0, %v1855
  %v1857 = vrcp.pop %v1854
  %v1858 = vmul.f32 1.0, %v1857
  %v1859 = vtanh.pop %v1829
  %v1860 = vtanh.pop %v1833
  %v1861 = vxor.u32 %v1830, 2147483648
  %v1862 = vxor.u32 %v1834, 2147483648
  %v1863 = vmul.f32 %v1861, 1.442695
  %v1864 = vpow.pop %v1863
  %v1865 = vmul.f32 %v1862, 1.442695
  %v1866 = vpow.pop %v1865
  %v1867 = vadd.f32 %v1864, 1.0
  %v1868 = vadd.f32 %v1866, 1.0
  %v1869 = vrcp.pop %v1867
  %v1870 = vmul.f32 1.0, %v1869
  %v1871 = vrcp.pop %v1868
  %v1872 = vmul.f32 1.0, %v1871
  %v1873 = vmul.f32 %v1856, %v1721
  %v1874 = vmul.f32 %v1858, %v1722
  %v1875 = vmul.f32 %v1844, %v1859
  %v1876 = vmul.f32 %v1846, %v1860
  %v1877 = vadd.f32 %v1873, %v1875
  %v1878 = vadd.f32 %v1874, %v1876
  %v1879 = vtanh.pop %v1877
  %v1880 = vtanh.pop %v1878
  %v1881 = vmul.f32 %v1870, %v1879
  %v1882 = vmul.f32 %v1872, %v1880
  %v1883 = vpack.c.bf16 %v1882, %v1881
  %s1884 = scalar_lea.vmem [#allocation4], 48
  %1885 = vst [vmem:[%s1884] sm:$0xff] %v1883
  %s1886 = smul.u32 14, 4
  %s1887 = smul.addr %s1886, 8
  %s1888 = scalar_lea.vmem [#allocation5], %s1887
  %v1889 = vld [vmem:[%s1888] sm:$0xff]
  %v1890 = vld [vmem:[%s1888 + $0x8] sm:$0xff]
  %v1891 = vld [vmem:[%s1888 + $0x10] sm:$0xff]
  %v1892 = vld [vmem:[%s1888 + $0x18] sm:$0xff]
  %v1893 = vld [vmem:[%s1888 + $0x20] sm:$0xff]
  %v1894 = vld [vmem:[%s1888 + $0x28] sm:$0xff]
  %v1895 = vld [vmem:[%s1888 + $0x30] sm:$0xff]
  %v1896 = vld [vmem:[%s1888 + $0x38] sm:$0xff]
  %1897 = vmatprep.subr.bf16.mxu0 %v743
  %1898 = vmatpush1.bf16.msra.mxu0 %v742
  %1899 = vmatprep.subr.bf16.mxu0 %v747
  %1900 = vmatpush1.bf16.msra.mxu0 %v746
  %1901 = vmatprep.subr.bf16.mxu0 %v751
  %1902 = vmatpush1.bf16.msra.mxu0 %v750
  %1903 = vmatprep.subr.bf16.mxu0 %v755
  %1904 = vmatpush1.bf16.msra.mxu0 %v754
  %1905 = vmatprep.subr.bf16.mxu0 %v759
  %1906 = vmatpush1.bf16.msra.mxu0 %v758
  %1907 = vmatprep.subr.bf16.mxu0 %v763
  %1908 = vmatpush1.bf16.msra.mxu0 %v762
  %1909 = vmatprep.subr.bf16.mxu0 %v767
  %1910 = vmatpush1.bf16.msra.mxu0 %v766
  %1911 = vmatprep.subr.bf16.mxu0 %v771
  %1912 = vmatpush1.bf16.msra.mxu0 %v770
  %1913 = vmatprep.subr.bf16.mxu0 0
  %1914 = vmatpush1.bf16.msra.mxu0 0
  %1915 = vmatprep.subr.bf16.mxu0 0
  %1916 = vmatpush1.bf16.msra.mxu0 0
  %1917 = vmatprep.subr.bf16.mxu0 0
  %1918 = vmatpush1.bf16.msra.mxu0 0
  %1919 = vmatprep.subr.bf16.mxu0 0
  %1920 = vmatpush1.bf16.msra.mxu0 0
  %1921 = vmatprep.subr.bf16.mxu0 0
  %1922 = vmatpush1.bf16.msra.mxu0 0
  %1923 = vmatprep.subr.bf16.mxu0 0
  %1924 = vmatpush1.bf16.msra.mxu0 0
  %1925 = vmatprep.subr.bf16.mxu0 0
  %1926 = vmatpush1.bf16.msra.mxu0 0
  %1927 = vmatprep.subr.bf16.mxu0 0
  %1928 = vmatpush1.bf16.msra.mxu0 0
  %1929 = vmatprep.mubr.bf16.mxu0 0
  %1930 = vmatmul.mubr.bf16.gmra.mrb[0].mxu0 %v1883
  %v1931 = vpop.f32.mrb[0].mxu0
  %v1932 = vadd.f32 0.0, %v1931
  %v1933 = vpop.f32.mrb[0].mxu0
  %v1934 = vadd.f32 0.0, %v1933
  %v1935 = vpop.f32.mrb[0].mxu0
  %v1936 = vadd.f32 0.0, %v1935
  %v1937 = vpop.f32.mrb[0].mxu0
  %v1938 = vadd.f32 0.0, %v1937
  %1939 = vdwg.mxu0
  %1940 = vmatprep.subr.bf16.mxu0 %v745
  %1941 = vmatpush1.bf16.msra.mxu0 %v744
  %1942 = vmatprep.subr.bf16.mxu0 %v749
  %1943 = vmatpush1.bf16.msra.mxu0 %v748
  %1944 = vmatprep.subr.bf16.mxu0 %v753
  %1945 = vmatpush1.bf16.msra.mxu0 %v752
  %1946 = vmatprep.subr.bf16.mxu0 %v757
  %1947 = vmatpush1.bf16.msra.mxu0 %v756
  %1948 = vmatprep.subr.bf16.mxu0 %v761
  %1949 = vmatpush1.bf16.msra.mxu0 %v760
  %1950 = vmatprep.subr.bf16.mxu0 %v765
  %1951 = vmatpush1.bf16.msra.mxu0 %v764
  %1952 = vmatprep.subr.bf16.mxu0 %v769
  %1953 = vmatpush1.bf16.msra.mxu0 %v768
  %1954 = vmatprep.subr.bf16.mxu0 %v773
  %1955 = vmatpush1.bf16.msra.mxu0 %v772
  %1956 = vmatprep.subr.bf16.mxu0 0
  %1957 = vmatpush1.bf16.msra.mxu0 0
  %1958 = vmatprep.subr.bf16.mxu0 0
  %1959 = vmatpush1.bf16.msra.mxu0 0
  %1960 = vmatprep.subr.bf16.mxu0 0
  %1961 = vmatpush1.bf16.msra.mxu0 0
  %1962 = vmatprep.subr.bf16.mxu0 0
  %1963 = vmatpush1.bf16.msra.mxu0 0
  %1964 = vmatprep.subr.bf16.mxu0 0
  %1965 = vmatpush1.bf16.msra.mxu0 0
  %1966 = vmatprep.subr.bf16.mxu0 0
  %1967 = vmatpush1.bf16.msra.mxu0 0
  %1968 = vmatprep.subr.bf16.mxu0 0
  %1969 = vmatpush1.bf16.msra.mxu0 0
  %1970 = vmatprep.subr.bf16.mxu0 0
  %1971 = vmatpush1.bf16.msra.mxu0 0
  %1972 = vmatprep.mubr.bf16.mxu0 0
  %1973 = vmatmul.mubr.bf16.gmra.mrb[0].mxu0 %v1883
  %v1974 = vpop.f32.mrb[0].mxu0
  %v1975 = vadd.f32 0.0, %v1974
  %v1976 = vpop.f32.mrb[0].mxu0
  %v1977 = vadd.f32 0.0, %v1976
  %v1978 = vpop.f32.mrb[0].mxu0
  %v1979 = vadd.f32 0.0, %v1978
  %v1980 = vpop.f32.mrb[0].mxu0
  %v1981 = vadd.f32 0.0, %v1980
  %1982 = vdwg.mxu0
  %v1983 = vadd.f32 %v1889, %v1932
  %v1984 = vadd.f32 %v1890, %v1934
  %v1985 = vadd.f32 %v1891, %v1975
  %v1986 = vadd.f32 %v1892, %v1977
  %v1987 = vadd.f32 %v1893, %v1936
  %v1988 = vadd.f32 %v1894, %v1938
  %v1989 = vadd.f32 %v1895, %v1979
  %v1990 = vadd.f32 %v1896, %v1981
  %v1991 = vxor.u32 %v1983, 2147483648
  %v1992 = vxor.u32 %v1987, 2147483648
  %v1993 = vmul.f32 %v1991, 1.442695
  %v1994 = vpow.pop %v1993
  %v1995 = vmul.f32 %v1992, 1.442695
  %v1996 = vpow.pop %v1995
  %v1997 = vadd.f32 %v1994, 1.0
  %v1998 = vadd.f32 %v1996, 1.0
  %v1999 = vrcp.pop %v1997
  %v2000 = vmul.f32 1.0, %v1999
  %v2001 = vrcp.pop %v1998
  %v2002 = vmul.f32 1.0, %v2001
  %v2003 = vxor.u32 %v1984, 2147483648
  %v2004 = vxor.u32 %v1988, 2147483648
  %v2005 = vmul.f32 %v2003, 1.442695
  %v2006 = vpow.pop %v2005
  %v2007 = vmul.f32 %v2004, 1.442695
  %v2008 = vpow.pop %v2007
  %v2009 = vadd.f32 %v2006, 1.0
  %v2010 = vadd.f32 %v2008, 1.0
  %v2011 = vrcp.pop %v2009
  %v2012 = vmul.f32 1.0, %v2011
  %v2013 = vrcp.pop %v2010
  %v2014 = vmul.f32 1.0, %v2013
  %v2015 = vtanh.pop %v1985
  %v2016 = vtanh.pop %v1989
  %v2017 = vxor.u32 %v1986, 2147483648
  %v2018 = vxor.u32 %v1990, 2147483648
  %v2019 = vmul.f32 %v2017, 1.442695
  %v2020 = vpow.pop %v2019
  %v2021 = vmul.f32 %v2018, 1.442695
  %v2022 = vpow.pop %v2021
  %v2023 = vadd.f32 %v2020, 1.0
  %v2024 = vadd.f32 %v2022, 1.0
  %v2025 = vrcp.pop %v2023
  %v2026 = vmul.f32 1.0, %v2025
  %v2027 = vrcp.pop %v2024
  %v2028 = vmul.f32 1.0, %v2027
  %v2029 = vmul.f32 %v2012, %v1877
  %v2030 = vmul.f32 %v2014, %v1878
  %v2031 = vmul.f32 %v2000, %v2015
  %v2032 = vmul.f32 %v2002, %v2016
  %v2033 = vadd.f32 %v2029, %v2031
  %v2034 = vadd.f32 %v2030, %v2032
  %v2035 = vtanh.pop %v2033
  %v2036 = vtanh.pop %v2034
  %v2037 = vmul.f32 %v2026, %v2035
  %v2038 = vmul.f32 %v2028, %v2036
  %v2039 = vpack.c.bf16 %v2038, %v2037
  %s2040 = scalar_lea.vmem [#allocation4], 56
  %2041 = vst [vmem:[%s2040] sm:$0xff] %v2039
  %2042 = vst [vmem:[#allocation2] sm:$0xff] %v2037
  %2043 = vst [vmem:[#allocation2 + $0x8] sm:$0xff] %v2038
  %2044 = vst [vmem:[#allocation3] sm:$0xff] %v2033
  %2045 = vst [vmem:[#allocation3 + $0x8] sm:$0xff] %v2034
  %s2046 = scalar_lea.vmem %s1, 256
  %v2047 = vld [vmem:[%s2046] sm:$0xff]
  %v2048 = vld [vmem:[%s2046 + $0x8] sm:$0xff]
  %v2049 = vld [vmem:[%s2046 + $0x10] sm:$0xff]
  %v2050 = vld [vmem:[%s2046 + $0x18] sm:$0xff]
  %v2051 = vld [vmem:[%s2046 + $0x20] sm:$0xff]
  %v2052 = vld [vmem:[%s2046 + $0x28] sm:$0xff]
  %v2053 = vld [vmem:[%s2046 + $0x30] sm:$0xff]
  %v2054 = vld [vmem:[%s2046 + $0x38] sm:$0xff]
  %v2055 = vld [vmem:[%s2046 + $0x40] sm:$0xff]
  %v2056 = vld [vmem:[%s2046 + $0x48] sm:$0xff]
  %v2057 = vld [vmem:[%s2046 + $0x50] sm:$0xff]
  %v2058 = vld [vmem:[%s2046 + $0x58] sm:$0xff]
  %v2059 = vld [vmem:[%s2046 + $0x60] sm:$0xff]
  %v2060 = vld [vmem:[%s2046 + $0x68] sm:$0xff]
  %v2061 = vld [vmem:[%s2046 + $0x70] sm:$0xff]
  %v2062 = vld [vmem:[%s2046 + $0x78] sm:$0xff]
  %v2063 = vld [vmem:[%s2046 + $0x80] sm:$0xff]
  %v2064 = vld [vmem:[%s2046 + $0x88] sm:$0xff]
  %v2065 = vld [vmem:[%s2046 + $0x90] sm:$0xff]
  %v2066 = vld [vmem:[%s2046 + $0x98] sm:$0xff]
  %v2067 = vld [vmem:[%s2046 + $0xa0] sm:$0xff]
  %v2068 = vld [vmem:[%s2046 + $0xa8] sm:$0xff]
  %v2069 = vld [vmem:[%s2046 + $0xb0] sm:$0xff]
  %v2070 = vld [vmem:[%s2046 + $0xb8] sm:$0xff]
  %v2071 = vld [vmem:[%s2046 + $0xc0] sm:$0xff]
  %v2072 = vld [vmem:[%s2046 + $0xc8] sm:$0xff]
  %v2073 = vld [vmem:[%s2046 + $0xd0] sm:$0xff]
  %v2074 = vld [vmem:[%s2046 + $0xd8] sm:$0xff]
  %v2075 = vld [vmem:[%s2046 + $0xe0] sm:$0xff]
  %v2076 = vld [vmem:[%s2046 + $0xe8] sm:$0xff]
  %v2077 = vld [vmem:[%s2046 + $0xf0] sm:$0xff]
  %v2078 = vld [vmem:[%s2046 + $0xf8] sm:$0xff]
  %v2079 = vld [vmem:[#allocation4] sm:$0xff]
  %v2080 = vld [vmem:[#allocation4 + $0x8] sm:$0xff]
  %v2081 = vld [vmem:[#allocation4 + $0x10] sm:$0xff]
  %v2082 = vld [vmem:[#allocation4 + $0x18] sm:$0xff]
  %v2083 = vld [vmem:[#allocation4 + $0x20] sm:$0xff]
  %v2084 = vld [vmem:[#allocation4 + $0x28] sm:$0xff]
  %v2085 = vld [vmem:[#allocation4 + $0x30] sm:$0xff]
  %v2086 = vld [vmem:[#allocation4 + $0x38] sm:$0xff]
  %s2087 = scalar_lea.vmem %s3, 4
  %v2088 = vld [vmem:[%s2087] sm:$0xf]
  %v2090 = vlaneseq
  %v2091 = vshrl.u32 %v2090, 7
  %v2092 = vsub.s32 0, %v2091
  %v2093 = vrot.slane %v2088, %v2092
  %v2094 = vlaneseq
  %v2095 = vshrl.u32 %v2094, 7
  %v2096 = vsub.s32 1, %v2095
  %v2097 = vrot.slane %v2088, %v2096
  %v2098 = vlaneseq
  %v2099 = vshrl.u32 %v2098, 7
  %v2100 = vsub.s32 2, %v2099
  %v2101 = vrot.slane %v2088, %v2100
  %v2102 = vlaneseq
  %v2103 = vshrl.u32 %v2102, 7
  %v2104 = vsub.s32 3, %v2103
  %v2105 = vrot.slane %v2088, %v2104
  %v2142 = vunpack.c.l.b16 %v2047
  %v2143 = vunpack.c.h.b16 %v2047
  %v2144 = vunpack.c.l.b16 %v2048
  %v2145 = vunpack.c.h.b16 %v2048
  %v2146 = vunpack.c.l.b16 %v2049
  %v2147 = vunpack.c.h.b16 %v2049
  %v2148 = vunpack.c.l.b16 %v2050
  %v2149 = vunpack.c.h.b16 %v2050
  %v2150 = vunpack.c.l.b16 %v2051
  %v2151 = vunpack.c.h.b16 %v2051
  %v2152 = vunpack.c.l.b16 %v2052
  %v2153 = vunpack.c.h.b16 %v2052
  %v2154 = vunpack.c.l.b16 %v2053
  %v2155 = vunpack.c.h.b16 %v2053
  %v2156 = vunpack.c.l.b16 %v2054
  %v2157 = vunpack.c.h.b16 %v2054
  %v2158 = vunpack.c.l.b16 %v2055
  %v2159 = vunpack.c.h.b16 %v2055
  %v2160 = vunpack.c.l.b16 %v2056
  %v2161 = vunpack.c.h.b16 %v2056
  %v2162 = vunpack.c.l.b16 %v2057
  %v2163 = vunpack.c.h.b16 %v2057
  %v2164 = vunpack.c.l.b16 %v2058
  %v2165 = vunpack.c.h.b16 %v2058
  %v2166 = vunpack.c.l.b16 %v2059
  %v2167 = vunpack.c.h.b16 %v2059
  %v2168 = vunpack.c.l.b16 %v2060
  %v2169 = vunpack.c.h.b16 %v2060
  %v2170 = vunpack.c.l.b16 %v2061
  %v2171 = vunpack.c.h.b16 %v2061
  %v2172 = vunpack.c.l.b16 %v2062
  %v2173 = vunpack.c.h.b16 %v2062
  %v2174 = vunpack.c.l.b16 %v2063
  %v2175 = vunpack.c.h.b16 %v2063
  %v2176 = vunpack.c.l.b16 %v2064
  %v2177 = vunpack.c.h.b16 %v2064
  %v2178 = vunpack.c.l.b16 %v2065
  %v2179 = vunpack.c.h.b16 %v2065
  %v2180 = vunpack.c.l.b16 %v2066
  %v2181 = vunpack.c.h.b16 %v2066
  %v2182 = vunpack.c.l.b16 %v2067
  %v2183 = vunpack.c.h.b16 %v2067
  %v2184 = vunpack.c.l.b16 %v2068
  %v2185 = vunpack.c.h.b16 %v2068
  %v2186 = vunpack.c.l.b16 %v2069
  %v2187 = vunpack.c.h.b16 %v2069
  %v2188 = vunpack.c.l.b16 %v2070
  %v2189 = vunpack.c.h.b16 %v2070
  %v2190 = vunpack.c.l.b16 %v2071
  %v2191 = vunpack.c.h.b16 %v2071
  %v2192 = vunpack.c.l.b16 %v2072
  %v2193 = vunpack.c.h.b16 %v2072
  %v2194 = vunpack.c.l.b16 %v2073
  %v2195 = vunpack.c.h.b16 %v2073
  %v2196 = vunpack.c.l.b16 %v2074
  %v2197 = vunpack.c.h.b16 %v2074
  %v2198 = vunpack.c.l.b16 %v2075
  %v2199 = vunpack.c.h.b16 %v2075
  %v2200 = vunpack.c.l.b16 %v2076
  %v2201 = vunpack.c.h.b16 %v2076
  %v2202 = vunpack.c.l.b16 %v2077
  %v2203 = vunpack.c.h.b16 %v2077
  %v2204 = vunpack.c.l.b16 %v2078
  %v2205 = vunpack.c.h.b16 %v2078
  %v2206 = vpack.c.b16 %v2146, %v2142
  %v2207 = vpack.c.b16 %v2147, %v2143
  %v2208 = vpack.c.b16 %v2148, %v2144
  %v2209 = vpack.c.b16 %v2149, %v2145
  %v2210 = vpack.c.b16 %v2154, %v2150
  %v2211 = vpack.c.b16 %v2155, %v2151
  %v2212 = vpack.c.b16 %v2156, %v2152
  %v2213 = vpack.c.b16 %v2157, %v2153
  %v2214 = vpack.c.b16 %v2162, %v2158
  %v2215 = vpack.c.b16 %v2163, %v2159
  %v2216 = vpack.c.b16 %v2164, %v2160
  %v2217 = vpack.c.b16 %v2165, %v2161
  %v2218 = vpack.c.b16 %v2170, %v2166
  %v2219 = vpack.c.b16 %v2171, %v2167
  %v2220 = vpack.c.b16 %v2172, %v2168
  %v2221 = vpack.c.b16 %v2173, %v2169
  %v2222 = vpack.c.b16 %v2178, %v2174
  %v2223 = vpack.c.b16 %v2179, %v2175
  %v2224 = vpack.c.b16 %v2180, %v2176
  %v2225 = vpack.c.b16 %v2181, %v2177
  %v2226 = vpack.c.b16 %v2186, %v2182
  %v2227 = vpack.c.b16 %v2187, %v2183
  %v2228 = vpack.c.b16 %v2188, %v2184
  %v2229 = vpack.c.b16 %v2189, %v2185
  %v2230 = vpack.c.b16 %v2194, %v2190
  %v2231 = vpack.c.b16 %v2195, %v2191
  %v2232 = vpack.c.b16 %v2196, %v2192
  %v2233 = vpack.c.b16 %v2197, %v2193
  %v2234 = vpack.c.b16 %v2202, %v2198
  %v2235 = vpack.c.b16 %v2203, %v2199
  %v2236 = vpack.c.b16 %v2204, %v2200
  %v2237 = vpack.c.b16 %v2205, %v2201
  %2270 = vmatprep.subr.bf16.mxu0 %v2207
  %2271 = vmatpush1.bf16.msra.mxu0 %v2206
  %2272 = vmatprep.subr.bf16.mxu0 %v2211
  %2273 = vmatpush1.bf16.msra.mxu0 %v2210
  %2274 = vmatprep.subr.bf16.mxu0 %v2215
  %2275 = vmatpush1.bf16.msra.mxu0 %v2214
  %2276 = vmatprep.subr.bf16.mxu0 %v2219
  %2277 = vmatpush1.bf16.msra.mxu0 %v2218
  %2278 = vmatprep.subr.bf16.mxu0 %v2223
  %2279 = vmatpush1.bf16.msra.mxu0 %v2222
  %2280 = vmatprep.subr.bf16.mxu0 %v2227
  %2281 = vmatpush1.bf16.msra.mxu0 %v2226
  %2282 = vmatprep.subr.bf16.mxu0 %v2231
  %2283 = vmatpush1.bf16.msra.mxu0 %v2230
  %2284 = vmatprep.subr.bf16.mxu0 %v2235
  %2285 = vmatpush1.bf16.msra.mxu0 %v2234
  %2286 = vmatprep.subr.bf16.mxu0 0
  %2287 = vmatpush1.bf16.msra.mxu0 0
  %2288 = vmatprep.subr.bf16.mxu0 0
  %2289 = vmatpush1.bf16.msra.mxu0 0
  %2290 = vmatprep.subr.bf16.mxu0 0
  %2291 = vmatpush1.bf16.msra.mxu0 0
  %2292 = vmatprep.subr.bf16.mxu0 0
  %2293 = vmatpush1.bf16.msra.mxu0 0
  %2294 = vmatprep.subr.bf16.mxu0 0
  %2295 = vmatpush1.bf16.msra.mxu0 0
  %2296 = vmatprep.subr.bf16.mxu0 0
  %2297 = vmatpush1.bf16.msra.mxu0 0
  %2298 = vmatprep.subr.bf16.mxu0 0
  %2299 = vmatpush1.bf16.msra.mxu0 0
  %2300 = vmatprep.subr.bf16.mxu0 0
  %2301 = vmatpush1.bf16.msra.mxu0 0
  %2302 = vmatprep.mubr.bf16.mxu0 0
  %2303 = vmatmul.mubr.bf16.gmra.mrb[0].mxu0 %v2079
  %v2304 = vpop.f32.mrb[0].mxu0
  %v2305 = vadd.f32 %v2093, %v2304
  %v2306 = vpop.f32.mrb[0].mxu0
  %v2307 = vadd.f32 %v2097, %v2306
  %v2308 = vpop.f32.mrb[0].mxu0
  %v2309 = vadd.f32 %v2093, %v2308
  %v2310 = vpop.f32.mrb[0].mxu0
  %v2311 = vadd.f32 %v2097, %v2310
  %2312 = vmatprep.mubr.bf16.mxu0 0
  %2313 = vmatmul.mubr.bf16.gmra.mrb[0].mxu0 %v2080
  %v2314 = vpop.f32.mrb[0].mxu0
  %v2315 = vadd.f32 %v2093, %v2314
  %v2316 = vpop.f32.mrb[0].mxu0
  %v2317 = vadd.f32 %v2097, %v2316
  %v2318 = vpop.f32.mrb[0].mxu0
  %v2319 = vadd.f32 %v2093, %v2318
  %v2320 = vpop.f32.mrb[0].mxu0
  %v2321 = vadd.f32 %v2097, %v2320
  %2322 = vmatprep.mubr.bf16.mxu0 0
  %2323 = vmatmul.mubr.bf16.gmra.mrb[0].mxu0 %v2081
  %v2324 = vpop.f32.mrb[0].mxu0
  %v2325 = vadd.f32 %v2093, %v2324
  %v2326 = vpop.f32.mrb[0].mxu0
  %v2327 = vadd.f32 %v2097, %v2326
  %v2328 = vpop.f32.mrb[0].mxu0
  %v2329 = vadd.f32 %v2093, %v2328
  %v2330 = vpop.f32.mrb[0].mxu0
  %v2331 = vadd.f32 %v2097, %v2330
  %2332 = vmatprep.mubr.bf16.mxu0 0
  %2333 = vmatmul.mubr.bf16.gmra.mrb[0].mxu0 %v2082
  %v2334 = vpop.f32.mrb[0].mxu0
  %v2335 = vadd.f32 %v2093, %v2334
  %v2336 = vpop.f32.mrb[0].mxu0
  %v2337 = vadd.f32 %v2097, %v2336
  %v2338 = vpop.f32.mrb[0].mxu0
  %v2339 = vadd.f32 %v2093, %v2338
  %v2340 = vpop.f32.mrb[0].mxu0
  %v2341 = vadd.f32 %v2097, %v2340
  %2342 = vmatprep.mubr.bf16.mxu0 0
  %2343 = vmatmul.mubr.bf16.gmra.mrb[0].mxu0 %v2083
  %v2344 = vpop.f32.mrb[0].mxu0
  %v2345 = vadd.f32 %v2093, %v2344
  %v2346 = vpop.f32.mrb[0].mxu0
  %v2347 = vadd.f32 %v2097, %v2346
  %v2348 = vpop.f32.mrb[0].mxu0
  %v2349 = vadd.f32 %v2093, %v2348
  %v2350 = vpop.f32.mrb[0].mxu0
  %v2351 = vadd.f32 %v2097, %v2350
  %2352 = vmatprep.mubr.bf16.mxu0 0
  %2353 = vmatmul.mubr.bf16.gmra.mrb[0].mxu0 %v2084
  %v2354 = vpop.f32.mrb[0].mxu0
  %v2355 = vadd.f32 %v2093, %v2354
  %v2356 = vpop.f32.mrb[0].mxu0
  %v2357 = vadd.f32 %v2097, %v2356
  %v2358 = vpop.f32.mrb[0].mxu0
  %v2359 = vadd.f32 %v2093, %v2358
  %v2360 = vpop.f32.mrb[0].mxu0
  %v2361 = vadd.f32 %v2097, %v2360
  %2362 = vmatprep.mubr.bf16.mxu0 0
  %2363 = vmatmul.mubr.bf16.gmra.mrb[0].mxu0 %v2085
  %v2364 = vpop.f32.mrb[0].mxu0
  %v2365 = vadd.f32 %v2093, %v2364
  %v2366 = vpop.f32.mrb[0].mxu0
  %v2367 = vadd.f32 %v2097, %v2366
  %v2368 = vpop.f32.mrb[0].mxu0
  %v2369 = vadd.f32 %v2093, %v2368
  %v2370 = vpop.f32.mrb[0].mxu0
  %v2371 = vadd.f32 %v2097, %v2370
  %2372 = vmatprep.mubr.bf16.mxu0 0
  %2373 = vmatmul.mubr.bf16.gmra.mrb[0].mxu0 %v2086
  %v2374 = vpop.f32.mrb[0].mxu0
  %v2375 = vadd.f32 %v2093, %v2374
  %v2376 = vpop.f32.mrb[0].mxu0
  %v2377 = vadd.f32 %v2097, %v2376
  %v2378 = vpop.f32.mrb[0].mxu0
  %v2379 = vadd.f32 %v2093, %v2378
  %v2380 = vpop.f32.mrb[0].mxu0
  %v2381 = vadd.f32 %v2097, %v2380
  %2382 = vdwg.mxu0
  %2383 = vmatprep.subr.bf16.mxu0 %v2209
  %2384 = vmatpush1.bf16.msra.mxu0 %v2208
  %2385 = vmatprep.subr.bf16.mxu0 %v2213
  %2386 = vmatpush1.bf16.msra.mxu0 %v2212
  %2387 = vmatprep.subr.bf16.mxu0 %v2217
  %2388 = vmatpush1.bf16.msra.mxu0 %v2216
  %2389 = vmatprep.subr.bf16.mxu0 %v2221
  %2390 = vmatpush1.bf16.msra.mxu0 %v2220
  %2391 = vmatprep.subr.bf16.mxu0 %v2225
  %2392 = vmatpush1.bf16.msra.mxu0 %v2224
  %2393 = vmatprep.subr.bf16.mxu0 %v2229
  %2394 = vmatpush1.bf16.msra.mxu0 %v2228
  %2395 = vmatprep.subr.bf16.mxu0 %v2233
  %2396 = vmatpush1.bf16.msra.mxu0 %v2232
  %2397 = vmatprep.subr.bf16.mxu0 %v2237
  %2398 = vmatpush1.bf16.msra.mxu0 %v2236
  %2399 = vmatprep.subr.bf16.mxu0 0
  %2400 = vmatpush1.bf16.msra.mxu0 0
  %2401 = vmatprep.subr.bf16.mxu0 0
  %2402 = vmatpush1.bf16.msra.mxu0 0
  %2403 = vmatprep.subr.bf16.mxu0 0
  %2404 = vmatpush1.bf16.msra.mxu0 0
  %2405 = vmatprep.subr.bf16.mxu0 0
  %2406 = vmatpush1.bf16.msra.mxu0 0
  %2407 = vmatprep.subr.bf16.mxu0 0
  %2408 = vmatpush1.bf16.msra.mxu0 0
  %2409 = vmatprep.subr.bf16.mxu0 0
  %2410 = vmatpush1.bf16.msra.mxu0 0
  %2411 = vmatprep.subr.bf16.mxu0 0
  %2412 = vmatpush1.bf16.msra.mxu0 0
  %2413 = vmatprep.subr.bf16.mxu0 0
  %2414 = vmatpush1.bf16.msra.mxu0 0
  %2415 = vmatprep.mubr.bf16.mxu0 0
  %2416 = vmatmul.mubr.bf16.gmra.mrb[0].mxu0 %v2079
  %v2417 = vpop.f32.mrb[0].mxu0
  %v2418 = vadd.f32 %v2101, %v2417
  %v2419 = vpop.f32.mrb[0].mxu0
  %v2420 = vadd.f32 %v2105, %v2419
  %v2421 = vpop.f32.mrb[0].mxu0
  %v2422 = vadd.f32 %v2101, %v2421
  %v2423 = vpop.f32.mrb[0].mxu0
  %v2424 = vadd.f32 %v2105, %v2423
  %2425 = vmatprep.mubr.bf16.mxu0 0
  %2426 = vmatmul.mubr.bf16.gmra.mrb[0].mxu0 %v2080
  %v2427 = vpop.f32.mrb[0].mxu0
  %v2428 = vadd.f32 %v2101, %v2427
  %v2429 = vpop.f32.mrb[0].mxu0
  %v2430 = vadd.f32 %v2105, %v2429
  %v2431 = vpop.f32.mrb[0].mxu0
  %v2432 = vadd.f32 %v2101, %v2431
  %v2433 = vpop.f32.mrb[0].mxu0
  %v2434 = vadd.f32 %v2105, %v2433
  %2435 = vmatprep.mubr.bf16.mxu0 0
  %2436 = vmatmul.mubr.bf16.gmra.mrb[0].mxu0 %v2081
  %v2437 = vpop.f32.mrb[0].mxu0
  %v2438 = vadd.f32 %v2101, %v2437
  %v2439 = vpop.f32.mrb[0].mxu0
  %v2440 = vadd.f32 %v2105, %v2439
  %v2441 = vpop.f32.mrb[0].mxu0
  %v2442 = vadd.f32 %v2101, %v2441
  %v2443 = vpop.f32.mrb[0].mxu0
  %v2444 = vadd.f32 %v2105, %v2443
  %2445 = vmatprep.mubr.bf16.mxu0 0
  %2446 = vmatmul.mubr.bf16.gmra.mrb[0].mxu0 %v2082
  %v2447 = vpop.f32.mrb[0].mxu0
  %v2448 = vadd.f32 %v2101, %v2447
  %v2449 = vpop.f32.mrb[0].mxu0
  %v2450 = vadd.f32 %v2105, %v2449
  %v2451 = vpop.f32.mrb[0].mxu0
  %v2452 = vadd.f32 %v2101, %v2451
  %v2453 = vpop.f32.mrb[0].mxu0
  %v2454 = vadd.f32 %v2105, %v2453
  %2455 = vmatprep.mubr.bf16.mxu0 0
  %2456 = vmatmul.mubr.bf16.gmra.mrb[0].mxu0 %v2083
  %v2457 = vpop.f32.mrb[0].mxu0
  %v2458 = vadd.f32 %v2101, %v2457
  %v2459 = vpop.f32.mrb[0].mxu0
  %v2460 = vadd.f32 %v2105, %v2459
  %v2461 = vpop.f32.mrb[0].mxu0
  %v2462 = vadd.f32 %v2101, %v2461
  %v2463 = vpop.f32.mrb[0].mxu0
  %v2464 = vadd.f32 %v2105, %v2463
  %2465 = vmatprep.mubr.bf16.mxu0 0
  %2466 = vmatmul.mubr.bf16.gmra.mrb[0].mxu0 %v2084
  %v2467 = vpop.f32.mrb[0].mxu0
  %v2468 = vadd.f32 %v2101, %v2467
  %v2469 = vpop.f32.mrb[0].mxu0
  %v2470 = vadd.f32 %v2105, %v2469
  %v2471 = vpop.f32.mrb[0].mxu0
  %v2472 = vadd.f32 %v2101, %v2471
  %v2473 = vpop.f32.mrb[0].mxu0
  %v2474 = vadd.f32 %v2105, %v2473
  %2475 = vmatprep.mubr.bf16.mxu0 0
  %2476 = vmatmul.mubr.bf16.gmra.mrb[0].mxu0 %v2085
  %v2477 = vpop.f32.mrb[0].mxu0
  %v2478 = vadd.f32 %v2101, %v2477
  %v2479 = vpop.f32.mrb[0].mxu0
  %v2480 = vadd.f32 %v2105, %v2479
  %v2481 = vpop.f32.mrb[0].mxu0
  %v2482 = vadd.f32 %v2101, %v2481
  %v2483 = vpop.f32.mrb[0].mxu0
  %v2484 = vadd.f32 %v2105, %v2483
  %2485 = vmatprep.mubr.bf16.mxu0 0
  %2486 = vmatmul.mubr.bf16.gmra.mrb[0].mxu0 %v2086
  %v2487 = vpop.f32.mrb[0].mxu0
  %v2488 = vadd.f32 %v2101, %v2487
  %v2489 = vpop.f32.mrb[0].mxu0
  %v2490 = vadd.f32 %v2105, %v2489
  %v2491 = vpop.f32.mrb[0].mxu0
  %v2492 = vadd.f32 %v2101, %v2491
  %v2493 = vpop.f32.mrb[0].mxu0
  %v2494 = vadd.f32 %v2105, %v2493
  %2495 = vdwg.mxu0
  %2496 = vst [vmem:[#allocation5] sm:$0xff] %v2305
  %2497 = vst [vmem:[#allocation5 + $0x8] sm:$0xff] %v2307
  %2498 = vst [vmem:[#allocation5 + $0x10] sm:$0xff] %v2418
  %2499 = vst [vmem:[#allocation5 + $0x18] sm:$0xff] %v2420
  %2500 = vst [vmem:[#allocation5 + $0x20] sm:$0xff] %v2309
  %2501 = vst [vmem:[#allocation5 + $0x28] sm:$0xff] %v2311
  %2502 = vst [vmem:[#allocation5 + $0x30] sm:$0xff] %v2422
  %2503 = vst [vmem:[#allocation5 + $0x38] sm:$0xff] %v2424
  %2504 = vst [vmem:[#allocation5 + $0x40] sm:$0xff] %v2315
  %2505 = vst [vmem:[#allocation5 + $0x48] sm:$0xff] %v2317
  %2506 = vst [vmem:[#allocation5 + $0x50] sm:$0xff] %v2428
  %2507 = vst [vmem:[#allocation5 + $0x58] sm:$0xff] %v2430
  %2508 = vst [vmem:[#allocation5 + $0x60] sm:$0xff] %v2319
  %2509 = vst [vmem:[#allocation5 + $0x68] sm:$0xff] %v2321
  %2510 = vst [vmem:[#allocation5 + $0x70] sm:$0xff] %v2432
  %2511 = vst [vmem:[#allocation5 + $0x78] sm:$0xff] %v2434
  %2512 = vst [vmem:[#allocation5 + $0x80] sm:$0xff] %v2325
  %2513 = vst [vmem:[#allocation5 + $0x88] sm:$0xff] %v2327
  %2514 = vst [vmem:[#allocation5 + $0x90] sm:$0xff] %v2438
  %2515 = vst [vmem:[#allocation5 + $0x98] sm:$0xff] %v2440
  %2516 = vst [vmem:[#allocation5 + $0xa0] sm:$0xff] %v2329
  %2517 = vst [vmem:[#allocation5 + $0xa8] sm:$0xff] %v2331
  %2518 = vst [vmem:[#allocation5 + $0xb0] sm:$0xff] %v2442
  %2519 = vst [vmem:[#allocation5 + $0xb8] sm:$0xff] %v2444
  %2520 = vst [vmem:[#allocation5 + $0xc0] sm:$0xff] %v2335
  %2521 = vst [vmem:[#allocation5 + $0xc8] sm:$0xff] %v2337
  %2522 = vst [vmem:[#allocation5 + $0xd0] sm:$0xff] %v2448
  %2523 = vst [vmem:[#allocation5 + $0xd8] sm:$0xff] %v2450
  %2524 = vst [vmem:[#allocation5 + $0xe0] sm:$0xff] %v2339
  %2525 = vst [vmem:[#allocation5 + $0xe8] sm:$0xff] %v2341
  %2526 = vst [vmem:[#allocation5 + $0xf0] sm:$0xff] %v2452
  %2527 = vst [vmem:[#allocation5 + $0xf8] sm:$0xff] %v2454
  %2528 = vst [vmem:[#allocation5 + $0x100] sm:$0xff] %v2345
  %2529 = vst [vmem:[#allocation5 + $0x108] sm:$0xff] %v2347
  %2530 = vst [vmem:[#allocation5 + $0x110] sm:$0xff] %v2458
  %2531 = vst [vmem:[#allocation5 + $0x118] sm:$0xff] %v2460
  %2532 = vst [vmem:[#allocation5 + $0x120] sm:$0xff] %v2349
  %2533 = vst [vmem:[#allocation5 + $0x128] sm:$0xff] %v2351
  %2534 = vst [vmem:[#allocation5 + $0x130] sm:$0xff] %v2462
  %2535 = vst [vmem:[#allocation5 + $0x138] sm:$0xff] %v2464
  %2536 = vst [vmem:[#allocation5 + $0x140] sm:$0xff] %v2355
  %2537 = vst [vmem:[#allocation5 + $0x148] sm:$0xff] %v2357
  %2538 = vst [vmem:[#allocation5 + $0x150] sm:$0xff] %v2468
  %2539 = vst [vmem:[#allocation5 + $0x158] sm:$0xff] %v2470
  %2540 = vst [vmem:[#allocation5 + $0x160] sm:$0xff] %v2359
  %2541 = vst [vmem:[#allocation5 + $0x168] sm:$0xff] %v2361
  %2542 = vst [vmem:[#allocation5 + $0x170] sm:$0xff] %v2472
  %2543 = vst [vmem:[#allocation5 + $0x178] sm:$0xff] %v2474
  %2544 = vst [vmem:[#allocation5 + $0x180] sm:$0xff] %v2365
  %2545 = vst [vmem:[#allocation5 + $0x188] sm:$0xff] %v2367
  %2546 = vst [vmem:[#allocation5 + $0x190] sm:$0xff] %v2478
  %2547 = vst [vmem:[#allocation5 + $0x198] sm:$0xff] %v2480
  %2548 = vst [vmem:[#allocation5 + $0x1a0] sm:$0xff] %v2369
  %2549 = vst [vmem:[#allocation5 + $0x1a8] sm:$0xff] %v2371
  %2550 = vst [vmem:[#allocation5 + $0x1b0] sm:$0xff] %v2482
  %2551 = vst [vmem:[#allocation5 + $0x1b8] sm:$0xff] %v2484
  %2552 = vst [vmem:[#allocation5 + $0x1c0] sm:$0xff] %v2375
  %2553 = vst [vmem:[#allocation5 + $0x1c8] sm:$0xff] %v2377
  %2554 = vst [vmem:[#allocation5 + $0x1d0] sm:$0xff] %v2488
  %2555 = vst [vmem:[#allocation5 + $0x1d8] sm:$0xff] %v2490
  %2556 = vst [vmem:[#allocation5 + $0x1e0] sm:$0xff] %v2379
  %2557 = vst [vmem:[#allocation5 + $0x1e8] sm:$0xff] %v2381
  %2558 = vst [vmem:[#allocation5 + $0x1f0] sm:$0xff] %v2492
  %2559 = vst [vmem:[#allocation5 + $0x1f8] sm:$0xff] %v2494
  %s2560 = scalar_lea.vmem %s2, 256
  %v2561 = vld [vmem:[%s2560] sm:$0xff]
  %v2562 = vld [vmem:[%s2560 + $0x8] sm:$0xff]
  %v2563 = vld [vmem:[%s2560 + $0x10] sm:$0xff]
  %v2564 = vld [vmem:[%s2560 + $0x18] sm:$0xff]
  %v2565 = vld [vmem:[%s2560 + $0x20] sm:$0xff]
  %v2566 = vld [vmem:[%s2560 + $0x28] sm:$0xff]
  %v2567 = vld [vmem:[%s2560 + $0x30] sm:$0xff]
  %v2568 = vld [vmem:[%s2560 + $0x38] sm:$0xff]
  %v2569 = vld [vmem:[%s2560 + $0x40] sm:$0xff]
  %v2570 = vld [vmem:[%s2560 + $0x48] sm:$0xff]
  %v2571 = vld [vmem:[%s2560 + $0x50] sm:$0xff]
  %v2572 = vld [vmem:[%s2560 + $0x58] sm:$0xff]
  %v2573 = vld [vmem:[%s2560 + $0x60] sm:$0xff]
  %v2574 = vld [vmem:[%s2560 + $0x68] sm:$0xff]
  %v2575 = vld [vmem:[%s2560 + $0x70] sm:$0xff]
  %v2576 = vld [vmem:[%s2560 + $0x78] sm:$0xff]
  %v2577 = vld [vmem:[%s2560 + $0x80] sm:$0xff]
  %v2578 = vld [vmem:[%s2560 + $0x88] sm:$0xff]
  %v2579 = vld [vmem:[%s2560 + $0x90] sm:$0xff]
  %v2580 = vld [vmem:[%s2560 + $0x98] sm:$0xff]
  %v2581 = vld [vmem:[%s2560 + $0xa0] sm:$0xff]
  %v2582 = vld [vmem:[%s2560 + $0xa8] sm:$0xff]
  %v2583 = vld [vmem:[%s2560 + $0xb0] sm:$0xff]
  %v2584 = vld [vmem:[%s2560 + $0xb8] sm:$0xff]
  %v2585 = vld [vmem:[%s2560 + $0xc0] sm:$0xff]
  %v2586 = vld [vmem:[%s2560 + $0xc8] sm:$0xff]
  %v2587 = vld [vmem:[%s2560 + $0xd0] sm:$0xff]
  %v2588 = vld [vmem:[%s2560 + $0xd8] sm:$0xff]
  %v2589 = vld [vmem:[%s2560 + $0xe0] sm:$0xff]
  %v2590 = vld [vmem:[%s2560 + $0xe8] sm:$0xff]
  %v2591 = vld [vmem:[%s2560 + $0xf0] sm:$0xff]
  %v2592 = vld [vmem:[%s2560 + $0xf8] sm:$0xff]
  %s2593 = scalar_lea.vmem [#allocation2], 16
  %v2594 = vld [vmem:[%s2593] sm:$0xff]
  %v2595 = vld [vmem:[%s2593 + $0x8] sm:$0xff]
  %s2596 = scalar_lea.vmem [#allocation3], 16
  %v2597 = vld [vmem:[%s2596] sm:$0xff]
  %v2598 = vld [vmem:[%s2596 + $0x8] sm:$0xff]
  %v2599 = vld [vmem:[%s636] sm:$0xff]
  %v2600 = vld [vmem:[%s636 + $0x8] sm:$0xff]
  %v2601 = vld [vmem:[%s636 + $0x10] sm:$0xff]
  %v2602 = vld [vmem:[%s636 + $0x18] sm:$0xff]
  %v2603 = vld [vmem:[%s636 + $0x20] sm:$0xff]
  %v2604 = vld [vmem:[%s636 + $0x28] sm:$0xff]
  %v2605 = vld [vmem:[%s636 + $0x30] sm:$0xff]
  %v2606 = vld [vmem:[%s636 + $0x38] sm:$0xff]
  %v2607 = vpack.c.bf16 %v2595, %v2594
  %v2640 = vunpack.c.l.b16 %v2561
  %v2641 = vunpack.c.h.b16 %v2561
  %v2642 = vunpack.c.l.b16 %v2562
  %v2643 = vunpack.c.h.b16 %v2562
  %v2644 = vunpack.c.l.b16 %v2563
  %v2645 = vunpack.c.h.b16 %v2563
  %v2646 = vunpack.c.l.b16 %v2564
  %v2647 = vunpack.c.h.b16 %v2564
  %v2648 = vunpack.c.l.b16 %v2565
  %v2649 = vunpack.c.h.b16 %v2565
  %v2650 = vunpack.c.l.b16 %v2566
  %v2651 = vunpack.c.h.b16 %v2566
  %v2652 = vunpack.c.l.b16 %v2567
  %v2653 = vunpack.c.h.b16 %v2567
  %v2654 = vunpack.c.l.b16 %v2568
  %v2655 = vunpack.c.h.b16 %v2568
  %v2656 = vunpack.c.l.b16 %v2569
  %v2657 = vunpack.c.h.b16 %v2569
  %v2658 = vunpack.c.l.b16 %v2570
  %v2659 = vunpack.c.h.b16 %v2570
  %v2660 = vunpack.c.l.b16 %v2571
  %v2661 = vunpack.c.h.b16 %v2571
  %v2662 = vunpack.c.l.b16 %v2572
  %v2663 = vunpack.c.h.b16 %v2572
  %v2664 = vunpack.c.l.b16 %v2573
  %v2665 = vunpack.c.h.b16 %v2573
  %v2666 = vunpack.c.l.b16 %v2574
  %v2667 = vunpack.c.h.b16 %v2574
  %v2668 = vunpack.c.l.b16 %v2575
  %v2669 = vunpack.c.h.b16 %v2575
  %v2670 = vunpack.c.l.b16 %v2576
  %v2671 = vunpack.c.h.b16 %v2576
  %v2672 = vunpack.c.l.b16 %v2577
  %v2673 = vunpack.c.h.b16 %v2577
  %v2674 = vunpack.c.l.b16 %v2578
  %v2675 = vunpack.c.h.b16 %v2578
  %v2676 = vunpack.c.l.b16 %v2579
  %v2677 = vunpack.c.h.b16 %v2579
  %v2678 = vunpack.c.l.b16 %v2580
  %v2679 = vunpack.c.h.b16 %v2580
  %v2680 = vunpack.c.l.b16 %v2581
  %v2681 = vunpack.c.h.b16 %v2581
  %v2682 = vunpack.c.l.b16 %v2582
  %v2683 = vunpack.c.h.b16 %v2582
  %v2684 = vunpack.c.l.b16 %v2583
  %v2685 = vunpack.c.h.b16 %v2583
  %v2686 = vunpack.c.l.b16 %v2584
  %v2687 = vunpack.c.h.b16 %v2584
  %v2688 = vunpack.c.l.b16 %v2585
  %v2689 = vunpack.c.h.b16 %v2585
  %v2690 = vunpack.c.l.b16 %v2586
  %v2691 = vunpack.c.h.b16 %v2586
  %v2692 = vunpack.c.l.b16 %v2587
  %v2693 = vunpack.c.h.b16 %v2587
  %v2694 = vunpack.c.l.b16 %v2588
  %v2695 = vunpack.c.h.b16 %v2588
  %v2696 = vunpack.c.l.b16 %v2589
  %v2697 = vunpack.c.h.b16 %v2589
  %v2698 = vunpack.c.l.b16 %v2590
  %v2699 = vunpack.c.h.b16 %v2590
  %v2700 = vunpack.c.l.b16 %v2591
  %v2701 = vunpack.c.h.b16 %v2591
  %v2702 = vunpack.c.l.b16 %v2592
  %v2703 = vunpack.c.h.b16 %v2592
  %v2704 = vpack.c.b16 %v2644, %v2640
  %v2705 = vpack.c.b16 %v2645, %v2641
  %v2706 = vpack.c.b16 %v2646, %v2642
  %v2707 = vpack.c.b16 %v2647, %v2643
  %v2708 = vpack.c.b16 %v2652, %v2648
  %v2709 = vpack.c.b16 %v2653, %v2649
  %v2710 = vpack.c.b16 %v2654, %v2650
  %v2711 = vpack.c.b16 %v2655, %v2651
  %v2712 = vpack.c.b16 %v2660, %v2656
  %v2713 = vpack.c.b16 %v2661, %v2657
  %v2714 = vpack.c.b16 %v2662, %v2658
  %v2715 = vpack.c.b16 %v2663, %v2659
  %v2716 = vpack.c.b16 %v2668, %v2664
  %v2717 = vpack.c.b16 %v2669, %v2665
  %v2718 = vpack.c.b16 %v2670, %v2666
  %v2719 = vpack.c.b16 %v2671, %v2667
  %v2720 = vpack.c.b16 %v2676, %v2672
  %v2721 = vpack.c.b16 %v2677, %v2673
  %v2722 = vpack.c.b16 %v2678, %v2674
  %v2723 = vpack.c.b16 %v2679, %v2675
  %v2724 = vpack.c.b16 %v2684, %v2680
  %v2725 = vpack.c.b16 %v2685, %v2681
  %v2726 = vpack.c.b16 %v2686, %v2682
  %v2727 = vpack.c.b16 %v2687, %v2683
  %v2728 = vpack.c.b16 %v2692, %v2688
  %v2729 = vpack.c.b16 %v2693, %v2689
  %v2730 = vpack.c.b16 %v2694, %v2690
  %v2731 = vpack.c.b16 %v2695, %v2691
  %v2732 = vpack.c.b16 %v2700, %v2696
  %v2733 = vpack.c.b16 %v2701, %v2697
  %v2734 = vpack.c.b16 %v2702, %v2698
  %v2735 = vpack.c.b16 %v2703, %v2699
  %2768 = vmatprep.subr.bf16.mxu0 %v2705
  %2769 = vmatpush1.bf16.msra.mxu0 %v2704
  %2770 = vmatprep.subr.bf16.mxu0 %v2709
  %2771 = vmatpush1.bf16.msra.mxu0 %v2708
  %2772 = vmatprep.subr.bf16.mxu0 %v2713
  %2773 = vmatpush1.bf16.msra.mxu0 %v2712
  %2774 = vmatprep.subr.bf16.mxu0 %v2717
  %2775 = vmatpush1.bf16.msra.mxu0 %v2716
  %2776 = vmatprep.subr.bf16.mxu0 %v2721
  %2777 = vmatpush1.bf16.msra.mxu0 %v2720
  %2778 = vmatprep.subr.bf16.mxu0 %v2725
  %2779 = vmatpush1.bf16.msra.mxu0 %v2724
  %2780 = vmatprep.subr.bf16.mxu0 %v2729
  %2781 = vmatpush1.bf16.msra.mxu0 %v2728
  %2782 = vmatprep.subr.bf16.mxu0 %v2733
  %2783 = vmatpush1.bf16.msra.mxu0 %v2732
  %2784 = vmatprep.subr.bf16.mxu0 0
  %2785 = vmatpush1.bf16.msra.mxu0 0
  %2786 = vmatprep.subr.bf16.mxu0 0
  %2787 = vmatpush1.bf16.msra.mxu0 0
  %2788 = vmatprep.subr.bf16.mxu0 0
  %2789 = vmatpush1.bf16.msra.mxu0 0
  %2790 = vmatprep.subr.bf16.mxu0 0
  %2791 = vmatpush1.bf16.msra.mxu0 0
  %2792 = vmatprep.subr.bf16.mxu0 0
  %2793 = vmatpush1.bf16.msra.mxu0 0
  %2794 = vmatprep.subr.bf16.mxu0 0
  %2795 = vmatpush1.bf16.msra.mxu0 0
  %2796 = vmatprep.subr.bf16.mxu0 0
  %2797 = vmatpush1.bf16.msra.mxu0 0
  %2798 = vmatprep.subr.bf16.mxu0 0
  %2799 = vmatpush1.bf16.msra.mxu0 0
  %2800 = vmatprep.mubr.bf16.mxu0 0
  %2801 = vmatmul.mubr.bf16.gmra.mrb[0].mxu0 %v2607
  %v2802 = vpop.f32.mrb[0].mxu0
  %v2803 = vadd.f32 0.0, %v2802
  %v2804 = vpop.f32.mrb[0].mxu0
  %v2805 = vadd.f32 0.0, %v2804
  %v2806 = vpop.f32.mrb[0].mxu0
  %v2807 = vadd.f32 0.0, %v2806
  %v2808 = vpop.f32.mrb[0].mxu0
  %v2809 = vadd.f32 0.0, %v2808
  %2810 = vdwg.mxu0
  %2811 = vmatprep.subr.bf16.mxu0 %v2707
  %2812 = vmatpush1.bf16.msra.mxu0 %v2706
  %2813 = vmatprep.subr.bf16.mxu0 %v2711
  %2814 = vmatpush1.bf16.msra.mxu0 %v2710
  %2815 = vmatprep.subr.bf16.mxu0 %v2715
  %2816 = vmatpush1.bf16.msra.mxu0 %v2714
  %2817 = vmatprep.subr.bf16.mxu0 %v2719
  %2818 = vmatpush1.bf16.msra.mxu0 %v2718
  %2819 = vmatprep.subr.bf16.mxu0 %v2723
  %2820 = vmatpush1.bf16.msra.mxu0 %v2722
  %2821 = vmatprep.subr.bf16.mxu0 %v2727
  %2822 = vmatpush1.bf16.msra.mxu0 %v2726
  %2823 = vmatprep.subr.bf16.mxu0 %v2731
  %2824 = vmatpush1.bf16.msra.mxu0 %v2730
  %2825 = vmatprep.subr.bf16.mxu0 %v2735
  %2826 = vmatpush1.bf16.msra.mxu0 %v2734
  %2827 = vmatprep.subr.bf16.mxu0 0
  %2828 = vmatpush1.bf16.msra.mxu0 0
  %2829 = vmatprep.subr.bf16.mxu0 0
  %2830 = vmatpush1.bf16.msra.mxu0 0
  %2831 = vmatprep.subr.bf16.mxu0 0
  %2832 = vmatpush1.bf16.msra.mxu0 0
  %2833 = vmatprep.subr.bf16.mxu0 0
  %2834 = vmatpush1.bf16.msra.mxu0 0
  %2835 = vmatprep.subr.bf16.mxu0 0
  %2836 = vmatpush1.bf16.msra.mxu0 0
  %2837 = vmatprep.subr.bf16.mxu0 0
  %2838 = vmatpush1.bf16.msra.mxu0 0
  %2839 = vmatprep.subr.bf16.mxu0 0
  %2840 = vmatpush1.bf16.msra.mxu0 0
  %2841 = vmatprep.subr.bf16.mxu0 0
  %2842 = vmatpush1.bf16.msra.mxu0 0
  %2843 = vmatprep.mubr.bf16.mxu0 0
  %2844 = vmatmul.mubr.bf16.gmra.mrb[0].mxu0 %v2607
  %v2845 = vpop.f32.mrb[0].mxu0
  %v2846 = vadd.f32 0.0, %v2845
  %v2847 = vpop.f32.mrb[0].mxu0
  %v2848 = vadd.f32 0.0, %v2847
  %v2849 = vpop.f32.mrb[0].mxu0
  %v2850 = vadd.f32 0.0, %v2849
  %v2851 = vpop.f32.mrb[0].mxu0
  %v2852 = vadd.f32 0.0, %v2851
  %2853 = vdwg.mxu0
  %v2854 = vadd.f32 %v2599, %v2803
  %v2855 = vadd.f32 %v2600, %v2805
  %v2856 = vadd.f32 %v2601, %v2846
  %v2857 = vadd.f32 %v2602, %v2848
  %v2858 = vadd.f32 %v2603, %v2807
  %v2859 = vadd.f32 %v2604, %v2809
  %v2860 = vadd.f32 %v2605, %v2850
  %v2861 = vadd.f32 %v2606, %v2852
  %v2862 = vxor.u32 %v2854, 2147483648
  %v2863 = vxor.u32 %v2858, 2147483648
  %v2864 = vmul.f32 %v2862, 1.442695
  %v2865 = vpow.pop %v2864
  %v2866 = vmul.f32 %v2863, 1.442695
  %v2867 = vpow.pop %v2866
  %v2868 = vadd.f32 %v2865, 1.0
  %v2869 = vadd.f32 %v2867, 1.0
  %v2870 = vrcp.pop %v2868
  %v2871 = vmul.f32 1.0, %v2870
  %v2872 = vrcp.pop %v2869
  %v2873 = vmul.f32 1.0, %v2872
  %v2874 = vxor.u32 %v2855, 2147483648
  %v2875 = vxor.u32 %v2859, 2147483648
  %v2876 = vmul.f32 %v2874, 1.442695
  %v2877 = vpow.pop %v2876
  %v2878 = vmul.f32 %v2875, 1.442695
  %v2879 = vpow.pop %v2878
  %v2880 = vadd.f32 %v2877, 1.0
  %v2881 = vadd.f32 %v2879, 1.0
  %v2882 = vrcp.pop %v2880
  %v2883 = vmul.f32 1.0, %v2882
  %v2884 = vrcp.pop %v2881
  %v2885 = vmul.f32 1.0, %v2884
  %v2886 = vtanh.pop %v2856
  %v2887 = vtanh.pop %v2860
  %v2888 = vxor.u32 %v2857, 2147483648
  %v2889 = vxor.u32 %v2861, 2147483648
  %v2890 = vmul.f32 %v2888, 1.442695
  %v2891 = vpow.pop %v2890
  %v2892 = vmul.f32 %v2889, 1.442695
  %v2893 = vpow.pop %v2892
  %v2894 = vadd.f32 %v2891, 1.0
  %v2895 = vadd.f32 %v2893, 1.0
  %v2896 = vrcp.pop %v2894
  %v2897 = vmul.f32 1.0, %v2896
  %v2898 = vrcp.pop %v2895
  %v2899 = vmul.f32 1.0, %v2898
  %v2900 = vmul.f32 %v2883, %v2597
  %v2901 = vmul.f32 %v2885, %v2598
  %v2902 = vmul.f32 %v2871, %v2886
  %v2903 = vmul.f32 %v2873, %v2887
  %v2904 = vadd.f32 %v2900, %v2902
  %v2905 = vadd.f32 %v2901, %v2903
  %v2906 = vtanh.pop %v2904
  %v2907 = vtanh.pop %v2905
  %v2908 = vmul.f32 %v2897, %v2906
  %v2909 = vmul.f32 %v2899, %v2907
  %v2910 = vld [vmem:[%s952] sm:$0xff]
  %v2911 = vld [vmem:[%s952 + $0x8] sm:$0xff]
  %v2912 = vld [vmem:[%s952 + $0x10] sm:$0xff]
  %v2913 = vld [vmem:[%s952 + $0x18] sm:$0xff]
  %v2914 = vld [vmem:[%s952 + $0x20] sm:$0xff]
  %v2915 = vld [vmem:[%s952 + $0x28] sm:$0xff]
  %v2916 = vld [vmem:[%s952 + $0x30] sm:$0xff]
  %v2917 = vld [vmem:[%s952 + $0x38] sm:$0xff]
  %v2918 = vpack.c.bf16 %v2909, %v2908
  %2919 = vmatprep.subr.bf16.mxu0 %v2705
  %2920 = vmatpush1.bf16.msra.mxu0 %v2704
  %2921 = vmatprep.subr.bf16.mxu0 %v2709
  %2922 = vmatpush1.bf16.msra.mxu0 %v2708
  %2923 = vmatprep.subr.bf16.mxu0 %v2713
  %2924 = vmatpush1.bf16.msra.mxu0 %v2712
  %2925 = vmatprep.subr.bf16.mxu0 %v2717
  %2926 = vmatpush1.bf16.msra.mxu0 %v2716
  %2927 = vmatprep.subr.bf16.mxu0 %v2721
  %2928 = vmatpush1.bf16.msra.mxu0 %v2720
  %2929 = vmatprep.subr.bf16.mxu0 %v2725
  %2930 = vmatpush1.bf16.msra.mxu0 %v2724
  %2931 = vmatprep.subr.bf16.mxu0 %v2729
  %2932 = vmatpush1.bf16.msra.mxu0 %v2728
  %2933 = vmatprep.subr.bf16.mxu0 %v2733
  %2934 = vmatpush1.bf16.msra.mxu0 %v2732
  %2935 = vmatprep.subr.bf16.mxu0 0
  %2936 = vmatpush1.bf16.msra.mxu0 0
  %2937 = vmatprep.subr.bf16.mxu0 0
  %2938 = vmatpush1.bf16.msra.mxu0 0
  %2939 = vmatprep.subr.bf16.mxu0 0
  %2940 = vmatpush1.bf16.msra.mxu0 0
  %2941 = vmatprep.subr.bf16.mxu0 0
  %2942 = vmatpush1.bf16.msra.mxu0 0
  %2943 = vmatprep.subr.bf16.mxu0 0
  %2944 = vmatpush1.bf16.msra.mxu0 0
  %2945 = vmatprep.subr.bf16.mxu0 0
  %2946 = vmatpush1.bf16.msra.mxu0 0
  %2947 = vmatprep.subr.bf16.mxu0 0
  %2948 = vmatpush1.bf16.msra.mxu0 0
  %2949 = vmatprep.subr.bf16.mxu0 0
  %2950 = vmatpush1.bf16.msra.mxu0 0
  %2951 = vmatprep.mubr.bf16.mxu0 0
  %2952 = vmatmul.mubr.bf16.gmra.mrb[0].mxu0 %v2918
  %v2953 = vpop.f32.mrb[0].mxu0
  %v2954 = vadd.f32 0.0, %v2953
  %v2955 = vpop.f32.mrb[0].mxu0
  %v2956 = vadd.f32 0.0, %v2955
  %v2957 = vpop.f32.mrb[0].mxu0
  %v2958 = vadd.f32 0.0, %v2957
  %v2959 = vpop.f32.mrb[0].mxu0
  %v2960 = vadd.f32 0.0, %v2959
  %2961 = vdwg.mxu0
  %2962 = vmatprep.subr.bf16.mxu0 %v2707
  %2963 = vmatpush1.bf16.msra.mxu0 %v2706
  %2964 = vmatprep.subr.bf16.mxu0 %v2711
  %2965 = vmatpush1.bf16.msra.mxu0 %v2710
  %2966 = vmatprep.subr.bf16.mxu0 %v2715
  %2967 = vmatpush1.bf16.msra.mxu0 %v2714
  %2968 = vmatprep.subr.bf16.mxu0 %v2719
  %2969 = vmatpush1.bf16.msra.mxu0 %v2718
  %2970 = vmatprep.subr.bf16.mxu0 %v2723
  %2971 = vmatpush1.bf16.msra.mxu0 %v2722
  %2972 = vmatprep.subr.bf16.mxu0 %v2727
  %2973 = vmatpush1.bf16.msra.mxu0 %v2726
  %2974 = vmatprep.subr.bf16.mxu0 %v2731
  %2975 = vmatpush1.bf16.msra.mxu0 %v2730
  %2976 = vmatprep.subr.bf16.mxu0 %v2735
  %2977 = vmatpush1.bf16.msra.mxu0 %v2734
  %2978 = vmatprep.subr.bf16.mxu0 0
  %2979 = vmatpush1.bf16.msra.mxu0 0
  %2980 = vmatprep.subr.bf16.mxu0 0
  %2981 = vmatpush1.bf16.msra.mxu0 0
  %2982 = vmatprep.subr.bf16.mxu0 0
  %2983 = vmatpush1.bf16.msra.mxu0 0
  %2984 = vmatprep.subr.bf16.mxu0 0
  %2985 = vmatpush1.bf16.msra.mxu0 0
  %2986 = vmatprep.subr.bf16.mxu0 0
  %2987 = vmatpush1.bf16.msra.mxu0 0
  %2988 = vmatprep.subr.bf16.mxu0 0
  %2989 = vmatpush1.bf16.msra.mxu0 0
  %2990 = vmatprep.subr.bf16.mxu0 0
  %2991 = vmatpush1.bf16.msra.mxu0 0
  %2992 = vmatprep.subr.bf16.mxu0 0
  %2993 = vmatpush1.bf16.msra.mxu0 0
  %2994 = vmatprep.mubr.bf16.mxu0 0
  %2995 = vmatmul.mubr.bf16.gmra.mrb[0].mxu0 %v2918
  %v2996 = vpop.f32.mrb[0].mxu0
  %v2997 = vadd.f32 0.0, %v2996
  %v2998 = vpop.f32.mrb[0].mxu0
  %v2999 = vadd.f32 0.0, %v2998
  %v3000 = vpop.f32.mrb[0].mxu0
  %v3001 = vadd.f32 0.0, %v3000
  %v3002 = vpop.f32.mrb[0].mxu0
  %v3003 = vadd.f32 0.0, %v3002
  %3004 = vdwg.mxu0
  %v3005 = vadd.f32 %v2910, %v2954
  %v3006 = vadd.f32 %v2911, %v2956
  %v3007 = vadd.f32 %v2912, %v2997
  %v3008 = vadd.f32 %v2913, %v2999
  %v3009 = vadd.f32 %v2914, %v2958
  %v3010 = vadd.f32 %v2915, %v2960
  %v3011 = vadd.f32 %v2916, %v3001
  %v3012 = vadd.f32 %v2917, %v3003
  %v3013 = vxor.u32 %v3005, 2147483648
  %v3014 = vxor.u32 %v3009, 2147483648
  %v3015 = vmul.f32 %v3013, 1.442695
  %v3016 = vpow.pop %v3015
  %v3017 = vmul.f32 %v3014, 1.442695
  %v3018 = vpow.pop %v3017
  %v3019 = vadd.f32 %v3016, 1.0
  %v3020 = vadd.f32 %v3018, 1.0
  %v3021 = vrcp.pop %v3019
  %v3022 = vmul.f32 1.0, %v3021
  %v3023 = vrcp.pop %v3020
  %v3024 = vmul.f32 1.0, %v3023
  %v3025 = vxor.u32 %v3006, 2147483648
  %v3026 = vxor.u32 %v3010, 2147483648
  %v3027 = vmul.f32 %v3025, 1.442695
  %v3028 = vpow.pop %v3027
  %v3029 = vmul.f32 %v3026, 1.442695
  %v3030 = vpow.pop %v3029
  %v3031 = vadd.f32 %v3028, 1.0
  %v3032 = vadd.f32 %v3030, 1.0
  %v3033 = vrcp.pop %v3031
  %v3034 = vmul.f32 1.0, %v3033
  %v3035 = vrcp.pop %v3032
  %v3036 = vmul.f32 1.0, %v3035
  %v3037 = vtanh.pop %v3007
  %v3038 = vtanh.pop %v3011
  %v3039 = vxor.u32 %v3008, 2147483648
  %v3040 = vxor.u32 %v3012, 2147483648
  %v3041 = vmul.f32 %v3039, 1.442695
  %v3042 = vpow.pop %v3041
  %v3043 = vmul.f32 %v3040, 1.442695
  %v3044 = vpow.pop %v3043
  %v3045 = vadd.f32 %v3042, 1.0
  %v3046 = vadd.f32 %v3044, 1.0
  %v3047 = vrcp.pop %v3045
  %v3048 = vmul.f32 1.0, %v3047
  %v3049 = vrcp.pop %v3046
  %v3050 = vmul.f32 1.0, %v3049
  %v3051 = vmul.f32 %v3034, %v2904
  %v3052 = vmul.f32 %v3036, %v2905
  %v3053 = vmul.f32 %v3022, %v3037
  %v3054 = vmul.f32 %v3024, %v3038
  %v3055 = vadd.f32 %v3051, %v3053
  %v3056 = vadd.f32 %v3052, %v3054
  %v3057 = vtanh.pop %v3055
  %v3058 = vtanh.pop %v3056
  %v3059 = vmul.f32 %v3048, %v3057
  %v3060 = vmul.f32 %v3050, %v3058
  %v3061 = vld [vmem:[%s1108] sm:$0xff]
  %v3062 = vld [vmem:[%s1108 + $0x8] sm:$0xff]
  %v3063 = vld [vmem:[%s1108 + $0x10] sm:$0xff]
  %v3064 = vld [vmem:[%s1108 + $0x18] sm:$0xff]
  %v3065 = vld [vmem:[%s1108 + $0x20] sm:$0xff]
  %v3066 = vld [vmem:[%s1108 + $0x28] sm:$0xff]
  %v3067 = vld [vmem:[%s1108 + $0x30] sm:$0xff]
  %v3068 = vld [vmem:[%s1108 + $0x38] sm:$0xff]
  %v3069 = vpack.c.bf16 %v3060, %v3059
  %3070 = vmatprep.subr.bf16.mxu0 %v2705
  %3071 = vmatpush1.bf16.msra.mxu0 %v2704
  %3072 = vmatprep.subr.bf16.mxu0 %v2709
  %3073 = vmatpush1.bf16.msra.mxu0 %v2708
  %3074 = vmatprep.subr.bf16.mxu0 %v2713
  %3075 = vmatpush1.bf16.msra.mxu0 %v2712
  %3076 = vmatprep.subr.bf16.mxu0 %v2717
  %3077 = vmatpush1.bf16.msra.mxu0 %v2716
  %3078 = vmatprep.subr.bf16.mxu0 %v2721
  %3079 = vmatpush1.bf16.msra.mxu0 %v2720
  %3080 = vmatprep.subr.bf16.mxu0 %v2725
  %3081 = vmatpush1.bf16.msra.mxu0 %v2724
  %3082 = vmatprep.subr.bf16.mxu0 %v2729
  %3083 = vmatpush1.bf16.msra.mxu0 %v2728
  %3084 = vmatprep.subr.bf16.mxu0 %v2733
  %3085 = vmatpush1.bf16.msra.mxu0 %v2732
  %3086 = vmatprep.subr.bf16.mxu0 0
  %3087 = vmatpush1.bf16.msra.mxu0 0
  %3088 = vmatprep.subr.bf16.mxu0 0
  %3089 = vmatpush1.bf16.msra.mxu0 0
  %3090 = vmatprep.subr.bf16.mxu0 0
  %3091 = vmatpush1.bf16.msra.mxu0 0
  %3092 = vmatprep.subr.bf16.mxu0 0
  %3093 = vmatpush1.bf16.msra.mxu0 0
  %3094 = vmatprep.subr.bf16.mxu0 0
  %3095 = vmatpush1.bf16.msra.mxu0 0
  %3096 = vmatprep.subr.bf16.mxu0 0
  %3097 = vmatpush1.bf16.msra.mxu0 0
  %3098 = vmatprep.subr.bf16.mxu0 0
  %3099 = vmatpush1.bf16.msra.mxu0 0
  %3100 = vmatprep.subr.bf16.mxu0 0
  %3101 = vmatpush1.bf16.msra.mxu0 0
  %3102 = vmatprep.mubr.bf16.mxu0 0
  %3103 = vmatmul.mubr.bf16.gmra.mrb[0].mxu0 %v3069
  %v3104 = vpop.f32.mrb[0].mxu0
  %v3105 = vadd.f32 0.0, %v3104
  %v3106 = vpop.f32.mrb[0].mxu0
  %v3107 = vadd.f32 0.0, %v3106
  %v3108 = vpop.f32.mrb[0].mxu0
  %v3109 = vadd.f32 0.0, %v3108
  %v3110 = vpop.f32.mrb[0].mxu0
  %v3111 = vadd.f32 0.0, %v3110
  %3112 = vdwg.mxu0
  %3113 = vmatprep.subr.bf16.mxu0 %v2707
  %3114 = vmatpush1.bf16.msra.mxu0 %v2706
  %3115 = vmatprep.subr.bf16.mxu0 %v2711
  %3116 = vmatpush1.bf16.msra.mxu0 %v2710
  %3117 = vmatprep.subr.bf16.mxu0 %v2715
  %3118 = vmatpush1.bf16.msra.mxu0 %v2714
  %3119 = vmatprep.subr.bf16.mxu0 %v2719
  %3120 = vmatpush1.bf16.msra.mxu0 %v2718
  %3121 = vmatprep.subr.bf16.mxu0 %v2723
  %3122 = vmatpush1.bf16.msra.mxu0 %v2722
  %3123 = vmatprep.subr.bf16.mxu0 %v2727
  %3124 = vmatpush1.bf16.msra.mxu0 %v2726
  %3125 = vmatprep.subr.bf16.mxu0 %v2731
  %3126 = vmatpush1.bf16.msra.mxu0 %v2730
  %3127 = vmatprep.subr.bf16.mxu0 %v2735
  %3128 = vmatpush1.bf16.msra.mxu0 %v2734
  %3129 = vmatprep.subr.bf16.mxu0 0
  %3130 = vmatpush1.bf16.msra.mxu0 0
  %3131 = vmatprep.subr.bf16.mxu0 0
  %3132 = vmatpush1.bf16.msra.mxu0 0
  %3133 = vmatprep.subr.bf16.mxu0 0
  %3134 = vmatpush1.bf16.msra.mxu0 0
  %3135 = vmatprep.subr.bf16.mxu0 0
  %3136 = vmatpush1.bf16.msra.mxu0 0
  %3137 = vmatprep.subr.bf16.mxu0 0
  %3138 = vmatpush1.bf16.msra.mxu0 0
  %3139 = vmatprep.subr.bf16.mxu0 0
  %3140 = vmatpush1.bf16.msra.mxu0 0
  %3141 = vmatprep.subr.bf16.mxu0 0
  %3142 = vmatpush1.bf16.msra.mxu0 0
  %3143 = vmatprep.subr.bf16.mxu0 0
  %3144 = vmatpush1.bf16.msra.mxu0 0
  %3145 = vmatprep.mubr.bf16.mxu0 0
  %3146 = vmatmul.mubr.bf16.gmra.mrb[0].mxu0 %v3069
  %v3147 = vpop.f32.mrb[0].mxu0
  %v3148 = vadd.f32 0.0, %v3147
  %v3149 = vpop.f32.mrb[0].mxu0
  %v3150 = vadd.f32 0.0, %v3149
  %v3151 = vpop.f32.mrb[0].mxu0
  %v3152 = vadd.f32 0.0, %v3151
  %v3153 = vpop.f32.mrb[0].mxu0
  %v3154 = vadd.f32 0.0, %v3153
  %3155 = vdwg.mxu0
  %v3156 = vadd.f32 %v3061, %v3105
  %v3157 = vadd.f32 %v3062, %v3107
  %v3158 = vadd.f32 %v3063, %v3148
  %v3159 = vadd.f32 %v3064, %v3150
  %v3160 = vadd.f32 %v3065, %v3109
  %v3161 = vadd.f32 %v3066, %v3111
  %v3162 = vadd.f32 %v3067, %v3152
  %v3163 = vadd.f32 %v3068, %v3154
  %v3164 = vxor.u32 %v3156, 2147483648
  %v3165 = vxor.u32 %v3160, 2147483648
  %v3166 = vmul.f32 %v3164, 1.442695
  %v3167 = vpow.pop %v3166
  %v3168 = vmul.f32 %v3165, 1.442695
  %v3169 = vpow.pop %v3168
  %v3170 = vadd.f32 %v3167, 1.0
  %v3171 = vadd.f32 %v3169, 1.0
  %v3172 = vrcp.pop %v3170
  %v3173 = vmul.f32 1.0, %v3172
  %v3174 = vrcp.pop %v3171
  %v3175 = vmul.f32 1.0, %v3174
  %v3176 = vxor.u32 %v3157, 2147483648
  %v3177 = vxor.u32 %v3161, 2147483648
  %v3178 = vmul.f32 %v3176, 1.442695
  %v3179 = vpow.pop %v3178
  %v3180 = vmul.f32 %v3177, 1.442695
  %v3181 = vpow.pop %v3180
  %v3182 = vadd.f32 %v3179, 1.0
  %v3183 = vadd.f32 %v3181, 1.0
  %v3184 = vrcp.pop %v3182
  %v3185 = vmul.f32 1.0, %v3184
  %v3186 = vrcp.pop %v3183
  %v3187 = vmul.f32 1.0, %v3186
  %v3188 = vtanh.pop %v3158
  %v3189 = vtanh.pop %v3162
  %v3190 = vxor.u32 %v3159, 2147483648
  %v3191 = vxor.u32 %v3163, 2147483648
  %v3192 = vmul.f32 %v3190, 1.442695
  %v3193 = vpow.pop %v3192
  %v3194 = vmul.f32 %v3191, 1.442695
  %v3195 = vpow.pop %v3194
  %v3196 = vadd.f32 %v3193, 1.0
  %v3197 = vadd.f32 %v3195, 1.0
  %v3198 = vrcp.pop %v3196
  %v3199 = vmul.f32 1.0, %v3198
  %v3200 = vrcp.pop %v3197
  %v3201 = vmul.f32 1.0, %v3200
  %v3202 = vmul.f32 %v3185, %v3055
  %v3203 = vmul.f32 %v3187, %v3056
  %v3204 = vmul.f32 %v3173, %v3188
  %v3205 = vmul.f32 %v3175, %v3189
  %v3206 = vadd.f32 %v3202, %v3204
  %v3207 = vadd.f32 %v3203, %v3205
  %v3208 = vtanh.pop %v3206
  %v3209 = vtanh.pop %v3207
  %v3210 = vmul.f32 %v3199, %v3208
  %v3211 = vmul.f32 %v3201, %v3209
  %v3212 = vld [vmem:[%s1264] sm:$0xff]
  %v3213 = vld [vmem:[%s1264 + $0x8] sm:$0xff]
  %v3214 = vld [vmem:[%s1264 + $0x10] sm:$0xff]
  %v3215 = vld [vmem:[%s1264 + $0x18] sm:$0xff]
  %v3216 = vld [vmem:[%s1264 + $0x20] sm:$0xff]
  %v3217 = vld [vmem:[%s1264 + $0x28] sm:$0xff]
  %v3218 = vld [vmem:[%s1264 + $0x30] sm:$0xff]
  %v3219 = vld [vmem:[%s1264 + $0x38] sm:$0xff]
  %v3220 = vpack.c.bf16 %v3211, %v3210
  %3221 = vmatprep.subr.bf16.mxu0 %v2705
  %3222 = vmatpush1.bf16.msra.mxu0 %v2704
  %3223 = vmatprep.subr.bf16.mxu0 %v2709
  %3224 = vmatpush1.bf16.msra.mxu0 %v2708
  %3225 = vmatprep.subr.bf16.mxu0 %v2713
  %3226 = vmatpush1.bf16.msra.mxu0 %v2712
  %3227 = vmatprep.subr.bf16.mxu0 %v2717
  %3228 = vmatpush1.bf16.msra.mxu0 %v2716
  %3229 = vmatprep.subr.bf16.mxu0 %v2721
  %3230 = vmatpush1.bf16.msra.mxu0 %v2720
  %3231 = vmatprep.subr.bf16.mxu0 %v2725
  %3232 = vmatpush1.bf16.msra.mxu0 %v2724
  %3233 = vmatprep.subr.bf16.mxu0 %v2729
  %3234 = vmatpush1.bf16.msra.mxu0 %v2728
  %3235 = vmatprep.subr.bf16.mxu0 %v2733
  %3236 = vmatpush1.bf16.msra.mxu0 %v2732
  %3237 = vmatprep.subr.bf16.mxu0 0
  %3238 = vmatpush1.bf16.msra.mxu0 0
  %3239 = vmatprep.subr.bf16.mxu0 0
  %3240 = vmatpush1.bf16.msra.mxu0 0
  %3241 = vmatprep.subr.bf16.mxu0 0
  %3242 = vmatpush1.bf16.msra.mxu0 0
  %3243 = vmatprep.subr.bf16.mxu0 0
  %3244 = vmatpush1.bf16.msra.mxu0 0
  %3245 = vmatprep.subr.bf16.mxu0 0
  %3246 = vmatpush1.bf16.msra.mxu0 0
  %3247 = vmatprep.subr.bf16.mxu0 0
  %3248 = vmatpush1.bf16.msra.mxu0 0
  %3249 = vmatprep.subr.bf16.mxu0 0
  %3250 = vmatpush1.bf16.msra.mxu0 0
  %3251 = vmatprep.subr.bf16.mxu0 0
  %3252 = vmatpush1.bf16.msra.mxu0 0
  %3253 = vmatprep.mubr.bf16.mxu0 0
  %3254 = vmatmul.mubr.bf16.gmra.mrb[0].mxu0 %v3220
  %v3255 = vpop.f32.mrb[0].mxu0
  %v3256 = vadd.f32 0.0, %v3255
  %v3257 = vpop.f32.mrb[0].mxu0
  %v3258 = vadd.f32 0.0, %v3257
  %v3259 = vpop.f32.mrb[0].mxu0
  %v3260 = vadd.f32 0.0, %v3259
  %v3261 = vpop.f32.mrb[0].mxu0
  %v3262 = vadd.f32 0.0, %v3261
  %3263 = vdwg.mxu0
  %3264 = vmatprep.subr.bf16.mxu0 %v2707
  %3265 = vmatpush1.bf16.msra.mxu0 %v2706
  %3266 = vmatprep.subr.bf16.mxu0 %v2711
  %3267 = vmatpush1.bf16.msra.mxu0 %v2710
  %3268 = vmatprep.subr.bf16.mxu0 %v2715
  %3269 = vmatpush1.bf16.msra.mxu0 %v2714
  %3270 = vmatprep.subr.bf16.mxu0 %v2719
  %3271 = vmatpush1.bf16.msra.mxu0 %v2718
  %3272 = vmatprep.subr.bf16.mxu0 %v2723
  %3273 = vmatpush1.bf16.msra.mxu0 %v2722
  %3274 = vmatprep.subr.bf16.mxu0 %v2727
  %3275 = vmatpush1.bf16.msra.mxu0 %v2726
  %3276 = vmatprep.subr.bf16.mxu0 %v2731
  %3277 = vmatpush1.bf16.msra.mxu0 %v2730
  %3278 = vmatprep.subr.bf16.mxu0 %v2735
  %3279 = vmatpush1.bf16.msra.mxu0 %v2734
  %3280 = vmatprep.subr.bf16.mxu0 0
  %3281 = vmatpush1.bf16.msra.mxu0 0
  %3282 = vmatprep.subr.bf16.mxu0 0
  %3283 = vmatpush1.bf16.msra.mxu0 0
  %3284 = vmatprep.subr.bf16.mxu0 0
  %3285 = vmatpush1.bf16.msra.mxu0 0
  %3286 = vmatprep.subr.bf16.mxu0 0
  %3287 = vmatpush1.bf16.msra.mxu0 0
  %3288 = vmatprep.subr.bf16.mxu0 0
  %3289 = vmatpush1.bf16.msra.mxu0 0
  %3290 = vmatprep.subr.bf16.mxu0 0
  %3291 = vmatpush1.bf16.msra.mxu0 0
  %3292 = vmatprep.subr.bf16.mxu0 0
  %3293 = vmatpush1.bf16.msra.mxu0 0
  %3294 = vmatprep.subr.bf16.mxu0 0
  %3295 = vmatpush1.bf16.msra.mxu0 0
  %3296 = vmatprep.mubr.bf16.mxu0 0
  %3297 = vmatmul.mubr.bf16.gmra.mrb[0].mxu0 %v3220
  %v3298 = vpop.f32.mrb[0].mxu0
  %v3299 = vadd.f32 0.0, %v3298
  %v3300 = vpop.f32.mrb[0].mxu0
  %v3301 = vadd.f32 0.0, %v3300
  %v3302 = vpop.f32.mrb[0].mxu0
  %v3303 = vadd.f32 0.0, %v3302
  %v3304 = vpop.f32.mrb[0].mxu0
  %v3305 = vadd.f32 0.0, %v3304
  %3306 = vdwg.mxu0
  %v3307 = vadd.f32 %v3212, %v3256
  %v3308 = vadd.f32 %v3213, %v3258
  %v3309 = vadd.f32 %v3214, %v3299
  %v3310 = vadd.f32 %v3215, %v3301
  %v3311 = vadd.f32 %v3216, %v3260
  %v3312 = vadd.f32 %v3217, %v3262
  %v3313 = vadd.f32 %v3218, %v3303
  %v3314 = vadd.f32 %v3219, %v3305
  %v3315 = vxor.u32 %v3307, 2147483648
  %v3316 = vxor.u32 %v3311, 2147483648
  %v3317 = vmul.f32 %v3315, 1.442695
  %v3318 = vpow.pop %v3317
  %v3319 = vmul.f32 %v3316, 1.442695
  %v3320 = vpow.pop %v3319
  %v3321 = vadd.f32 %v3318, 1.0
  %v3322 = vadd.f32 %v3320, 1.0
  %v3323 = vrcp.pop %v3321
  %v3324 = vmul.f32 1.0, %v3323
  %v3325 = vrcp.pop %v3322
  %v3326 = vmul.f32 1.0, %v3325
  %v3327 = vxor.u32 %v3308, 2147483648
  %v3328 = vxor.u32 %v3312, 2147483648
  %v3329 = vmul.f32 %v3327, 1.442695
  %v3330 = vpow.pop %v3329
  %v3331 = vmul.f32 %v3328, 1.442695
  %v3332 = vpow.pop %v3331
  %v3333 = vadd.f32 %v3330, 1.0
  %v3334 = vadd.f32 %v3332, 1.0
  %v3335 = vrcp.pop %v3333
  %v3336 = vmul.f32 1.0, %v3335
  %v3337 = vrcp.pop %v3334
  %v3338 = vmul.f32 1.0, %v3337
  %v3339 = vtanh.pop %v3309
  %v3340 = vtanh.pop %v3313
  %v3341 = vxor.u32 %v3310, 2147483648
  %v3342 = vxor.u32 %v3314, 2147483648
  %v3343 = vmul.f32 %v3341, 1.442695
  %v3344 = vpow.pop %v3343
  %v3345 = vmul.f32 %v3342, 1.442695
  %v3346 = vpow.pop %v3345
  %v3347 = vadd.f32 %v3344, 1.0
  %v3348 = vadd.f32 %v3346, 1.0
  %v3349 = vrcp.pop %v3347
  %v3350 = vmul.f32 1.0, %v3349
  %v3351 = vrcp.pop %v3348
  %v3352 = vmul.f32 1.0, %v3351
  %v3353 = vmul.f32 %v3336, %v3206
  %v3354 = vmul.f32 %v3338, %v3207
  %v3355 = vmul.f32 %v3324, %v3339
  %v3356 = vmul.f32 %v3326, %v3340
  %v3357 = vadd.f32 %v3353, %v3355
  %v3358 = vadd.f32 %v3354, %v3356
  %v3359 = vtanh.pop %v3357
  %v3360 = vtanh.pop %v3358
  %v3361 = vmul.f32 %v3350, %v3359
  %v3362 = vmul.f32 %v3352, %v3360
  %v3363 = vld [vmem:[%s1420] sm:$0xff]
  %v3364 = vld [vmem:[%s1420 + $0x8] sm:$0xff]
  %v3365 = vld [vmem:[%s1420 + $0x10] sm:$0xff]
  %v3366 = vld [vmem:[%s1420 + $0x18] sm:$0xff]
  %v3367 = vld [vmem:[%s1420 + $0x20] sm:$0xff]
  %v3368 = vld [vmem:[%s1420 + $0x28] sm:$0xff]
  %v3369 = vld [vmem:[%s1420 + $0x30] sm:$0xff]
  %v3370 = vld [vmem:[%s1420 + $0x38] sm:$0xff]
  %v3371 = vpack.c.bf16 %v3362, %v3361
  %3372 = vmatprep.subr.bf16.mxu0 %v2705
  %3373 = vmatpush1.bf16.msra.mxu0 %v2704
  %3374 = vmatprep.subr.bf16.mxu0 %v2709
  %3375 = vmatpush1.bf16.msra.mxu0 %v2708
  %3376 = vmatprep.subr.bf16.mxu0 %v2713
  %3377 = vmatpush1.bf16.msra.mxu0 %v2712
  %3378 = vmatprep.subr.bf16.mxu0 %v2717
  %3379 = vmatpush1.bf16.msra.mxu0 %v2716
  %3380 = vmatprep.subr.bf16.mxu0 %v2721
  %3381 = vmatpush1.bf16.msra.mxu0 %v2720
  %3382 = vmatprep.subr.bf16.mxu0 %v2725
  %3383 = vmatpush1.bf16.msra.mxu0 %v2724
  %3384 = vmatprep.subr.bf16.mxu0 %v2729
  %3385 = vmatpush1.bf16.msra.mxu0 %v2728
  %3386 = vmatprep.subr.bf16.mxu0 %v2733
  %3387 = vmatpush1.bf16.msra.mxu0 %v2732
  %3388 = vmatprep.subr.bf16.mxu0 0
  %3389 = vmatpush1.bf16.msra.mxu0 0
  %3390 = vmatprep.subr.bf16.mxu0 0
  %3391 = vmatpush1.bf16.msra.mxu0 0
  %3392 = vmatprep.subr.bf16.mxu0 0
  %3393 = vmatpush1.bf16.msra.mxu0 0
  %3394 = vmatprep.subr.bf16.mxu0 0
  %3395 = vmatpush1.bf16.msra.mxu0 0
  %3396 = vmatprep.subr.bf16.mxu0 0
  %3397 = vmatpush1.bf16.msra.mxu0 0
  %3398 = vmatprep.subr.bf16.mxu0 0
  %3399 = vmatpush1.bf16.msra.mxu0 0
  %3400 = vmatprep.subr.bf16.mxu0 0
  %3401 = vmatpush1.bf16.msra.mxu0 0
  %3402 = vmatprep.subr.bf16.mxu0 0
  %3403 = vmatpush1.bf16.msra.mxu0 0
  %3404 = vmatprep.mubr.bf16.mxu0 0
  %3405 = vmatmul.mubr.bf16.gmra.mrb[0].mxu0 %v3371
  %v3406 = vpop.f32.mrb[0].mxu0
  %v3407 = vadd.f32 0.0, %v3406
  %v3408 = vpop.f32.mrb[0].mxu0
  %v3409 = vadd.f32 0.0, %v3408
  %v3410 = vpop.f32.mrb[0].mxu0
  %v3411 = vadd.f32 0.0, %v3410
  %v3412 = vpop.f32.mrb[0].mxu0
  %v3413 = vadd.f32 0.0, %v3412
  %3414 = vdwg.mxu0
  %3415 = vmatprep.subr.bf16.mxu0 %v2707
  %3416 = vmatpush1.bf16.msra.mxu0 %v2706
  %3417 = vmatprep.subr.bf16.mxu0 %v2711
  %3418 = vmatpush1.bf16.msra.mxu0 %v2710
  %3419 = vmatprep.subr.bf16.mxu0 %v2715
  %3420 = vmatpush1.bf16.msra.mxu0 %v2714
  %3421 = vmatprep.subr.bf16.mxu0 %v2719
  %3422 = vmatpush1.bf16.msra.mxu0 %v2718
  %3423 = vmatprep.subr.bf16.mxu0 %v2723
  %3424 = vmatpush1.bf16.msra.mxu0 %v2722
  %3425 = vmatprep.subr.bf16.mxu0 %v2727
  %3426 = vmatpush1.bf16.msra.mxu0 %v2726
  %3427 = vmatprep.subr.bf16.mxu0 %v2731
  %3428 = vmatpush1.bf16.msra.mxu0 %v2730
  %3429 = vmatprep.subr.bf16.mxu0 %v2735
  %3430 = vmatpush1.bf16.msra.mxu0 %v2734
  %3431 = vmatprep.subr.bf16.mxu0 0
  %3432 = vmatpush1.bf16.msra.mxu0 0
  %3433 = vmatprep.subr.bf16.mxu0 0
  %3434 = vmatpush1.bf16.msra.mxu0 0
  %3435 = vmatprep.subr.bf16.mxu0 0
  %3436 = vmatpush1.bf16.msra.mxu0 0
  %3437 = vmatprep.subr.bf16.mxu0 0
  %3438 = vmatpush1.bf16.msra.mxu0 0
  %3439 = vmatprep.subr.bf16.mxu0 0
  %3440 = vmatpush1.bf16.msra.mxu0 0
  %3441 = vmatprep.subr.bf16.mxu0 0
  %3442 = vmatpush1.bf16.msra.mxu0 0
  %3443 = vmatprep.subr.bf16.mxu0 0
  %3444 = vmatpush1.bf16.msra.mxu0 0
  %3445 = vmatprep.subr.bf16.mxu0 0
  %3446 = vmatpush1.bf16.msra.mxu0 0
  %3447 = vmatprep.mubr.bf16.mxu0 0
  %3448 = vmatmul.mubr.bf16.gmra.mrb[0].mxu0 %v3371
  %v3449 = vpop.f32.mrb[0].mxu0
  %v3450 = vadd.f32 0.0, %v3449
  %v3451 = vpop.f32.mrb[0].mxu0
  %v3452 = vadd.f32 0.0, %v3451
  %v3453 = vpop.f32.mrb[0].mxu0
  %v3454 = vadd.f32 0.0, %v3453
  %v3455 = vpop.f32.mrb[0].mxu0
  %v3456 = vadd.f32 0.0, %v3455
  %3457 = vdwg.mxu0
  %v3458 = vadd.f32 %v3363, %v3407
  %v3459 = vadd.f32 %v3364, %v3409
  %v3460 = vadd.f32 %v3365, %v3450
  %v3461 = vadd.f32 %v3366, %v3452
  %v3462 = vadd.f32 %v3367, %v3411
  %v3463 = vadd.f32 %v3368, %v3413
  %v3464 = vadd.f32 %v3369, %v3454
  %v3465 = vadd.f32 %v3370, %v3456
  %v3466 = vxor.u32 %v3458, 2147483648
  %v3467 = vxor.u32 %v3462, 2147483648
  %v3468 = vmul.f32 %v3466, 1.442695
  %v3469 = vpow.pop %v3468
  %v3470 = vmul.f32 %v3467, 1.442695
  %v3471 = vpow.pop %v3470
  %v3472 = vadd.f32 %v3469, 1.0
  %v3473 = vadd.f32 %v3471, 1.0
  %v3474 = vrcp.pop %v3472
  %v3475 = vmul.f32 1.0, %v3474
  %v3476 = vrcp.pop %v3473
  %v3477 = vmul.f32 1.0, %v3476
  %v3478 = vxor.u32 %v3459, 2147483648
  %v3479 = vxor.u32 %v3463, 2147483648
  %v3480 = vmul.f32 %v3478, 1.442695
  %v3481 = vpow.pop %v3480
  %v3482 = vmul.f32 %v3479, 1.442695
  %v3483 = vpow.pop %v3482
  %v3484 = vadd.f32 %v3481, 1.0
  %v3485 = vadd.f32 %v3483, 1.0
  %v3486 = vrcp.pop %v3484
  %v3487 = vmul.f32 1.0, %v3486
  %v3488 = vrcp.pop %v3485
  %v3489 = vmul.f32 1.0, %v3488
  %v3490 = vtanh.pop %v3460
  %v3491 = vtanh.pop %v3464
  %v3492 = vxor.u32 %v3461, 2147483648
  %v3493 = vxor.u32 %v3465, 2147483648
  %v3494 = vmul.f32 %v3492, 1.442695
  %v3495 = vpow.pop %v3494
  %v3496 = vmul.f32 %v3493, 1.442695
  %v3497 = vpow.pop %v3496
  %v3498 = vadd.f32 %v3495, 1.0
  %v3499 = vadd.f32 %v3497, 1.0
  %v3500 = vrcp.pop %v3498
  %v3501 = vmul.f32 1.0, %v3500
  %v3502 = vrcp.pop %v3499
  %v3503 = vmul.f32 1.0, %v3502
  %v3504 = vmul.f32 %v3487, %v3357
  %v3505 = vmul.f32 %v3489, %v3358
  %v3506 = vmul.f32 %v3475, %v3490
  %v3507 = vmul.f32 %v3477, %v3491
  %v3508 = vadd.f32 %v3504, %v3506
  %v3509 = vadd.f32 %v3505, %v3507
  %v3510 = vtanh.pop %v3508
  %v3511 = vtanh.pop %v3509
  %v3512 = vmul.f32 %v3501, %v3510
  %v3513 = vmul.f32 %v3503, %v3511
  %v3514 = vld [vmem:[%s1576] sm:$0xff]
  %v3515 = vld [vmem:[%s1576 + $0x8] sm:$0xff]
  %v3516 = vld [vmem:[%s1576 + $0x10] sm:$0xff]
  %v3517 = vld [vmem:[%s1576 + $0x18] sm:$0xff]
  %v3518 = vld [vmem:[%s1576 + $0x20] sm:$0xff]
  %v3519 = vld [vmem:[%s1576 + $0x28] sm:$0xff]
  %v3520 = vld [vmem:[%s1576 + $0x30] sm:$0xff]
  %v3521 = vld [vmem:[%s1576 + $0x38] sm:$0xff]
  %v3522 = vpack.c.bf16 %v3513, %v3512
  %3523 = vmatprep.subr.bf16.mxu0 %v2705
  %3524 = vmatpush1.bf16.msra.mxu0 %v2704
  %3525 = vmatprep.subr.bf16.mxu0 %v2709
  %3526 = vmatpush1.bf16.msra.mxu0 %v2708
  %3527 = vmatprep.subr.bf16.mxu0 %v2713
  %3528 = vmatpush1.bf16.msra.mxu0 %v2712
  %3529 = vmatprep.subr.bf16.mxu0 %v2717
  %3530 = vmatpush1.bf16.msra.mxu0 %v2716
  %3531 = vmatprep.subr.bf16.mxu0 %v2721
  %3532 = vmatpush1.bf16.msra.mxu0 %v2720
  %3533 = vmatprep.subr.bf16.mxu0 %v2725
  %3534 = vmatpush1.bf16.msra.mxu0 %v2724
  %3535 = vmatprep.subr.bf16.mxu0 %v2729
  %3536 = vmatpush1.bf16.msra.mxu0 %v2728
  %3537 = vmatprep.subr.bf16.mxu0 %v2733
  %3538 = vmatpush1.bf16.msra.mxu0 %v2732
  %3539 = vmatprep.subr.bf16.mxu0 0
  %3540 = vmatpush1.bf16.msra.mxu0 0
  %3541 = vmatprep.subr.bf16.mxu0 0
  %3542 = vmatpush1.bf16.msra.mxu0 0
  %3543 = vmatprep.subr.bf16.mxu0 0
  %3544 = vmatpush1.bf16.msra.mxu0 0
  %3545 = vmatprep.subr.bf16.mxu0 0
  %3546 = vmatpush1.bf16.msra.mxu0 0
  %3547 = vmatprep.subr.bf16.mxu0 0
  %3548 = vmatpush1.bf16.msra.mxu0 0
  %3549 = vmatprep.subr.bf16.mxu0 0
  %3550 = vmatpush1.bf16.msra.mxu0 0
  %3551 = vmatprep.subr.bf16.mxu0 0
  %3552 = vmatpush1.bf16.msra.mxu0 0
  %3553 = vmatprep.subr.bf16.mxu0 0
  %3554 = vmatpush1.bf16.msra.mxu0 0
  %3555 = vmatprep.mubr.bf16.mxu0 0
  %3556 = vmatmul.mubr.bf16.gmra.mrb[0].mxu0 %v3522
  %v3557 = vpop.f32.mrb[0].mxu0
  %v3558 = vadd.f32 0.0, %v3557
  %v3559 = vpop.f32.mrb[0].mxu0
  %v3560 = vadd.f32 0.0, %v3559
  %v3561 = vpop.f32.mrb[0].mxu0
  %v3562 = vadd.f32 0.0, %v3561
  %v3563 = vpop.f32.mrb[0].mxu0
  %v3564 = vadd.f32 0.0, %v3563
  %3565 = vdwg.mxu0
  %3566 = vmatprep.subr.bf16.mxu0 %v2707
  %3567 = vmatpush1.bf16.msra.mxu0 %v2706
  %3568 = vmatprep.subr.bf16.mxu0 %v2711
  %3569 = vmatpush1.bf16.msra.mxu0 %v2710
  %3570 = vmatprep.subr.bf16.mxu0 %v2715
  %3571 = vmatpush1.bf16.msra.mxu0 %v2714
  %3572 = vmatprep.subr.bf16.mxu0 %v2719
  %3573 = vmatpush1.bf16.msra.mxu0 %v2718
  %3574 = vmatprep.subr.bf16.mxu0 %v2723
  %3575 = vmatpush1.bf16.msra.mxu0 %v2722
  %3576 = vmatprep.subr.bf16.mxu0 %v2727
  %3577 = vmatpush1.bf16.msra.mxu0 %v2726
  %3578 = vmatprep.subr.bf16.mxu0 %v2731
  %3579 = vmatpush1.bf16.msra.mxu0 %v2730
  %3580 = vmatprep.subr.bf16.mxu0 %v2735
  %3581 = vmatpush1.bf16.msra.mxu0 %v2734
  %3582 = vmatprep.subr.bf16.mxu0 0
  %3583 = vmatpush1.bf16.msra.mxu0 0
  %3584 = vmatprep.subr.bf16.mxu0 0
  %3585 = vmatpush1.bf16.msra.mxu0 0
  %3586 = vmatprep.subr.bf16.mxu0 0
  %3587 = vmatpush1.bf16.msra.mxu0 0
  %3588 = vmatprep.subr.bf16.mxu0 0
  %3589 = vmatpush1.bf16.msra.mxu0 0
  %3590 = vmatprep.subr.bf16.mxu0 0
  %3591 = vmatpush1.bf16.msra.mxu0 0
  %3592 = vmatprep.subr.bf16.mxu0 0
  %3593 = vmatpush1.bf16.msra.mxu0 0
  %3594 = vmatprep.subr.bf16.mxu0 0
  %3595 = vmatpush1.bf16.msra.mxu0 0
  %3596 = vmatprep.subr.bf16.mxu0 0
  %3597 = vmatpush1.bf16.msra.mxu0 0
  %3598 = vmatprep.mubr.bf16.mxu0 0
  %3599 = vmatmul.mubr.bf16.gmra.mrb[0].mxu0 %v3522
  %v3600 = vpop.f32.mrb[0].mxu0
  %v3601 = vadd.f32 0.0, %v3600
  %v3602 = vpop.f32.mrb[0].mxu0
  %v3603 = vadd.f32 0.0, %v3602
  %v3604 = vpop.f32.mrb[0].mxu0
  %v3605 = vadd.f32 0.0, %v3604
  %v3606 = vpop.f32.mrb[0].mxu0
  %v3607 = vadd.f32 0.0, %v3606
  %3608 = vdwg.mxu0
  %v3609 = vadd.f32 %v3514, %v3558
  %v3610 = vadd.f32 %v3515, %v3560
  %v3611 = vadd.f32 %v3516, %v3601
  %v3612 = vadd.f32 %v3517, %v3603
  %v3613 = vadd.f32 %v3518, %v3562
  %v3614 = vadd.f32 %v3519, %v3564
  %v3615 = vadd.f32 %v3520, %v3605
  %v3616 = vadd.f32 %v3521, %v3607
  %v3617 = vxor.u32 %v3609, 2147483648
  %v3618 = vxor.u32 %v3613, 2147483648
  %v3619 = vmul.f32 %v3617, 1.442695
  %v3620 = vpow.pop %v3619
  %v3621 = vmul.f32 %v3618, 1.442695
  %v3622 = vpow.pop %v3621
  %v3623 = vadd.f32 %v3620, 1.0
  %v3624 = vadd.f32 %v3622, 1.0
  %v3625 = vrcp.pop %v3623
  %v3626 = vmul.f32 1.0, %v3625
  %v3627 = vrcp.pop %v3624
  %v3628 = vmul.f32 1.0, %v3627
  %v3629 = vxor.u32 %v3610, 2147483648
  %v3630 = vxor.u32 %v3614, 2147483648
  %v3631 = vmul.f32 %v3629, 1.442695
  %v3632 = vpow.pop %v3631
  %v3633 = vmul.f32 %v3630, 1.442695
  %v3634 = vpow.pop %v3633
  %v3635 = vadd.f32 %v3632, 1.0
  %v3636 = vadd.f32 %v3634, 1.0
  %v3637 = vrcp.pop %v3635
  %v3638 = vmul.f32 1.0, %v3637
  %v3639 = vrcp.pop %v3636
  %v3640 = vmul.f32 1.0, %v3639
  %v3641 = vtanh.pop %v3611
  %v3642 = vtanh.pop %v3615
  %v3643 = vxor.u32 %v3612, 2147483648
  %v3644 = vxor.u32 %v3616, 2147483648
  %v3645 = vmul.f32 %v3643, 1.442695
  %v3646 = vpow.pop %v3645
  %v3647 = vmul.f32 %v3644, 1.442695
  %v3648 = vpow.pop %v3647
  %v3649 = vadd.f32 %v3646, 1.0
  %v3650 = vadd.f32 %v3648, 1.0
  %v3651 = vrcp.pop %v3649
  %v3652 = vmul.f32 1.0, %v3651
  %v3653 = vrcp.pop %v3650
  %v3654 = vmul.f32 1.0, %v3653
  %v3655 = vmul.f32 %v3638, %v3508
  %v3656 = vmul.f32 %v3640, %v3509
  %v3657 = vmul.f32 %v3626, %v3641
  %v3658 = vmul.f32 %v3628, %v3642
  %v3659 = vadd.f32 %v3655, %v3657
  %v3660 = vadd.f32 %v3656, %v3658
  %v3661 = vtanh.pop %v3659
  %v3662 = vtanh.pop %v3660
  %v3663 = vmul.f32 %v3652, %v3661
  %v3664 = vmul.f32 %v3654, %v3662
  %v3665 = vld [vmem:[%s1732] sm:$0xff]
  %v3666 = vld [vmem:[%s1732 + $0x8] sm:$0xff]
  %v3667 = vld [vmem:[%s1732 + $0x10] sm:$0xff]
  %v3668 = vld [vmem:[%s1732 + $0x18] sm:$0xff]
  %v3669 = vld [vmem:[%s1732 + $0x20] sm:$0xff]
  %v3670 = vld [vmem:[%s1732 + $0x28] sm:$0xff]
  %v3671 = vld [vmem:[%s1732 + $0x30] sm:$0xff]
  %v3672 = vld [vmem:[%s1732 + $0x38] sm:$0xff]
  %v3673 = vpack.c.bf16 %v3664, %v3663
  %3674 = vmatprep.subr.bf16.mxu0 %v2705
  %3675 = vmatpush1.bf16.msra.mxu0 %v2704
  %3676 = vmatprep.subr.bf16.mxu0 %v2709
  %3677 = vmatpush1.bf16.msra.mxu0 %v2708
  %3678 = vmatprep.subr.bf16.mxu0 %v2713
  %3679 = vmatpush1.bf16.msra.mxu0 %v2712
  %3680 = vmatprep.subr.bf16.mxu0 %v2717
  %3681 = vmatpush1.bf16.msra.mxu0 %v2716
  %3682 = vmatprep.subr.bf16.mxu0 %v2721
  %3683 = vmatpush1.bf16.msra.mxu0 %v2720
  %3684 = vmatprep.subr.bf16.mxu0 %v2725
  %3685 = vmatpush1.bf16.msra.mxu0 %v2724
  %3686 = vmatprep.subr.bf16.mxu0 %v2729
  %3687 = vmatpush1.bf16.msra.mxu0 %v2728
  %3688 = vmatprep.subr.bf16.mxu0 %v2733
  %3689 = vmatpush1.bf16.msra.mxu0 %v2732
  %3690 = vmatprep.subr.bf16.mxu0 0
  %3691 = vmatpush1.bf16.msra.mxu0 0
  %3692 = vmatprep.subr.bf16.mxu0 0
  %3693 = vmatpush1.bf16.msra.mxu0 0
  %3694 = vmatprep.subr.bf16.mxu0 0
  %3695 = vmatpush1.bf16.msra.mxu0 0
  %3696 = vmatprep.subr.bf16.mxu0 0
  %3697 = vmatpush1.bf16.msra.mxu0 0
  %3698 = vmatprep.subr.bf16.mxu0 0
  %3699 = vmatpush1.bf16.msra.mxu0 0
  %3700 = vmatprep.subr.bf16.mxu0 0
  %3701 = vmatpush1.bf16.msra.mxu0 0
  %3702 = vmatprep.subr.bf16.mxu0 0
  %3703 = vmatpush1.bf16.msra.mxu0 0
  %3704 = vmatprep.subr.bf16.mxu0 0
  %3705 = vmatpush1.bf16.msra.mxu0 0
  %3706 = vmatprep.mubr.bf16.mxu0 0
  %3707 = vmatmul.mubr.bf16.gmra.mrb[0].mxu0 %v3673
  %v3708 = vpop.f32.mrb[0].mxu0
  %v3709 = vadd.f32 0.0, %v3708
  %v3710 = vpop.f32.mrb[0].mxu0
  %v3711 = vadd.f32 0.0, %v3710
  %v3712 = vpop.f32.mrb[0].mxu0
  %v3713 = vadd.f32 0.0, %v3712
  %v3714 = vpop.f32.mrb[0].mxu0
  %v3715 = vadd.f32 0.0, %v3714
  %3716 = vdwg.mxu0
  %3717 = vmatprep.subr.bf16.mxu0 %v2707
  %3718 = vmatpush1.bf16.msra.mxu0 %v2706
  %3719 = vmatprep.subr.bf16.mxu0 %v2711
  %3720 = vmatpush1.bf16.msra.mxu0 %v2710
  %3721 = vmatprep.subr.bf16.mxu0 %v2715
  %3722 = vmatpush1.bf16.msra.mxu0 %v2714
  %3723 = vmatprep.subr.bf16.mxu0 %v2719
  %3724 = vmatpush1.bf16.msra.mxu0 %v2718
  %3725 = vmatprep.subr.bf16.mxu0 %v2723
  %3726 = vmatpush1.bf16.msra.mxu0 %v2722
  %3727 = vmatprep.subr.bf16.mxu0 %v2727
  %3728 = vmatpush1.bf16.msra.mxu0 %v2726
  %3729 = vmatprep.subr.bf16.mxu0 %v2731
  %3730 = vmatpush1.bf16.msra.mxu0 %v2730
  %3731 = vmatprep.subr.bf16.mxu0 %v2735
  %3732 = vmatpush1.bf16.msra.mxu0 %v2734
  %3733 = vmatprep.subr.bf16.mxu0 0
  %3734 = vmatpush1.bf16.msra.mxu0 0
  %3735 = vmatprep.subr.bf16.mxu0 0
  %3736 = vmatpush1.bf16.msra.mxu0 0
  %3737 = vmatprep.subr.bf16.mxu0 0
  %3738 = vmatpush1.bf16.msra.mxu0 0
  %3739 = vmatprep.subr.bf16.mxu0 0
  %3740 = vmatpush1.bf16.msra.mxu0 0
  %3741 = vmatprep.subr.bf16.mxu0 0
  %3742 = vmatpush1.bf16.msra.mxu0 0
  %3743 = vmatprep.subr.bf16.mxu0 0
  %3744 = vmatpush1.bf16.msra.mxu0 0
  %3745 = vmatprep.subr.bf16.mxu0 0
  %3746 = vmatpush1.bf16.msra.mxu0 0
  %3747 = vmatprep.subr.bf16.mxu0 0
  %3748 = vmatpush1.bf16.msra.mxu0 0
  %3749 = vmatprep.mubr.bf16.mxu0 0
  %3750 = vmatmul.mubr.bf16.gmra.mrb[0].mxu0 %v3673
  %v3751 = vpop.f32.mrb[0].mxu0
  %v3752 = vadd.f32 0.0, %v3751
  %v3753 = vpop.f32.mrb[0].mxu0
  %v3754 = vadd.f32 0.0, %v3753
  %v3755 = vpop.f32.mrb[0].mxu0
  %v3756 = vadd.f32 0.0, %v3755
  %v3757 = vpop.f32.mrb[0].mxu0
  %v3758 = vadd.f32 0.0, %v3757
  %3759 = vdwg.mxu0
  %v3760 = vadd.f32 %v3665, %v3709
  %v3761 = vadd.f32 %v3666, %v3711
  %v3762 = vadd.f32 %v3667, %v3752
  %v3763 = vadd.f32 %v3668, %v3754
  %v3764 = vadd.f32 %v3669, %v3713
  %v3765 = vadd.f32 %v3670, %v3715
  %v3766 = vadd.f32 %v3671, %v3756
  %v3767 = vadd.f32 %v3672, %v3758
  %v3768 = vxor.u32 %v3760, 2147483648
  %v3769 = vxor.u32 %v3764, 2147483648
  %v3770 = vmul.f32 %v3768, 1.442695
  %v3771 = vpow.pop %v3770
  %v3772 = vmul.f32 %v3769, 1.442695
  %v3773 = vpow.pop %v3772
  %v3774 = vadd.f32 %v3771, 1.0
  %v3775 = vadd.f32 %v3773, 1.0
  %v3776 = vrcp.pop %v3774
  %v3777 = vmul.f32 1.0, %v3776
  %v3778 = vrcp.pop %v3775
  %v3779 = vmul.f32 1.0, %v3778
  %v3780 = vxor.u32 %v3761, 2147483648
  %v3781 = vxor.u32 %v3765, 2147483648
  %v3782 = vmul.f32 %v3780, 1.442695
  %v3783 = vpow.pop %v3782
  %v3784 = vmul.f32 %v3781, 1.442695
  %v3785 = vpow.pop %v3784
  %v3786 = vadd.f32 %v3783, 1.0
  %v3787 = vadd.f32 %v3785, 1.0
  %v3788 = vrcp.pop %v3786
  %v3789 = vmul.f32 1.0, %v3788
  %v3790 = vrcp.pop %v3787
  %v3791 = vmul.f32 1.0, %v3790
  %v3792 = vtanh.pop %v3762
  %v3793 = vtanh.pop %v3766
  %v3794 = vxor.u32 %v3763, 2147483648
  %v3795 = vxor.u32 %v3767, 2147483648
  %v3796 = vmul.f32 %v3794, 1.442695
  %v3797 = vpow.pop %v3796
  %v3798 = vmul.f32 %v3795, 1.442695
  %v3799 = vpow.pop %v3798
  %v3800 = vadd.f32 %v3797, 1.0
  %v3801 = vadd.f32 %v3799, 1.0
  %v3802 = vrcp.pop %v3800
  %v3803 = vmul.f32 1.0, %v3802
  %v3804 = vrcp.pop %v3801
  %v3805 = vmul.f32 1.0, %v3804
  %v3806 = vmul.f32 %v3789, %v3659
  %v3807 = vmul.f32 %v3791, %v3660
  %v3808 = vmul.f32 %v3777, %v3792
  %v3809 = vmul.f32 %v3779, %v3793
  %v3810 = vadd.f32 %v3806, %v3808
  %v3811 = vadd.f32 %v3807, %v3809
  %v3812 = vtanh.pop %v3810
  %v3813 = vtanh.pop %v3811
  %v3814 = vmul.f32 %v3803, %v3812
  %v3815 = vmul.f32 %v3805, %v3813
  %v3816 = vld [vmem:[%s1888] sm:$0xff]
  %v3817 = vld [vmem:[%s1888 + $0x8] sm:$0xff]
  %v3818 = vld [vmem:[%s1888 + $0x10] sm:$0xff]
  %v3819 = vld [vmem:[%s1888 + $0x18] sm:$0xff]
  %v3820 = vld [vmem:[%s1888 + $0x20] sm:$0xff]
  %v3821 = vld [vmem:[%s1888 + $0x28] sm:$0xff]
  %v3822 = vld [vmem:[%s1888 + $0x30] sm:$0xff]
  %v3823 = vld [vmem:[%s1888 + $0x38] sm:$0xff]
  %v3824 = vpack.c.bf16 %v3815, %v3814
  %3825 = vmatprep.subr.bf16.mxu0 %v2705
  %3826 = vmatpush1.bf16.msra.mxu0 %v2704
  %3827 = vmatprep.subr.bf16.mxu0 %v2709
  %3828 = vmatpush1.bf16.msra.mxu0 %v2708
  %3829 = vmatprep.subr.bf16.mxu0 %v2713
  %3830 = vmatpush1.bf16.msra.mxu0 %v2712
  %3831 = vmatprep.subr.bf16.mxu0 %v2717
  %3832 = vmatpush1.bf16.msra.mxu0 %v2716
  %3833 = vmatprep.subr.bf16.mxu0 %v2721
  %3834 = vmatpush1.bf16.msra.mxu0 %v2720
  %3835 = vmatprep.subr.bf16.mxu0 %v2725
  %3836 = vmatpush1.bf16.msra.mxu0 %v2724
  %3837 = vmatprep.subr.bf16.mxu0 %v2729
  %3838 = vmatpush1.bf16.msra.mxu0 %v2728
  %3839 = vmatprep.subr.bf16.mxu0 %v2733
  %3840 = vmatpush1.bf16.msra.mxu0 %v2732
  %3841 = vmatprep.subr.bf16.mxu0 0
  %3842 = vmatpush1.bf16.msra.mxu0 0
  %3843 = vmatprep.subr.bf16.mxu0 0
  %3844 = vmatpush1.bf16.msra.mxu0 0
  %3845 = vmatprep.subr.bf16.mxu0 0
  %3846 = vmatpush1.bf16.msra.mxu0 0
  %3847 = vmatprep.subr.bf16.mxu0 0
  %3848 = vmatpush1.bf16.msra.mxu0 0
  %3849 = vmatprep.subr.bf16.mxu0 0
  %3850 = vmatpush1.bf16.msra.mxu0 0
  %3851 = vmatprep.subr.bf16.mxu0 0
  %3852 = vmatpush1.bf16.msra.mxu0 0
  %3853 = vmatprep.subr.bf16.mxu0 0
  %3854 = vmatpush1.bf16.msra.mxu0 0
  %3855 = vmatprep.subr.bf16.mxu0 0
  %3856 = vmatpush1.bf16.msra.mxu0 0
  %3857 = vmatprep.mubr.bf16.mxu0 0
  %3858 = vmatmul.mubr.bf16.gmra.mrb[0].mxu0 %v3824
  %v3859 = vpop.f32.mrb[0].mxu0
  %v3860 = vadd.f32 0.0, %v3859
  %v3861 = vpop.f32.mrb[0].mxu0
  %v3862 = vadd.f32 0.0, %v3861
  %v3863 = vpop.f32.mrb[0].mxu0
  %v3864 = vadd.f32 0.0, %v3863
  %v3865 = vpop.f32.mrb[0].mxu0
  %v3866 = vadd.f32 0.0, %v3865
  %3867 = vdwg.mxu0
  %3868 = vmatprep.subr.bf16.mxu0 %v2707
  %3869 = vmatpush1.bf16.msra.mxu0 %v2706
  %3870 = vmatprep.subr.bf16.mxu0 %v2711
  %3871 = vmatpush1.bf16.msra.mxu0 %v2710
  %3872 = vmatprep.subr.bf16.mxu0 %v2715
  %3873 = vmatpush1.bf16.msra.mxu0 %v2714
  %3874 = vmatprep.subr.bf16.mxu0 %v2719
  %3875 = vmatpush1.bf16.msra.mxu0 %v2718
  %3876 = vmatprep.subr.bf16.mxu0 %v2723
  %3877 = vmatpush1.bf16.msra.mxu0 %v2722
  %3878 = vmatprep.subr.bf16.mxu0 %v2727
  %3879 = vmatpush1.bf16.msra.mxu0 %v2726
  %3880 = vmatprep.subr.bf16.mxu0 %v2731
  %3881 = vmatpush1.bf16.msra.mxu0 %v2730
  %3882 = vmatprep.subr.bf16.mxu0 %v2735
  %3883 = vmatpush1.bf16.msra.mxu0 %v2734
  %3884 = vmatprep.subr.bf16.mxu0 0
  %3885 = vmatpush1.bf16.msra.mxu0 0
  %3886 = vmatprep.subr.bf16.mxu0 0
  %3887 = vmatpush1.bf16.msra.mxu0 0
  %3888 = vmatprep.subr.bf16.mxu0 0
  %3889 = vmatpush1.bf16.msra.mxu0 0
  %3890 = vmatprep.subr.bf16.mxu0 0
  %3891 = vmatpush1.bf16.msra.mxu0 0
  %3892 = vmatprep.subr.bf16.mxu0 0
  %3893 = vmatpush1.bf16.msra.mxu0 0
  %3894 = vmatprep.subr.bf16.mxu0 0
  %3895 = vmatpush1.bf16.msra.mxu0 0
  %3896 = vmatprep.subr.bf16.mxu0 0
  %3897 = vmatpush1.bf16.msra.mxu0 0
  %3898 = vmatprep.subr.bf16.mxu0 0
  %3899 = vmatpush1.bf16.msra.mxu0 0
  %3900 = vmatprep.mubr.bf16.mxu0 0
  %3901 = vmatmul.mubr.bf16.gmra.mrb[0].mxu0 %v3824
  %v3902 = vpop.f32.mrb[0].mxu0
  %v3903 = vadd.f32 0.0, %v3902
  %v3904 = vpop.f32.mrb[0].mxu0
  %v3905 = vadd.f32 0.0, %v3904
  %v3906 = vpop.f32.mrb[0].mxu0
  %v3907 = vadd.f32 0.0, %v3906
  %v3908 = vpop.f32.mrb[0].mxu0
  %v3909 = vadd.f32 0.0, %v3908
  %3910 = vdwg.mxu0
  %v3911 = vadd.f32 %v3816, %v3860
  %v3912 = vadd.f32 %v3817, %v3862
  %v3913 = vadd.f32 %v3818, %v3903
  %v3914 = vadd.f32 %v3819, %v3905
  %v3915 = vadd.f32 %v3820, %v3864
  %v3916 = vadd.f32 %v3821, %v3866
  %v3917 = vadd.f32 %v3822, %v3907
  %v3918 = vadd.f32 %v3823, %v3909
  %v3919 = vxor.u32 %v3911, 2147483648
  %v3920 = vxor.u32 %v3915, 2147483648
  %v3921 = vmul.f32 %v3919, 1.442695
  %v3922 = vpow.pop %v3921
  %v3923 = vmul.f32 %v3920, 1.442695
  %v3924 = vpow.pop %v3923
  %v3925 = vadd.f32 %v3922, 1.0
  %v3926 = vadd.f32 %v3924, 1.0
  %v3927 = vrcp.pop %v3925
  %v3928 = vmul.f32 1.0, %v3927
  %v3929 = vrcp.pop %v3926
  %v3930 = vmul.f32 1.0, %v3929
  %v3931 = vxor.u32 %v3912, 2147483648
  %v3932 = vxor.u32 %v3916, 2147483648
  %v3933 = vmul.f32 %v3931, 1.442695
  %v3934 = vpow.pop %v3933
  %v3935 = vmul.f32 %v3932, 1.442695
  %v3936 = vpow.pop %v3935
  %v3937 = vadd.f32 %v3934, 1.0
  %v3938 = vadd.f32 %v3936, 1.0
  %v3939 = vrcp.pop %v3937
  %v3940 = vmul.f32 1.0, %v3939
  %v3941 = vrcp.pop %v3938
  %v3942 = vmul.f32 1.0, %v3941
  %v3943 = vtanh.pop %v3913
  %v3944 = vtanh.pop %v3917
  %v3945 = vxor.u32 %v3914, 2147483648
  %v3946 = vxor.u32 %v3918, 2147483648
  %v3947 = vmul.f32 %v3945, 1.442695
  %v3948 = vpow.pop %v3947
  %v3949 = vmul.f32 %v3946, 1.442695
  %v3950 = vpow.pop %v3949
  %v3951 = vadd.f32 %v3948, 1.0
  %v3952 = vadd.f32 %v3950, 1.0
  %v3953 = vrcp.pop %v3951
  %v3954 = vmul.f32 1.0, %v3953
  %v3955 = vrcp.pop %v3952
  %v3956 = vmul.f32 1.0, %v3955
  %v3957 = vmul.f32 %v3940, %v3810
  %v3958 = vmul.f32 %v3942, %v3811
  %v3959 = vmul.f32 %v3928, %v3943
  %v3960 = vmul.f32 %v3930, %v3944
  %v3961 = vadd.f32 %v3957, %v3959
  %v3962 = vadd.f32 %v3958, %v3960
  %v3963 = vtanh.pop %v3961
  %v3964 = vtanh.pop %v3962
  %v3965 = vmul.f32 %v3954, %v3963
  %v3966 = vmul.f32 %v3956, %v3964
  %3967 = vst [vmem:[%s2593] sm:$0xff] %v3965
  %3968 = vst [vmem:[%s2593 + $0x8] sm:$0xff] %v3966
  %3969 = vst [vmem:[%s2596] sm:$0xff] %v3961
  %3970 = vst [vmem:[%s2596 + $0x8] sm:$0xff] %v3962
  %3971 = vst [vmem:[%s4] sm:$0xff] %v3965
  %3972 = vst [vmem:[%s4 + $0x8] sm:$0xff] %v3966
  // Predicated region
  $region22: #{a_call__.1} parent=0 // pred_check
    _
  $region23: #{a_call__.1} parent=0 // pred_check_branch
    %3974 = sbr.rel (0) target = $region25
  $region24: #{a_call__.1} parent=0 // pred_region
    _
  $region25: #{a_call__.1} parent=0 // pred_fallthru
    _
  // Predicated region
  $region26: #{a_call__.1} parent=0 // pred_check
    _
  $region27: #{a_call__.1} parent=0 // pred_check_branch
    %3976 = sbr.rel (0) target = $region29
  $region28: #{a_call__.1} parent=0 // pred_region
    _
  $region29: #{a_call__.1} parent=0 // pred_fallthru
    _

</llo_original>
